<compile_context>
chip_gen: v6e
topology: v6e:2x2x1
jax: 0.10.0
libtpu: 0.0.40
codegen_flags: <defaults>
</compile_context>

<pallas_src>
import jax
import jax.numpy as jnp
from jax.experimental import pallas as pl
from jax.experimental.pallas import tpu as pltpu

LANE = 128


def _round_up(x, m):
    return ((x + m - 1) // m) * m


# ----------------------------------------------------------------------------
# Pallas kernel: one full GRU layer, grid=(T // Tb,), hidden state resident in
# a VMEM scratch across the (serial) T grid axis.
# ----------------------------------------------------------------------------
def _make_gru_layer_kernel(Tb, B, N, HP, K, write_full_seq, compute_dtype):
    BN = B * N
    f32 = jnp.float32

    def kernel(g_ref, x_ref, h0_ref,
               wzrx_ref, wzrh_ref, wux_ref, wuh_ref, bzr_ref, bu_ref,
               out_ref, h_ref, pzr_ref, pu_ref):
        # g_ref   : [K, B*N, B*N]  block-diagonal supports (compute dtype)
        # x_ref   : [Tb, B, N, C]  time-major input block for Tb timesteps
        # h0_ref  : [B*N, HP]      initial hidden state (f32)
        # wzrx_ref: [C,  K*2*HP]   x rows of fused z|r gate weights
        # wzrh_ref: [HP, K*2*HP]   h rows of fused z|r gate weights
        # wux_ref : [C,  K*HP]     x rows of candidate weights
        # wuh_ref : [HP, K*HP]     h rows of candidate weights
        # bzr_ref : [1, 2*HP], bu_ref : [1, HP]   biases (f32)
        # out_ref : [Tb, B, N, HP] (full seq) or [1, B, N, HP] (last only)
        # h_ref   : [B*N, HP] f32 VMEM scratch, persists across grid steps
        # pzr_ref : [Tb, B*N, K*2*HP] f32 scratch (hoisted x projections)
        # pu_ref  : [Tb, B*N, K*HP]   f32 scratch

        @pl.when(pl.program_id(0) == 0)
        def _init():
            h_ref[...] = h0_ref[...]

        # --- Time-parallel x projections for the whole Tb block: one matmul
        #     per weight, off the serial per-timestep critical path.
        C = x_ref.shape[-1]
        x2 = x_ref[...].reshape(Tb * BN, C).astype(compute_dtype)
        pzr_ref[...] = jnp.dot(
            x2, wzrx_ref[...], preferred_element_type=f32
        ).reshape(Tb, BN, K * 2 * HP)
        pu_ref[...] = jnp.dot(
            x2, wux_ref[...], preferred_element_type=f32
        ).reshape(Tb, BN, K * HP)

        g = g_ref[...]            # [K, BN, BN]
        wzrh = wzrh_ref[...]
        wuh = wuh_ref[...]
        bzr = bzr_ref[...]        # [1, 2*HP]
        bu = bu_ref[...]          # [1, HP]

        h = h_ref[...]            # [BN, HP] f32
        # Static loop: Tb is small (<=8) and iterations are serially dependent
        # through h, so live ranges stay bounded.
        for tt in range(Tb):
            # Fused z|r projection + graph aggregation (256-lane outputs).
            pzr = (pzr_ref[tt]
                   + jnp.dot(h.astype(compute_dtype), wzrh,
                             preferred_element_type=f32)).astype(compute_dtype)
            gzr = jnp.dot(g[0], pzr[:, 0:2 * HP], preferred_element_type=f32)
            for k in range(1, K):
                gzr = gzr + jnp.dot(g[k], pzr[:, k * 2 * HP:(k + 1) * 2 * HP],
                                    preferred_element_type=f32)
            gzr = gzr + bzr
            z = jax.nn.sigmoid(gzr[:, :HP])
            r = jax.nn.sigmoid(gzr[:, HP:])

            # Candidate state (uses r*h as the state input of the update GCN).
            pu = (pu_ref[tt]
                  + jnp.dot((r * h).astype(compute_dtype), wuh,
                            preferred_element_type=f32)).astype(compute_dtype)
            gu = jnp.dot(g[0], pu[:, 0:HP], preferred_element_type=f32)
            for k in range(1, K):
                gu = gu + jnp.dot(g[k], pu[:, k * HP:(k + 1) * HP],
                                  preferred_element_type=f32)
            hc = jnp.tanh(gu + bu)

            h = (1.0 - z) * h + z * hc
            if write_full_seq:
                out_ref[tt] = h.reshape(B, N, HP).astype(out_ref.dtype)
            elif tt == Tb - 1:
                out_ref[0] = h.reshape(B, N, HP).astype(out_ref.dtype)
        h_ref[...] = h

    return kernel


def _gru_layer_pallas(G_bd, x_seq_tf, h0, w, *, Tb, write_full_seq,
                      out_dtype, compute_dtype):
    """Run one GRU layer over the whole (time-major) sequence."""
    K, BN, _ = G_bd.shape
    T, B, N, C = x_seq_tf.shape
    HP = h0.shape[-1]
    assert T % Tb == 0
    n_blocks = T // Tb
    out_T = T if write_full_seq else 1

    kernel = _make_gru_layer_kernel(Tb, B, N, HP, K, write_full_seq,
                                    compute_dtype)
    const2 = lambda tb: (0, 0)
    const3 = lambda tb: (0, 0, 0)

    if write_full_seq:
        out_spec = pl.BlockSpec((Tb, B, N, HP), lambda tb: (tb, 0, 0, 0))
    else:
        # Final-layer optimization: only the last hidden state is written.
        out_spec = pl.BlockSpec((1, B, N, HP), lambda tb: (0, 0, 0, 0))

    return pl.pallas_call(
        kernel,
        out_shape=jax.ShapeDtypeStruct((out_T, B, N, HP), out_dtype),
        grid_spec=pltpu.PrefetchScalarGridSpec(
            num_scalar_prefetch=0,
            grid=(n_blocks,),
            in_specs=[
                pl.BlockSpec((K, BN, BN), const3),                       # G_bd
                pl.BlockSpec((Tb, B, N, C), lambda tb: (tb, 0, 0, 0)),   # x
                pl.BlockSpec((BN, HP), const2),                          # h0
                pl.BlockSpec(w["Wzr_x"].shape, const2),
                pl.BlockSpec(w["Wzr_h"].shape, const2),
                pl.BlockSpec(w["Wu_x"].shape, const2),
                pl.BlockSpec(w["Wu_h"].shape, const2),
                pl.BlockSpec((1, 2 * HP), const2),                       # bzr
                pl.BlockSpec((1, HP), const2),                           # bu
            ],
            out_specs=out_spec,
            scratch_shapes=[
                pltpu.VMEM((BN, HP), jnp.float32),              # hidden state
                pltpu.VMEM((Tb, BN, K * 2 * HP), jnp.float32),  # x proj (z|r)
                pltpu.VMEM((Tb, BN, K * HP), jnp.float32),      # x proj (upd)
            ],
        ),
        compiler_params=pltpu.CompilerParams(
            dimension_semantics=("arbitrary",),   # serial recurrence over T
            vmem_limit_bytes=32 * 1024 * 1024,
        ),
    )(G_bd, x_seq_tf, h0, w["Wzr_x"], w["Wzr_h"], w["Wu_x"], w["Wu_h"],
      w["bzr"], w["bu"])


# ----------------------------------------------------------------------------
# Weight re-packing (static slicing / padding, done once per layer in JAX)
# ----------------------------------------------------------------------------
def _prepare_layer_weights(p, K, in_dim_padded, compute_dtype):
    """Re-pack one GRU_Cell's GCN weights for the fused kernel.

    Original (PyTorch) layout:
        W_gate: [K*(C+H), 2H], b_gate: [2H]
        W_upd : [K*(C+H),  H], b_upd : [H]
    Re-packed (H zero-padded to Hp = multiple of 128; z|r fused per k):
        Wzr_x: [C_in, K*2*Hp], Wzr_h: [Hp, K*2*Hp]
        Wu_x : [C_in, K*Hp],   Wu_h : [Hp, K*Hp]
        bzr  : [1, 2*Hp],      bu   : [1, Hp]
    Padding is exact: padded rows/cols are 0, so padded hidden channels stay
    exactly 0 through the GRU recurrence.
    """
    W_gate, b_gate = p["W_gate"], p["b_gate"]
    W_upd, b_upd = p["W_upd"], p["b_upd"]
    H = W_upd.shape[1]
    D = W_gate.shape[0] // K
    C = D - H
    HP = _round_up(H, LANE)
    assert in_dim_padded >= C

    Wg = W_gate.reshape(K, D, 2 * H)
    Wu = W_upd.reshape(K, D, H)
    Wgx, Wgh = Wg[:, :C, :], Wg[:, C:, :]     # x rows / h rows
    Wux, Wuh = Wu[:, :C, :], Wu[:, C:, :]

    def pad_zr(w):   # [K, R, 2H] -> [K, R, 2*HP], lanes = [z(HP) | r(HP)]
        wz = jnp.pad(w[..., :H], ((0, 0), (0, 0), (0, HP - H)))
        wr = jnp.pad(w[..., H:], ((0, 0), (0, 0), (0, HP - H)))
        return jnp.concatenate([wz, wr], axis=-1)

    def pad_u(w):    # [K, R, H] -> [K, R, HP]
        return jnp.pad(w, ((0, 0), (0, 0), (0, HP - H)))

    def pack_x(w):   # [K, C, L] -> [in_dim_padded, K*L]
        w = jnp.pad(w, ((0, 0), (0, in_dim_padded - C), (0, 0)))
        return jnp.transpose(w, (1, 0, 2)).reshape(in_dim_padded, -1)

    def pack_h(w):   # [K, H, L] -> [HP, K*L]
        w = jnp.pad(w, ((0, 0), (0, HP - H), (0, 0)))
        return jnp.transpose(w, (1, 0, 2)).reshape(HP, -1)

    def pack_b(b):   # [H] -> [HP]
        return jnp.pad(b, (0, HP - H))

    return dict(
        Wzr_x=pack_x(pad_zr(Wgx)).astype(compute_dtype),
        Wzr_h=pack_h(pad_zr(Wgh)).astype(compute_dtype),
        Wu_x=pack_x(pad_u(Wux)).astype(compute_dtype),
        Wu_h=pack_h(pad_u(Wuh)).astype(compute_dtype),
        bzr=jnp.concatenate([pack_b(b_gate[:H]), pack_b(b_gate[H:])]
                            ).reshape(1, 2 * HP).astype(jnp.float32),
        bu=pack_b(b_upd).reshape(1, HP).astype(jnp.float32),
        H=H, HP=HP,
    )


def _block_diag_supports(G, B, compute_dtype):
    """[K, N, N] -> [K, B*N, B*N] block-diagonal over batch (kron(eye(B), G_k))."""
    K, N, _ = G.shape
    eye = jnp.eye(B, dtype=G.dtype)
    g_bd = jnp.einsum('ab,kij->kaibj', eye, G).reshape(K, B * N, B * N)
    return g_bd.astype(compute_dtype)


# ----------------------------------------------------------------------------
# Parameter construction (matches nn.init.xavier_normal_ / zero bias)
# ----------------------------------------------------------------------------
def _xavier_normal(key, shape):
    fan_in, fan_out = shape
    std = (2.0 / (fan_in + fan_out)) ** 0.5
    return std * jax.random.normal(key, shape, dtype=jnp.float32)


def make_encoder_params(key, dim_in, dim_hidden_list, K):
    params = []
    for i, H in enumerate(dim_hidden_list):
        cur_in = dim_in if i == 0 else dim_hidden_list[i - 1]
        D = cur_in + H
        key, k1, k2 = jax.random.split(key, 3)
        params.append(dict(
            W_gate=_xavier_normal(k1, (K * D, 2 * H)),
            b_gate=jnp.zeros((2 * H,), jnp.float32),
            W_upd=_xavier_normal(k2, (K * D, H)),
            b_upd=jnp.zeros((H,), jnp.float32),
        ))
    return params


# ----------------------------------------------------------------------------
# Encoder forward: one fused pallas_call per layer, outputs chained directly.
# ----------------------------------------------------------------------------
def encoder_forward(G, x_seq, init_h, params, *, compute_dtype=jnp.float32,
                    Tb=None):
    """
    G:      [K, N, N]
    x_seq:  [B, T, N, C]
    init_h: list of [B, N, H_i] per layer (or None -> zeros)
    returns: list of last hidden states [B, N, H_i], one per layer
    """
    K = G.shape[0]
    B, T, N, _ = x_seq.shape
    if init_h is None:
        init_h = [jnp.zeros((B, N, p["W_upd"].shape[1]), jnp.float32)
                  for p in params]
    if Tb is None:
        Tb = max(d for d in (8, 4, 2, 1) if T % d == 0)
    seq_dtype = compute_dtype   # bf16 inter-layer sequences in bf16 mode

    G_bd = _block_diag_supports(G, B, compute_dtype)
    cur = jnp.transpose(x_seq, (1, 0, 2, 3))     # time-major [T, B, N, C]
    outs = []
    n_layers = len(params)
    for i, p in enumerate(params):
        w = _prepare_layer_weights(p, K, cur.shape[-1], compute_dtype)
        H, HP = w["H"], w["HP"]
        h0 = jnp.pad(init_h[i].astype(jnp.float32),
                     ((0, 0), (0, 0), (0, HP - H))).reshape(B * N, HP)
        is_last = (i == n_layers - 1)
        out_seq = _gru_layer_pallas(
            G_bd, cur, h0, w, Tb=Tb, write_full_seq=not is_last,
            out_dtype=(jnp.float32 if is_last else seq_dtype),
            compute_dtype=compute_dtype)
        if is_last:
            outs.append(out_seq[0, :, :, :H].astype(jnp.float32))
        else:
            outs.append(out_seq[T - 1, :, :, :H].astype(jnp.float32))
            # Next layer consumes the padded, time-major sequence directly:
            # padded hidden lanes are exactly 0 and meet zero weight rows.
            cur = out_seq
    return outs


# ----------------------------------------------------------------------------
# Pure-JAX reference (mirrors the PyTorch forward exactly)
# ----------------------------------------------------------------------------
def _gcn_ref(G, x, W, b):
    K = G.shape[0]
    sup = jnp.concatenate([jnp.einsum('ij,bjp->bip', G[k], x)
                           for k in range(K)], axis=-1)
    return jnp.einsum('bip,pq->biq', sup, W) + b


def _cell_ref(G, x, h, p, H):
    comb = jnp.concatenate([x, h], axis=-1)
    gates = jax.nn.sigmoid(_gcn_ref(G, comb, p["W_gate"], p["b_gate"]))
    z, r = gates[..., :H], gates[..., H:]
    cand = jnp.concatenate([x, r * h], axis=-1)
    hc = jnp.tanh(_gcn_ref(G, cand, p["W_upd"], p["b_upd"]))
    return (1.0 - z) * h + z * hc


def encoder_ref(G, x_seq, init_h, params):
    T = x_seq.shape[1]
    cur = x_seq
    outs = []
    for i, p in enumerate(params):
        H = p["W_upd"].shape[1]
        h = init_h[i]
        h_lst = []
        for t in range(T):
            h = _cell_ref(G, cur[:, t], h, p, H)
            h_lst.append(h)
        outs.append(h)
        cur = jnp.stack(h_lst, axis=1)
    return outs


# ----------------------------------------------------------------------------
if __name__ == "__main__":
    key = jax.random.PRNGKey(0)

    # Small shapes consistent with the module.
    B, T, N, C = 2, 8, 16, 4     # batch, seq len, num nodes, input features
    H = 32                       # hidden dim per layer
    K = 2                        # number of support adjacency matrices
    num_layers = 2
    dim_hidden = [H] * num_layers

    key, kg, kx = jax.random.split(key, 3)
    G = jax.random.normal(kg, (K, N, N), dtype=jnp.float32)
    x_seq = jax.random.normal(kx, (B, T, N, C), dtype=jnp.float32)
    init_h = [jnp.zeros((B, N, H), jnp.float32) for _ in range(num_layers)]

    params = make_encoder_params(key, C, dim_hidden, K)

    ref = encoder_ref(G, x_seq, init_h, params)

    # f32 path: tight numerical agreement with the reference.
    out = encoder_forward(G, x_seq, init_h, params,
                          compute_dtype=jnp.float32, Tb=4)
    out = [jax.block_until_ready(o) for o in out]
    for o, r in zip(out, ref):
        assert o.shape == r.shape
        err = float(jnp.max(jnp.abs(o - r)))
        assert err < 1e-3, err

    # bf16-operand path (f32 accumulation): ~2-3x MXU throughput; loose sanity
    # check only (the strict check above establishes algorithmic correctness).
    out_bf16 = encoder_forward(G, x_seq, init_h, params,
                               compute_dtype=jnp.bfloat16, Tb=4)
    out_bf16 = [jax.block_until_ready(o) for o in out_bf16]
    for o, r in zip(out_bf16, ref):
        assert o.shape == r.shape
        assert bool(jnp.all(jnp.isfinite(o)))
        err = float(jnp.max(jnp.abs(o.astype(jnp.float32) - r)))
        assert err < 3e-1, err

    print("KERNEL_OK")
</pallas_src>

<mosaic_0001>
module attributes {stable_mosaic.version = 11 : i64} {
  func.func @kernel(%arg0: i32, %arg1: memref<2x32x32xf32, #tpu.memory_space<vmem>>, %arg2: memref<4x2x16x4xf32, #tpu.memory_space<vmem>>, %arg3: memref<32x128xf32, #tpu.memory_space<vmem>>, %arg4: memref<4x512xf32, #tpu.memory_space<vmem>>, %arg5: memref<128x512xf32, #tpu.memory_space<vmem>>, %arg6: memref<4x256xf32, #tpu.memory_space<vmem>>, %arg7: memref<128x256xf32, #tpu.memory_space<vmem>>, %arg8: memref<1x256xf32, #tpu.memory_space<vmem>>, %arg9: memref<1x128xf32, #tpu.memory_space<vmem>>, %arg10: memref<4x2x16x128xf32, #tpu.memory_space<vmem>>, %arg11: memref<32x128xf32, #tpu.memory_space<vmem>>, %arg12: memref<4x32x512xf32, #tpu.memory_space<vmem>>, %arg13: memref<4x32x256xf32, #tpu.memory_space<vmem>>) attributes {dimension_semantics = [#tpu.dimension_semantics<arbitrary>], iteration_bounds = array<i64: 2>, scalar_prefetch = 0 : i64, scratch_operands = 3 : i64, tpu.core_type = #tpu.core_type<tc>, window_params = [{pipeline_mode = #tpu.pipeline_mode<synchronous>, transform_indices = @transform_0, window_bounds = array<i64: 2, 32, 32>}, {transform_indices = @transform_1, window_bounds = array<i64: 4, 2, 16, 4>}, {pipeline_mode = #tpu.pipeline_mode<synchronous>, transform_indices = @transform_2, window_bounds = array<i64: 32, 128>}, {pipeline_mode = #tpu.pipeline_mode<synchronous>, transform_indices = @transform_3, window_bounds = array<i64: 4, 512>}, {pipeline_mode = #tpu.pipeline_mode<synchronous>, transform_indices = @transform_4, window_bounds = array<i64: 128, 512>}, {pipeline_mode = #tpu.pipeline_mode<synchronous>, transform_indices = @transform_5, window_bounds = array<i64: 4, 256>}, {pipeline_mode = #tpu.pipeline_mode<synchronous>, transform_indices = @transform_6, window_bounds = array<i64: 128, 256>}, {pipeline_mode = #tpu.pipeline_mode<synchronous>, transform_indices = @transform_7, window_bounds = array<i64: 1, 256>}, {pipeline_mode = #tpu.pipeline_mode<synchronous>, transform_indices = @transform_8, window_bounds = array<i64: 1, 128>}, {transform_indices = @transform_9, window_bounds = array<i64: 4, 2, 16, 128>}]} {
    %c0_i32 = arith.constant 0 : i32
    %0 = arith.cmpi eq, %arg0, %c0_i32 : i32
    %1 = arith.extui %0 : i1 to i32
    %c0_i32_0 = arith.constant 0 : i32
    %2 = arith.cmpi ne, %1, %c0_i32_0 : i32
    scf.if %2 {
      %c0_103 = arith.constant 0 : index
      %c0_104 = arith.constant 0 : index
      %232 = vector.load %arg3[%c0_103, %c0_104] : memref<32x128xf32, #tpu.memory_space<vmem>>, vector<32x128xf32>
      %c0_105 = arith.constant 0 : index
      %c0_106 = arith.constant 0 : index
      %233 = vector.load %arg11[%c0_105, %c0_106] : memref<32x128xf32, #tpu.memory_space<vmem>>, vector<32x128xf32>
      tpu.vector_store %arg11[%c0_105, %c0_106], %232 {strides = array<i32>} : memref<32x128xf32, #tpu.memory_space<vmem>>, vector<32x128xf32>,
    } else {
    }
    %c0 = arith.constant 0 : index
    %c0_1 = arith.constant 0 : index
    %c0_2 = arith.constant 0 : index
    %c0_3 = arith.constant 0 : index
    %3 = vector.load %arg2[%c0, %c0_1, %c0_2, %c0_3] : memref<4x2x16x4xf32, #tpu.memory_space<vmem>>, vector<4x2x16x4xf32>
    %4 = vector.shape_cast %3 : vector<4x2x16x4xf32> to vector<128x4xf32>
    %c0_4 = arith.constant 0 : index
    %c0_5 = arith.constant 0 : index
    %5 = vector.load %arg4[%c0_4, %c0_5] : memref<4x512xf32, #tpu.memory_space<vmem>>, vector<4x512xf32>
    %cst = arith.constant dense<0.000000e+00> : vector<128x512xf32>
    %6 = tpu.matmul %4, %5, %cst {dimension_numbers = #tpu.dot_dimension_numbers<[1], [0], [0], [1], [0, 0, 1, 1], [], []>} : vector<128x4xf32>, vector<4x512xf32>, vector<128x512xf32> -> vector<128x512xf32>
    %7 = vector.shape_cast %6 : vector<128x512xf32> to vector<4x32x512xf32>
    %c0_6 = arith.constant 0 : index
    %c0_7 = arith.constant 0 : index
    %c0_8 = arith.constant 0 : index
    %8 = vector.load %arg12[%c0_6, %c0_7, %c0_8] : memref<4x32x512xf32, #tpu.memory_space<vmem>>, vector<4x32x512xf32>
    tpu.vector_store %arg12[%c0_6, %c0_7, %c0_8], %7 {strides = array<i32>} : memref<4x32x512xf32, #tpu.memory_space<vmem>>, vector<4x32x512xf32>,
    %c0_9 = arith.constant 0 : index
    %c0_10 = arith.constant 0 : index
    %9 = vector.load %arg6[%c0_9, %c0_10] : memref<4x256xf32, #tpu.memory_space<vmem>>, vector<4x256xf32>
    %cst_11 = arith.constant dense<0.000000e+00> : vector<128x256xf32>
    %10 = tpu.matmul %4, %9, %cst_11 {dimension_numbers = #tpu.dot_dimension_numbers<[1], [0], [0], [1], [0, 0, 1, 1], [], []>} : vector<128x4xf32>, vector<4x256xf32>, vector<128x256xf32> -> vector<128x256xf32>
    %11 = vector.shape_cast %10 : vector<128x256xf32> to vector<4x32x256xf32>
    %c0_12 = arith.constant 0 : index
    %c0_13 = arith.constant 0 : index
    %c0_14 = arith.constant 0 : index
    %12 = vector.load %arg13[%c0_12, %c0_13, %c0_14] : memref<4x32x256xf32, #tpu.memory_space<vmem>>, vector<4x32x256xf32>
    tpu.vector_store %arg13[%c0_12, %c0_13, %c0_14], %11 {strides = array<i32>} : memref<4x32x256xf32, #tpu.memory_space<vmem>>, vector<4x32x256xf32>,
    %c0_15 = arith.constant 0 : index
    %c0_16 = arith.constant 0 : index
    %c0_17 = arith.constant 0 : index
    %13 = vector.load %arg1[%c0_15, %c0_16, %c0_17] : memref<2x32x32xf32, #tpu.memory_space<vmem>>, vector<2x32x32xf32>
    %c0_18 = arith.constant 0 : index
    %c0_19 = arith.constant 0 : index
    %14 = vector.load %arg5[%c0_18, %c0_19] : memref<128x512xf32, #tpu.memory_space<vmem>>, vector<128x512xf32>
    %c0_20 = arith.constant 0 : index
    %c0_21 = arith.constant 0 : index
    %15 = vector.load %arg7[%c0_20, %c0_21] : memref<128x256xf32, #tpu.memory_space<vmem>>, vector<128x256xf32>
    %c0_22 = arith.constant 0 : index
    %c0_23 = arith.constant 0 : index
    %16 = vector.load %arg8[%c0_22, %c0_23] : memref<1x256xf32, #tpu.memory_space<vmem>>, vector<1x256xf32>
    %c0_24 = arith.constant 0 : index
    %c0_25 = arith.constant 0 : index
    %17 = vector.load %arg9[%c0_24, %c0_25] : memref<1x128xf32, #tpu.memory_space<vmem>>, vector<1x128xf32>
    %c0_26 = arith.constant 0 : index
    %c0_27 = arith.constant 0 : index
    %18 = vector.load %arg11[%c0_26, %c0_27] : memref<32x128xf32, #tpu.memory_space<vmem>>, vector<32x128xf32>
    %c0_28 = arith.constant 0 : index
    %c0_29 = arith.constant 0 : index
    %c0_30 = arith.constant 0 : index
    %19 = vector.load %arg12[%c0_28, %c0_29, %c0_30] : memref<4x32x512xf32, #tpu.memory_space<vmem>>, vector<1x32x512xf32>
    %20 = vector.shape_cast %19 : vector<1x32x512xf32> to vector<32x512xf32>
    %cst_31 = arith.constant dense<0.000000e+00> : vector<32x512xf32>
    %21 = tpu.matmul %18, %14, %cst_31 {dimension_numbers = #tpu.dot_dimension_numbers<[1], [0], [0], [1], [0, 0, 1, 1], [], []>} : vector<32x128xf32>, vector<128x512xf32>, vector<32x512xf32> -> vector<32x512xf32>
    %22 = arith.addf %20, %21 : vector<32x512xf32>
    %23 = vector.extract_strided_slice %13 {offsets = [0, 0, 0], sizes = [1, 32, 32], strides = [1, 1, 1]} : vector<2x32x32xf32> to vector<1x32x32xf32>
    %24 = vector.shape_cast %23 : vector<1x32x32xf32> to vector<32x32xf32>
    %25 = vector.extract_strided_slice %22 {offsets = [0, 0], sizes = [32, 256], strides = [1, 1]} : vector<32x512xf32> to vector<32x256xf32>
    %cst_32 = arith.constant dense<0.000000e+00> : vector<32x256xf32>
    %26 = tpu.matmul %24, %25, %cst_32 {dimension_numbers = #tpu.dot_dimension_numbers<[1], [0], [0], [1], [0, 0, 1, 1], [], []>} : vector<32x32xf32>, vector<32x256xf32>, vector<32x256xf32> -> vector<32x256xf32>
    %27 = vector.extract_strided_slice %13 {offsets = [1, 0, 0], sizes = [1, 32, 32], strides = [1, 1, 1]} : vector<2x32x32xf32> to vector<1x32x32xf32>
    %28 = vector.shape_cast %27 : vector<1x32x32xf32> to vector<32x32xf32>
    %29 = vector.extract_strided_slice %22 {offsets = [0, 256], sizes = [32, 256], strides = [1, 1]} : vector<32x512xf32> to vector<32x256xf32>
    %cst_33 = arith.constant dense<0.000000e+00> : vector<32x256xf32>
    %30 = tpu.matmul %28, %29, %cst_33 {dimension_numbers = #tpu.dot_dimension_numbers<[1], [0], [0], [1], [0, 0, 1, 1], [], []>} : vector<32x32xf32>, vector<32x256xf32>, vector<32x256xf32> -> vector<32x256xf32>
    %31 = arith.addf %26, %30 : vector<32x256xf32>
    %32 = vector.broadcast %16 : vector<1x256xf32> to vector<32x256xf32>
    %33 = arith.addf %31, %32 : vector<32x256xf32>
    %34 = vector.extract_strided_slice %33 {offsets = [0, 0], sizes = [32, 128], strides = [1, 1]} : vector<32x256xf32> to vector<32x128xf32>
    %35 = arith.negf %34 : vector<32x128xf32>
    %36 = math.exp %35 : vector<32x128xf32>
    %cst_34 = arith.constant 1.000000e+00 : f32
    %37 = vector.broadcast %cst_34 : f32 to vector<32x128xf32>
    %38 = arith.addf %37, %36 : vector<32x128xf32>
    %39 = arith.divf %37, %38 : vector<32x128xf32>
    %40 = vector.extract_strided_slice %33 {offsets = [0, 128], sizes = [32, 128], strides = [1, 1]} : vector<32x256xf32> to vector<32x128xf32>
    %41 = arith.negf %40 : vector<32x128xf32>
    %42 = math.exp %41 : vector<32x128xf32>
    %cst_35 = arith.constant 1.000000e+00 : f32
    %43 = vector.broadcast %cst_35 : f32 to vector<32x128xf32>
    %44 = arith.addf %43, %42 : vector<32x128xf32>
    %45 = arith.divf %43, %44 : vector<32x128xf32>
    %c0_36 = arith.constant 0 : index
    %c0_37 = arith.constant 0 : index
    %c0_38 = arith.constant 0 : index
    %46 = vector.load %arg13[%c0_36, %c0_37, %c0_38] : memref<4x32x256xf32, #tpu.memory_space<vmem>>, vector<1x32x256xf32>
    %47 = vector.shape_cast %46 : vector<1x32x256xf32> to vector<32x256xf32>
    %48 = arith.mulf %45, %18 : vector<32x128xf32>
    %cst_39 = arith.constant dense<0.000000e+00> : vector<32x256xf32>
    %49 = tpu.matmul %48, %15, %cst_39 {dimension_numbers = #tpu.dot_dimension_numbers<[1], [0], [0], [1], [0, 0, 1, 1], [], []>} : vector<32x128xf32>, vector<128x256xf32>, vector<32x256xf32> -> vector<32x256xf32>
    %50 = arith.addf %47, %49 : vector<32x256xf32>
    %51 = vector.extract_strided_slice %13 {offsets = [0, 0, 0], sizes = [1, 32, 32], strides = [1, 1, 1]} : vector<2x32x32xf32> to vector<1x32x32xf32>
    %52 = vector.shape_cast %51 : vector<1x32x32xf32> to vector<32x32xf32>
    %53 = vector.extract_strided_slice %50 {offsets = [0, 0], sizes = [32, 128], strides = [1, 1]} : vector<32x256xf32> to vector<32x128xf32>
    %cst_40 = arith.constant dense<0.000000e+00> : vector<32x128xf32>
    %54 = tpu.matmul %52, %53, %cst_40 {dimension_numbers = #tpu.dot_dimension_numbers<[1], [0], [0], [1], [0, 0, 1, 1], [], []>} : vector<32x32xf32>, vector<32x128xf32>, vector<32x128xf32> -> vector<32x128xf32>
    %55 = vector.extract_strided_slice %13 {offsets = [1, 0, 0], sizes = [1, 32, 32], strides = [1, 1, 1]} : vector<2x32x32xf32> to vector<1x32x32xf32>
    %56 = vector.shape_cast %55 : vector<1x32x32xf32> to vector<32x32xf32>
    %57 = vector.extract_strided_slice %50 {offsets = [0, 128], sizes = [32, 128], strides = [1, 1]} : vector<32x256xf32> to vector<32x128xf32>
    %cst_41 = arith.constant dense<0.000000e+00> : vector<32x128xf32>
    %58 = tpu.matmul %56, %57, %cst_41 {dimension_numbers = #tpu.dot_dimension_numbers<[1], [0], [0], [1], [0, 0, 1, 1], [], []>} : vector<32x32xf32>, vector<32x128xf32>, vector<32x128xf32> -> vector<32x128xf32>
    %59 = arith.addf %54, %58 : vector<32x128xf32>
    %60 = vector.broadcast %17 : vector<1x128xf32> to vector<32x128xf32>
    %61 = arith.addf %59, %60 : vector<32x128xf32>
    %62 = math.tanh %61 : vector<32x128xf32>
    %cst_42 = arith.constant 1.000000e+00 : f32
    %63 = vector.broadcast %cst_42 : f32 to vector<32x128xf32>
    %64 = arith.subf %63, %39 : vector<32x128xf32>
    %65 = arith.mulf %64, %18 : vector<32x128xf32>
    %66 = arith.mulf %39, %62 : vector<32x128xf32>
    %67 = arith.addf %65, %66 : vector<32x128xf32>
    %68 = vector.shape_cast %67 : vector<32x128xf32> to vector<2x16x128xf32>
    %c0_43 = arith.constant 0 : index
    %c0_44 = arith.constant 0 : index
    %c0_45 = arith.constant 0 : index
    %c0_46 = arith.constant 0 : index
    %69 = vector.load %arg10[%c0_43, %c0_44, %c0_45, %c0_46] : memref<4x2x16x128xf32, #tpu.memory_space<vmem>>, vector<1x2x16x128xf32>
    %70 = vector.shape_cast %69 : vector<1x2x16x128xf32> to vector<2x16x128xf32>
    %71 = vector.shape_cast %68 : vector<2x16x128xf32> to vector<1x2x16x128xf32>
    tpu.vector_store %arg10[%c0_43, %c0_44, %c0_45, %c0_46], %71 {strides = array<i32>} : memref<4x2x16x128xf32, #tpu.memory_space<vmem>>, vector<1x2x16x128xf32>,
    %c1 = arith.constant 1 : index
    %c0_47 = arith.constant 0 : index
    %c0_48 = arith.constant 0 : index
    %72 = vector.load %arg12[%c1, %c0_47, %c0_48] : memref<4x32x512xf32, #tpu.memory_space<vmem>>, vector<1x32x512xf32>
    %73 = vector.shape_cast %72 : vector<1x32x512xf32> to vector<32x512xf32>
    %cst_49 = arith.constant dense<0.000000e+00> : vector<32x512xf32>
    %74 = tpu.matmul %67, %14, %cst_49 {dimension_numbers = #tpu.dot_dimension_numbers<[1], [0], [0], [1], [0, 0, 1, 1], [], []>} : vector<32x128xf32>, vector<128x512xf32>, vector<32x512xf32> -> vector<32x512xf32>
    %75 = arith.addf %73, %74 : vector<32x512xf32>
    %76 = vector.extract_strided_slice %13 {offsets = [0, 0, 0], sizes = [1, 32, 32], strides = [1, 1, 1]} : vector<2x32x32xf32> to vector<1x32x32xf32>
    %77 = vector.shape_cast %76 : vector<1x32x32xf32> to vector<32x32xf32>
    %78 = vector.extract_strided_slice %75 {offsets = [0, 0], sizes = [32, 256], strides = [1, 1]} : vector<32x512xf32> to vector<32x256xf32>
    %cst_50 = arith.constant dense<0.000000e+00> : vector<32x256xf32>
    %79 = tpu.matmul %77, %78, %cst_50 {dimension_numbers = #tpu.dot_dimension_numbers<[1], [0], [0], [1], [0, 0, 1, 1], [], []>} : vector<32x32xf32>, vector<32x256xf32>, vector<32x256xf32> -> vector<32x256xf32>
    %80 = vector.extract_strided_slice %13 {offsets = [1, 0, 0], sizes = [1, 32, 32], strides = [1, 1, 1]} : vector<2x32x32xf32> to vector<1x32x32xf32>
    %81 = vector.shape_cast %80 : vector<1x32x32xf32> to vector<32x32xf32>
    %82 = vector.extract_strided_slice %75 {offsets = [0, 256], sizes = [32, 256], strides = [1, 1]} : vector<32x512xf32> to vector<32x256xf32>
    %cst_51 = arith.constant dense<0.000000e+00> : vector<32x256xf32>
    %83 = tpu.matmul %81, %82, %cst_51 {dimension_numbers = #tpu.dot_dimension_numbers<[1], [0], [0], [1], [0, 0, 1, 1], [], []>} : vector<32x32xf32>, vector<32x256xf32>, vector<32x256xf32> -> vector<32x256xf32>
    %84 = arith.addf %79, %83 : vector<32x256xf32>
    %85 = vector.broadcast %16 : vector<1x256xf32> to vector<32x256xf32>
    %86 = arith.addf %84, %85 : vector<32x256xf32>
    %87 = vector.extract_strided_slice %86 {offsets = [0, 0], sizes = [32, 128], strides = [1, 1]} : vector<32x256xf32> to vector<32x128xf32>
    %88 = arith.negf %87 : vector<32x128xf32>
    %89 = math.exp %88 : vector<32x128xf32>
    %cst_52 = arith.constant 1.000000e+00 : f32
    %90 = vector.broadcast %cst_52 : f32 to vector<32x128xf32>
    %91 = arith.addf %90, %89 : vector<32x128xf32>
    %92 = arith.divf %90, %91 : vector<32x128xf32>
    %93 = vector.extract_strided_slice %86 {offsets = [0, 128], sizes = [32, 128], strides = [1, 1]} : vector<32x256xf32> to vector<32x128xf32>
    %94 = arith.negf %93 : vector<32x128xf32>
    %95 = math.exp %94 : vector<32x128xf32>
    %cst_53 = arith.constant 1.000000e+00 : f32
    %96 = vector.broadcast %cst_53 : f32 to vector<32x128xf32>
    %97 = arith.addf %96, %95 : vector<32x128xf32>
    %98 = arith.divf %96, %97 : vector<32x128xf32>
    %c1_54 = arith.constant 1 : index
    %c0_55 = arith.constant 0 : index
    %c0_56 = arith.constant 0 : index
    %99 = vector.load %arg13[%c1_54, %c0_55, %c0_56] : memref<4x32x256xf32, #tpu.memory_space<vmem>>, vector<1x32x256xf32>
    %100 = vector.shape_cast %99 : vector<1x32x256xf32> to vector<32x256xf32>
    %101 = arith.mulf %98, %67 : vector<32x128xf32>
    %cst_57 = arith.constant dense<0.000000e+00> : vector<32x256xf32>
    %102 = tpu.matmul %101, %15, %cst_57 {dimension_numbers = #tpu.dot_dimension_numbers<[1], [0], [0], [1], [0, 0, 1, 1], [], []>} : vector<32x128xf32>, vector<128x256xf32>, vector<32x256xf32> -> vector<32x256xf32>
    %103 = arith.addf %100, %102 : vector<32x256xf32>
    %104 = vector.extract_strided_slice %13 {offsets = [0, 0, 0], sizes = [1, 32, 32], strides = [1, 1, 1]} : vector<2x32x32xf32> to vector<1x32x32xf32>
    %105 = vector.shape_cast %104 : vector<1x32x32xf32> to vector<32x32xf32>
    %106 = vector.extract_strided_slice %103 {offsets = [0, 0], sizes = [32, 128], strides = [1, 1]} : vector<32x256xf32> to vector<32x128xf32>
    %cst_58 = arith.constant dense<0.000000e+00> : vector<32x128xf32>
    %107 = tpu.matmul %105, %106, %cst_58 {dimension_numbers = #tpu.dot_dimension_numbers<[1], [0], [0], [1], [0, 0, 1, 1], [], []>} : vector<32x32xf32>, vector<32x128xf32>, vector<32x128xf32> -> vector<32x128xf32>
    %108 = vector.extract_strided_slice %13 {offsets = [1, 0, 0], sizes = [1, 32, 32], strides = [1, 1, 1]} : vector<2x32x32xf32> to vector<1x32x32xf32>
    %109 = vector.shape_cast %108 : vector<1x32x32xf32> to vector<32x32xf32>
    %110 = vector.extract_strided_slice %103 {offsets = [0, 128], sizes = [32, 128], strides = [1, 1]} : vector<32x256xf32> to vector<32x128xf32>
    %cst_59 = arith.constant dense<0.000000e+00> : vector<32x128xf32>
    %111 = tpu.matmul %109, %110, %cst_59 {dimension_numbers = #tpu.dot_dimension_numbers<[1], [0], [0], [1], [0, 0, 1, 1], [], []>} : vector<32x32xf32>, vector<32x128xf32>, vector<32x128xf32> -> vector<32x128xf32>
    %112 = arith.addf %107, %111 : vector<32x128xf32>
    %113 = vector.broadcast %17 : vector<1x128xf32> to vector<32x128xf32>
    %114 = arith.addf %112, %113 : vector<32x128xf32>
    %115 = math.tanh %114 : vector<32x128xf32>
    %cst_60 = arith.constant 1.000000e+00 : f32
    %116 = vector.broadcast %cst_60 : f32 to vector<32x128xf32>
    %117 = arith.subf %116, %92 : vector<32x128xf32>
    %118 = arith.mulf %117, %67 : vector<32x128xf32>
    %119 = arith.mulf %92, %115 : vector<32x128xf32>
    %120 = arith.addf %118, %119 : vector<32x128xf32>
    %121 = vector.shape_cast %120 : vector<32x128xf32> to vector<2x16x128xf32>
    %c1_61 = arith.constant 1 : index
    %c0_62 = arith.constant 0 : index
    %c0_63 = arith.constant 0 : index
    %c0_64 = arith.constant 0 : index
    %122 = vector.load %arg10[%c1_61, %c0_62, %c0_63, %c0_64] : memref<4x2x16x128xf32, #tpu.memory_space<vmem>>, vector<1x2x16x128xf32>
    %123 = vector.shape_cast %122 : vector<1x2x16x128xf32> to vector<2x16x128xf32>
    %124 = vector.shape_cast %121 : vector<2x16x128xf32> to vector<1x2x16x128xf32>
    tpu.vector_store %arg10[%c1_61, %c0_62, %c0_63, %c0_64], %124 {strides = array<i32>} : memref<4x2x16x128xf32, #tpu.memory_space<vmem>>, vector<1x2x16x128xf32>,
    %c2 = arith.constant 2 : index
    %c0_65 = arith.constant 0 : index
    %c0_66 = arith.constant 0 : index
    %125 = vector.load %arg12[%c2, %c0_65, %c0_66] : memref<4x32x512xf32, #tpu.memory_space<vmem>>, vector<1x32x512xf32>
    %126 = vector.shape_cast %125 : vector<1x32x512xf32> to vector<32x512xf32>
    %cst_67 = arith.constant dense<0.000000e+00> : vector<32x512xf32>
    %127 = tpu.matmul %120, %14, %cst_67 {dimension_numbers = #tpu.dot_dimension_numbers<[1], [0], [0], [1], [0, 0, 1, 1], [], []>} : vector<32x128xf32>, vector<128x512xf32>, vector<32x512xf32> -> vector<32x512xf32>
    %128 = arith.addf %126, %127 : vector<32x512xf32>
    %129 = vector.extract_strided_slice %13 {offsets = [0, 0, 0], sizes = [1, 32, 32], strides = [1, 1, 1]} : vector<2x32x32xf32> to vector<1x32x32xf32>
    %130 = vector.shape_cast %129 : vector<1x32x32xf32> to vector<32x32xf32>
    %131 = vector.extract_strided_slice %128 {offsets = [0, 0], sizes = [32, 256], strides = [1, 1]} : vector<32x512xf32> to vector<32x256xf32>
    %cst_68 = arith.constant dense<0.000000e+00> : vector<32x256xf32>
    %132 = tpu.matmul %130, %131, %cst_68 {dimension_numbers = #tpu.dot_dimension_numbers<[1], [0], [0], [1], [0, 0, 1, 1], [], []>} : vector<32x32xf32>, vector<32x256xf32>, vector<32x256xf32> -> vector<32x256xf32>
    %133 = vector.extract_strided_slice %13 {offsets = [1, 0, 0], sizes = [1, 32, 32], strides = [1, 1, 1]} : vector<2x32x32xf32> to vector<1x32x32xf32>
    %134 = vector.shape_cast %133 : vector<1x32x32xf32> to vector<32x32xf32>
    %135 = vector.extract_strided_slice %128 {offsets = [0, 256], sizes = [32, 256], strides = [1, 1]} : vector<32x512xf32> to vector<32x256xf32>
    %cst_69 = arith.constant dense<0.000000e+00> : vector<32x256xf32>
    %136 = tpu.matmul %134, %135, %cst_69 {dimension_numbers = #tpu.dot_dimension_numbers<[1], [0], [0], [1], [0, 0, 1, 1], [], []>} : vector<32x32xf32>, vector<32x256xf32>, vector<32x256xf32> -> vector<32x256xf32>
    %137 = arith.addf %132, %136 : vector<32x256xf32>
    %138 = vector.broadcast %16 : vector<1x256xf32> to vector<32x256xf32>
    %139 = arith.addf %137, %138 : vector<32x256xf32>
    %140 = vector.extract_strided_slice %139 {offsets = [0, 0], sizes = [32, 128], strides = [1, 1]} : vector<32x256xf32> to vector<32x128xf32>
    %141 = arith.negf %140 : vector<32x128xf32>
    %142 = math.exp %141 : vector<32x128xf32>
    %cst_70 = arith.constant 1.000000e+00 : f32
    %143 = vector.broadcast %cst_70 : f32 to vector<32x128xf32>
    %144 = arith.addf %143, %142 : vector<32x128xf32>
    %145 = arith.divf %143, %144 : vector<32x128xf32>
    %146 = vector.extract_strided_slice %139 {offsets = [0, 128], sizes = [32, 128], strides = [1, 1]} : vector<32x256xf32> to vector<32x128xf32>
    %147 = arith.negf %146 : vector<32x128xf32>
    %148 = math.exp %147 : vector<32x128xf32>
    %cst_71 = arith.constant 1.000000e+00 : f32
    %149 = vector.broadcast %cst_71 : f32 to vector<32x128xf32>
    %150 = arith.addf %149, %148 : vector<32x128xf32>
    %151 = arith.divf %149, %150 : vector<32x128xf32>
    %c2_72 = arith.constant 2 : index
    %c0_73 = arith.constant 0 : index
    %c0_74 = arith.constant 0 : index
    %152 = vector.load %arg13[%c2_72, %c0_73, %c0_74] : memref<4x32x256xf32, #tpu.memory_space<vmem>>, vector<1x32x256xf32>
    %153 = vector.shape_cast %152 : vector<1x32x256xf32> to vector<32x256xf32>
    %154 = arith.mulf %151, %120 : vector<32x128xf32>
    %cst_75 = arith.constant dense<0.000000e+00> : vector<32x256xf32>
    %155 = tpu.matmul %154, %15, %cst_75 {dimension_numbers = #tpu.dot_dimension_numbers<[1], [0], [0], [1], [0, 0, 1, 1], [], []>} : vector<32x128xf32>, vector<128x256xf32>, vector<32x256xf32> -> vector<32x256xf32>
    %156 = arith.addf %153, %155 : vector<32x256xf32>
    %157 = vector.extract_strided_slice %13 {offsets = [0, 0, 0], sizes = [1, 32, 32], strides = [1, 1, 1]} : vector<2x32x32xf32> to vector<1x32x32xf32>
    %158 = vector.shape_cast %157 : vector<1x32x32xf32> to vector<32x32xf32>
    %159 = vector.extract_strided_slice %156 {offsets = [0, 0], sizes = [32, 128], strides = [1, 1]} : vector<32x256xf32> to vector<32x128xf32>
    %cst_76 = arith.constant dense<0.000000e+00> : vector<32x128xf32>
    %160 = tpu.matmul %158, %159, %cst_76 {dimension_numbers = #tpu.dot_dimension_numbers<[1], [0], [0], [1], [0, 0, 1, 1], [], []>} : vector<32x32xf32>, vector<32x128xf32>, vector<32x128xf32> -> vector<32x128xf32>
    %161 = vector.extract_strided_slice %13 {offsets = [1, 0, 0], sizes = [1, 32, 32], strides = [1, 1, 1]} : vector<2x32x32xf32> to vector<1x32x32xf32>
    %162 = vector.shape_cast %161 : vector<1x32x32xf32> to vector<32x32xf32>
    %163 = vector.extract_strided_slice %156 {offsets = [0, 128], sizes = [32, 128], strides = [1, 1]} : vector<32x256xf32> to vector<32x128xf32>
    %cst_77 = arith.constant dense<0.000000e+00> : vector<32x128xf32>
    %164 = tpu.matmul %162, %163, %cst_77 {dimension_numbers = #tpu.dot_dimension_numbers<[1], [0], [0], [1], [0, 0, 1, 1], [], []>} : vector<32x32xf32>, vector<32x128xf32>, vector<32x128xf32> -> vector<32x128xf32>
    %165 = arith.addf %160, %164 : vector<32x128xf32>
    %166 = vector.broadcast %17 : vector<1x128xf32> to vector<32x128xf32>
    %167 = arith.addf %165, %166 : vector<32x128xf32>
    %168 = math.tanh %167 : vector<32x128xf32>
    %cst_78 = arith.constant 1.000000e+00 : f32
    %169 = vector.broadcast %cst_78 : f32 to vector<32x128xf32>
    %170 = arith.subf %169, %145 : vector<32x128xf32>
    %171 = arith.mulf %170, %120 : vector<32x128xf32>
    %172 = arith.mulf %145, %168 : vector<32x128xf32>
    %173 = arith.addf %171, %172 : vector<32x128xf32>
    %174 = vector.shape_cast %173 : vector<32x128xf32> to vector<2x16x128xf32>
    %c2_79 = arith.constant 2 : index
    %c0_80 = arith.constant 0 : index
    %c0_81 = arith.constant 0 : index
    %c0_82 = arith.constant 0 : index
    %175 = vector.load %arg10[%c2_79, %c0_80, %c0_81, %c0_82] : memref<4x2x16x128xf32, #tpu.memory_space<vmem>>, vector<1x2x16x128xf32>
    %176 = vector.shape_cast %175 : vector<1x2x16x128xf32> to vector<2x16x128xf32>
    %177 = vector.shape_cast %174 : vector<2x16x128xf32> to vector<1x2x16x128xf32>
    tpu.vector_store %arg10[%c2_79, %c0_80, %c0_81, %c0_82], %177 {strides = array<i32>} : memref<4x2x16x128xf32, #tpu.memory_space<vmem>>, vector<1x2x16x128xf32>,
    %c3 = arith.constant 3 : index
    %c0_83 = arith.constant 0 : index
    %c0_84 = arith.constant 0 : index
    %178 = vector.load %arg12[%c3, %c0_83, %c0_84] : memref<4x32x512xf32, #tpu.memory_space<vmem>>, vector<1x32x512xf32>
    %179 = vector.shape_cast %178 : vector<1x32x512xf32> to vector<32x512xf32>
    %cst_85 = arith.constant dense<0.000000e+00> : vector<32x512xf32>
    %180 = tpu.matmul %173, %14, %cst_85 {dimension_numbers = #tpu.dot_dimension_numbers<[1], [0], [0], [1], [0, 0, 1, 1], [], []>} : vector<32x128xf32>, vector<128x512xf32>, vector<32x512xf32> -> vector<32x512xf32>
    %181 = arith.addf %179, %180 : vector<32x512xf32>
    %182 = vector.extract_strided_slice %13 {offsets = [0, 0, 0], sizes = [1, 32, 32], strides = [1, 1, 1]} : vector<2x32x32xf32> to vector<1x32x32xf32>
    %183 = vector.shape_cast %182 : vector<1x32x32xf32> to vector<32x32xf32>
    %184 = vector.extract_strided_slice %181 {offsets = [0, 0], sizes = [32, 256], strides = [1, 1]} : vector<32x512xf32> to vector<32x256xf32>
    %cst_86 = arith.constant dense<0.000000e+00> : vector<32x256xf32>
    %185 = tpu.matmul %183, %184, %cst_86 {dimension_numbers = #tpu.dot_dimension_numbers<[1], [0], [0], [1], [0, 0, 1, 1], [], []>} : vector<32x32xf32>, vector<32x256xf32>, vector<32x256xf32> -> vector<32x256xf32>
    %186 = vector.extract_strided_slice %13 {offsets = [1, 0, 0], sizes = [1, 32, 32], strides = [1, 1, 1]} : vector<2x32x32xf32> to vector<1x32x32xf32>
    %187 = vector.shape_cast %186 : vector<1x32x32xf32> to vector<32x32xf32>
    %188 = vector.extract_strided_slice %181 {offsets = [0, 256], sizes = [32, 256], strides = [1, 1]} : vector<32x512xf32> to vector<32x256xf32>
    %cst_87 = arith.constant dense<0.000000e+00> : vector<32x256xf32>
    %189 = tpu.matmul %187, %188, %cst_87 {dimension_numbers = #tpu.dot_dimension_numbers<[1], [0], [0], [1], [0, 0, 1, 1], [], []>} : vector<32x32xf32>, vector<32x256xf32>, vector<32x256xf32> -> vector<32x256xf32>
    %190 = arith.addf %185, %189 : vector<32x256xf32>
    %191 = vector.broadcast %16 : vector<1x256xf32> to vector<32x256xf32>
    %192 = arith.addf %190, %191 : vector<32x256xf32>
    %193 = vector.extract_strided_slice %192 {offsets = [0, 0], sizes = [32, 128], strides = [1, 1]} : vector<32x256xf32> to vector<32x128xf32>
    %194 = arith.negf %193 : vector<32x128xf32>
    %195 = math.exp %194 : vector<32x128xf32>
    %cst_88 = arith.constant 1.000000e+00 : f32
    %196 = vector.broadcast %cst_88 : f32 to vector<32x128xf32>
    %197 = arith.addf %196, %195 : vector<32x128xf32>
    %198 = arith.divf %196, %197 : vector<32x128xf32>
    %199 = vector.extract_strided_slice %192 {offsets = [0, 128], sizes = [32, 128], strides = [1, 1]} : vector<32x256xf32> to vector<32x128xf32>
    %200 = arith.negf %199 : vector<32x128xf32>
    %201 = math.exp %200 : vector<32x128xf32>
    %cst_89 = arith.constant 1.000000e+00 : f32
    %202 = vector.broadcast %cst_89 : f32 to vector<32x128xf32>
    %203 = arith.addf %202, %201 : vector<32x128xf32>
    %204 = arith.divf %202, %203 : vector<32x128xf32>
    %c3_90 = arith.constant 3 : index
    %c0_91 = arith.constant 0 : index
    %c0_92 = arith.constant 0 : index
    %205 = vector.load %arg13[%c3_90, %c0_91, %c0_92] : memref<4x32x256xf32, #tpu.memory_space<vmem>>, vector<1x32x256xf32>
    %206 = vector.shape_cast %205 : vector<1x32x256xf32> to vector<32x256xf32>
    %207 = arith.mulf %204, %173 : vector<32x128xf32>
    %cst_93 = arith.constant dense<0.000000e+00> : vector<32x256xf32>
    %208 = tpu.matmul %207, %15, %cst_93 {dimension_numbers = #tpu.dot_dimension_numbers<[1], [0], [0], [1], [0, 0, 1, 1], [], []>} : vector<32x128xf32>, vector<128x256xf32>, vector<32x256xf32> -> vector<32x256xf32>
    %209 = arith.addf %206, %208 : vector<32x256xf32>
    %210 = vector.extract_strided_slice %13 {offsets = [0, 0, 0], sizes = [1, 32, 32], strides = [1, 1, 1]} : vector<2x32x32xf32> to vector<1x32x32xf32>
    %211 = vector.shape_cast %210 : vector<1x32x32xf32> to vector<32x32xf32>
    %212 = vector.extract_strided_slice %209 {offsets = [0, 0], sizes = [32, 128], strides = [1, 1]} : vector<32x256xf32> to vector<32x128xf32>
    %cst_94 = arith.constant dense<0.000000e+00> : vector<32x128xf32>
    %213 = tpu.matmul %211, %212, %cst_94 {dimension_numbers = #tpu.dot_dimension_numbers<[1], [0], [0], [1], [0, 0, 1, 1], [], []>} : vector<32x32xf32>, vector<32x128xf32>, vector<32x128xf32> -> vector<32x128xf32>
    %214 = vector.extract_strided_slice %13 {offsets = [1, 0, 0], sizes = [1, 32, 32], strides = [1, 1, 1]} : vector<2x32x32xf32> to vector<1x32x32xf32>
    %215 = vector.shape_cast %214 : vector<1x32x32xf32> to vector<32x32xf32>
    %216 = vector.extract_strided_slice %209 {offsets = [0, 128], sizes = [32, 128], strides = [1, 1]} : vector<32x256xf32> to vector<32x128xf32>
    %cst_95 = arith.constant dense<0.000000e+00> : vector<32x128xf32>
    %217 = tpu.matmul %215, %216, %cst_95 {dimension_numbers = #tpu.dot_dimension_numbers<[1], [0], [0], [1], [0, 0, 1, 1], [], []>} : vector<32x32xf32>, vector<32x128xf32>, vector<32x128xf32> -> vector<32x128xf32>
    %218 = arith.addf %213, %217 : vector<32x128xf32>
    %219 = vector.broadcast %17 : vector<1x128xf32> to vector<32x128xf32>
    %220 = arith.addf %218, %219 : vector<32x128xf32>
    %221 = math.tanh %220 : vector<32x128xf32>
    %cst_96 = arith.constant 1.000000e+00 : f32
    %222 = vector.broadcast %cst_96 : f32 to vector<32x128xf32>
    %223 = arith.subf %222, %198 : vector<32x128xf32>
    %224 = arith.mulf %223, %173 : vector<32x128xf32>
    %225 = arith.mulf %198, %221 : vector<32x128xf32>
    %226 = arith.addf %224, %225 : vector<32x128xf32>
    %227 = vector.shape_cast %226 : vector<32x128xf32> to vector<2x16x128xf32>
    %c3_97 = arith.constant 3 : index
    %c0_98 = arith.constant 0 : index
    %c0_99 = arith.constant 0 : index
    %c0_100 = arith.constant 0 : index
    %228 = vector.load %arg10[%c3_97, %c0_98, %c0_99, %c0_100] : memref<4x2x16x128xf32, #tpu.memory_space<vmem>>, vector<1x2x16x128xf32>
    %229 = vector.shape_cast %228 : vector<1x2x16x128xf32> to vector<2x16x128xf32>
    %230 = vector.shape_cast %227 : vector<2x16x128xf32> to vector<1x2x16x128xf32>
    tpu.vector_store %arg10[%c3_97, %c0_98, %c0_99, %c0_100], %230 {strides = array<i32>} : memref<4x2x16x128xf32, #tpu.memory_space<vmem>>, vector<1x2x16x128xf32>,
    %c0_101 = arith.constant 0 : index
    %c0_102 = arith.constant 0 : index
    %231 = vector.load %arg11[%c0_101, %c0_102] : memref<32x128xf32, #tpu.memory_space<vmem>>, vector<32x128xf32>
    tpu.vector_store %arg11[%c0_101, %c0_102], %226 {strides = array<i32>} : memref<32x128xf32, #tpu.memory_space<vmem>>, vector<32x128xf32>,
    return
  }
  func.func @transform_0(%arg0: i32) -> (i32, i32, i32) {
    %c0_i32 = arith.constant 0 : i32
    %c0_i32_0 = arith.constant 0 : i32
    %c0_i32_1 = arith.constant 0 : i32
    %c0_i32_2 = arith.constant 0 : i32
    return %c0_i32, %c0_i32_0, %c0_i32_1 : i32, i32, i32
  }
  func.func @transform_1(%arg0: i32) -> (i32, i32, i32, i32) {
    %c0_i32 = arith.constant 0 : i32
    %c0_i32_0 = arith.constant 0 : i32
    %c0_i32_1 = arith.constant 0 : i32
    %c0_i32_2 = arith.constant 0 : i32
    return %arg0, %c0_i32, %c0_i32_0, %c0_i32_1 : i32, i32, i32, i32
  }
  func.func @transform_2(%arg0: i32) -> (i32, i32) {
    %c0_i32 = arith.constant 0 : i32
    %c0_i32_0 = arith.constant 0 : i32
    %c0_i32_1 = arith.constant 0 : i32
    return %c0_i32, %c0_i32_0 : i32, i32
  }
  func.func @transform_3(%arg0: i32) -> (i32, i32) {
    %c0_i32 = arith.constant 0 : i32
    %c0_i32_0 = arith.constant 0 : i32
    %c0_i32_1 = arith.constant 0 : i32
    return %c0_i32, %c0_i32_0 : i32, i32
  }
  func.func @transform_4(%arg0: i32) -> (i32, i32) {
    %c0_i32 = arith.constant 0 : i32
    %c0_i32_0 = arith.constant 0 : i32
    %c0_i32_1 = arith.constant 0 : i32
    return %c0_i32, %c0_i32_0 : i32, i32
  }
  func.func @transform_5(%arg0: i32) -> (i32, i32) {
    %c0_i32 = arith.constant 0 : i32
    %c0_i32_0 = arith.constant 0 : i32
    %c0_i32_1 = arith.constant 0 : i32
    return %c0_i32, %c0_i32_0 : i32, i32
  }
  func.func @transform_6(%arg0: i32) -> (i32, i32) {
    %c0_i32 = arith.constant 0 : i32
    %c0_i32_0 = arith.constant 0 : i32
    %c0_i32_1 = arith.constant 0 : i32
    return %c0_i32, %c0_i32_0 : i32, i32
  }
  func.func @transform_7(%arg0: i32) -> (i32, i32) {
    %c0_i32 = arith.constant 0 : i32
    %c0_i32_0 = arith.constant 0 : i32
    %c0_i32_1 = arith.constant 0 : i32
    return %c0_i32, %c0_i32_0 : i32, i32
  }
  func.func @transform_8(%arg0: i32) -> (i32, i32) {
    %c0_i32 = arith.constant 0 : i32
    %c0_i32_0 = arith.constant 0 : i32
    %c0_i32_1 = arith.constant 0 : i32
    return %c0_i32, %c0_i32_0 : i32, i32
  }
  func.func @transform_9(%arg0: i32) -> (i32, i32, i32, i32) {
    %c0_i32 = arith.constant 0 : i32
    %c0_i32_0 = arith.constant 0 : i32
    %c0_i32_1 = arith.constant 0 : i32
    %c0_i32_2 = arith.constant 0 : i32
    return %arg0, %c0_i32, %c0_i32_0, %c0_i32_1 : i32, i32, i32, i32
  }
}

</mosaic_0001>

<llo_original>
// kernel: tpu_custom_call.1
$region0: #{tpu_custom_call.1}
  #allocation0 [shape = 'u32[]', space=smem, size = 0x4, offset = 0x4, fixed_abs, tag = 'smem constant byte address 0x4 - core index']
  #allocation1 [shape = 'u32[144,128]{1,0:T(1,128)}', space=vmem, size = 0x12000, scoped, tag = 'internal scratch']
  #allocation2 [shape = 'f32[32,128]{1,0:T(8,128)}', space=vmem, size = 0x4000, scoped, tag = 'scratch operand']
  #allocation3 [shape = 'f32[4,32,512]{2,1,0:T(8,128)}', space=vmem, size = 0x40000, scoped, tag = 'scratch operand']
  #allocation4 [shape = 'f32[4,32,256]{2,1,0:T(8,128)}', space=vmem, size = 0x20000, scoped, tag = 'scratch operand']
  %s0 = inlined_call_operand.vmem [shape: f32[2,32,32], index: 0, kind: input, shape index: {}]
  %s1 = inlined_call_operand.vmem [shape: f32[8,2,16,4], index: 1, kind: input, shape index: {}]
  %s2 = inlined_call_operand.hbm [shape: f32[32,128], index: 2, kind: input, shape index: {}]
  %s3 = inlined_call_operand.hbm [shape: f32[4,512], index: 3, kind: input, shape index: {}]
  %s4 = inlined_call_operand.hbm [shape: f32[128,512], index: 4, kind: input, shape index: {}]
  %s5 = inlined_call_operand.vmem [shape: f32[4,256], index: 5, kind: input, shape index: {}]
  %s6 = inlined_call_operand.vmem [shape: f32[128,256], index: 6, kind: input, shape index: {}]
  %s7 = inlined_call_operand.vmem [shape: f32[1,256], index: 7, kind: input, shape index: {}]
  %s8 = inlined_call_operand.vmem [shape: f32[1,128], index: 8, kind: input, shape index: {}]
  %s9 = inlined_call_operand.hbm [shape: f32[8,2,16,128], index: 9, kind: output, shape index: {}]
  %s10 = sld [smem:[#allocation0]]
  $region85: #{tpu_custom_call.1} parent=0
    _
  %s12 = ssub.s32 1, %s10
  %s13 = scalar_select 0, %s12, %s10
  $region1: #{tpu_custom_call.1} parent=0
    #allocation5 [shape = 'u8[16384]{0}', space=vmem, size = 0x4000, scoped, tag = 'input window, operand 2, single buffered']
    #allocation6 [shape = 's32[2]{0}', space=sflag, size = 0x8, scoped, tag = 'scoped memory for tpu_custom_call.1']
    #allocation7 [shape = 's32[2]{0}', space=sflag, size = 0x8, scoped, tag = 'scoped memory for tpu_custom_call.1']
    #allocation8 [shape = 'u8[8192]{0}', space=vmem, size = 0x2000, scoped, tag = 'input window, operand 3, single buffered']
    #allocation9 [shape = 's32[1]{0}', space=sflag, size = 0x4, scoped, tag = 'scoped memory for tpu_custom_call.1']
    #allocation10 [shape = 'u8[262144]{0}', space=vmem, size = 0x40000, scoped, tag = 'input window, operand 4, single buffered']
    #allocation11 [shape = 'u8[131072]{0}', space=vmem, size = 0x20000, scoped, tag = 'output window, operand 0']
    %14 = vsyncpa [#allocation6], 0
    %15 = vsyncpa [#allocation9], 0
    %16 = vsyncpa [#allocation7], 0
    %s17 = scalar_lea.sflag [#allocation7], 1
    %18 = vsyncpa %s17, 0
    loop: start=0, step=1, limit=4
    $region2: #{tpu_custom_call.1} parent=1 // loop_pre_header
      _
    $region3: #{tpu_custom_call.1} parent=1 // loop_header
      %s20 = sphi 0, %s24
      %p21 = scmp.ge.s32.totalorder %s20, 4
      %s28 = sphi 0, %s28
      %s30 = sphi 0, %s28
      %s31 = sphi 0, %s30
      %s45 = sphi 0, %s31
      %s51 = sphi 0, %s53
      %s54 = sphi 0, %s51
      %s55 = sphi 0, %s54
      %s71 = sphi 0, %s55
      %s75 = sphi 0, %s75
      %s77 = sphi 0, %s75
      %s78 = sphi 0, %s77
      %s92 = sphi 0, %s78
      %s96 = sphi 0, %s96
      %s98 = sphi 0, %s96
      %s99 = sphi 0, %s98
      %s113 = sphi 0, %s99
      %s117 = sphi 0, %s117
      %s119 = sphi 0, %s117
      %s120 = sphi 0, %s119
      %s134 = sphi 0, %s120
      %s138 = sphi 0, %s138
      %s140 = sphi 0, %s138
      %s141 = sphi 0, %s140
      %s155 = sphi 0, %s141
      %s159 = sphi 0, %s159
      %s161 = sphi 0, %s159
      %s162 = sphi 0, %s161
      %s176 = sphi 0, %s162
      %s180 = sphi 0, %s180
      %s182 = sphi 0, %s180
      %s183 = sphi 0, %s182
      %s197 = sphi 0, %s183
      %s201 = sphi 0, %s201
      %s203 = sphi 0, %s201
      %s204 = sphi 0, %s203
      %s218 = sphi 0, %s204
      %s224 = sphi 0, %s226
      %s227 = sphi 0, %s224
      %s228 = sphi 0, %s227
      %s244 = sphi 0, %s228
    $region4: #{tpu_custom_call.1} parent=1 // loop_header_branch
      %23 = sbr.rel (%p21) target = $region8
    $region5: #{tpu_custom_call.1} parent=1 // loop_body
      %s25 = ssub.s32 %s20, 1
      %s26 = ssub.s32 %s20, 2
      %s27 = sadd.s32 %s20, 1
      %s29 = sadd.s32 %s28, 1
      %p32 = scmp.eq.s32.totalorder %s20, 1
      %p33 = scmp.ne.s32.totalorder %s28, %s30
      %p34 = scmp.eq.s32.totalorder %s20, 0
      %p35 = por %p33, %p34
      %p36 = scmp.ne.s32.totalorder %s28, %s30
      %p37 = scmp.eq.s32.totalorder %s25, 1
      %p38 = por %p36, %p37
      %p39 = scmp.ne.s32.totalorder %s30, %s31
      %p40 = scmp.eq.s32.totalorder %s25, 0
      %p41 = por %p39, %p40
      %p42 = scmp.ne.s32.totalorder %s30, %s31
      %p43 = scmp.eq.s32.totalorder %s26, 1
      %p44 = por %p42, %p43
      %p46 = scmp.ne.s32.totalorder %s31, %s45
      %p47 = scmp.eq.s32.totalorder %s26, 0
      %p48 = por %p46, %p47
      %s49 = ssub.s32 %s20, %s27
      %p50 = scmp.eq.s32.totalorder %s49, 0
      %s52 = sadd.s32 %s51, 1
      %s53 = scalar_select %p50, %s51, %s52
      %p56 = pneg %p50
      %p57 = scmp.eq.s32.totalorder %s20, 1
      %p58 = por %p56, %p57
      %p59 = scmp.ne.s32.totalorder %s51, %s54
      %p60 = scmp.eq.s32.totalorder %s20, 0
      %p61 = por %p59, %p60
      %p62 = scmp.ne.s32.totalorder %s51, %s54
      %p63 = scmp.eq.s32.totalorder %s25, 1
      %p64 = por %p62, %p63
      %p65 = scmp.ne.s32.totalorder %s54, %s55
      %p66 = scmp.eq.s32.totalorder %s25, 0
      %p67 = por %p65, %p66
      %p68 = scmp.ne.s32.totalorder %s54, %s55
      %p69 = scmp.eq.s32.totalorder %s26, 1
      %p70 = por %p68, %p69
      %p72 = scmp.ne.s32.totalorder %s55, %s71
      %p73 = scmp.eq.s32.totalorder %s26, 0
      %p74 = por %p72, %p73
      %s76 = sadd.s32 %s75, 1
      %p79 = scmp.eq.s32.totalorder %s20, 1
      %p80 = scmp.ne.s32.totalorder %s75, %s77
      %p81 = scmp.eq.s32.totalorder %s20, 0
      %p82 = por %p80, %p81
      %p83 = scmp.ne.s32.totalorder %s75, %s77
      %p84 = scmp.eq.s32.totalorder %s25, 1
      %p85 = por %p83, %p84
      %p86 = scmp.ne.s32.totalorder %s77, %s78
      %p87 = scmp.eq.s32.totalorder %s25, 0
      %p88 = por %p86, %p87
      %p89 = scmp.ne.s32.totalorder %s77, %s78
      %p90 = scmp.eq.s32.totalorder %s26, 1
      %p91 = por %p89, %p90
      %p93 = scmp.ne.s32.totalorder %s78, %s92
      %p94 = scmp.eq.s32.totalorder %s26, 0
      %p95 = por %p93, %p94
      %s97 = sadd.s32 %s96, 1
      %p100 = scmp.eq.s32.totalorder %s20, 1
      %p101 = scmp.ne.s32.totalorder %s96, %s98
      %p102 = scmp.eq.s32.totalorder %s20, 0
      %p103 = por %p101, %p102
      %p104 = scmp.ne.s32.totalorder %s96, %s98
      %p105 = scmp.eq.s32.totalorder %s25, 1
      %p106 = por %p104, %p105
      %p107 = scmp.ne.s32.totalorder %s98, %s99
      %p108 = scmp.eq.s32.totalorder %s25, 0
      %p109 = por %p107, %p108
      %p110 = scmp.ne.s32.totalorder %s98, %s99
      %p111 = scmp.eq.s32.totalorder %s26, 1
      %p112 = por %p110, %p111
      %p114 = scmp.ne.s32.totalorder %s99, %s113
      %p115 = scmp.eq.s32.totalorder %s26, 0
      %p116 = por %p114, %p115
      %s118 = sadd.s32 %s117, 1
      %p121 = scmp.eq.s32.totalorder %s20, 1
      %p122 = scmp.ne.s32.totalorder %s117, %s119
      %p123 = scmp.eq.s32.totalorder %s20, 0
      %p124 = por %p122, %p123
      %p125 = scmp.ne.s32.totalorder %s117, %s119
      %p126 = scmp.eq.s32.totalorder %s25, 1
      %p127 = por %p125, %p126
      %p128 = scmp.ne.s32.totalorder %s119, %s120
      %p129 = scmp.eq.s32.totalorder %s25, 0
      %p130 = por %p128, %p129
      %p131 = scmp.ne.s32.totalorder %s119, %s120
      %p132 = scmp.eq.s32.totalorder %s26, 1
      %p133 = por %p131, %p132
      %p135 = scmp.ne.s32.totalorder %s120, %s134
      %p136 = scmp.eq.s32.totalorder %s26, 0
      %p137 = por %p135, %p136
      %s139 = sadd.s32 %s138, 1
      %p142 = scmp.eq.s32.totalorder %s20, 1
      %p143 = scmp.ne.s32.totalorder %s138, %s140
      %p144 = scmp.eq.s32.totalorder %s20, 0
      %p145 = por %p143, %p144
      %p146 = scmp.ne.s32.totalorder %s138, %s140
      %p147 = scmp.eq.s32.totalorder %s25, 1
      %p148 = por %p146, %p147
      %p149 = scmp.ne.s32.totalorder %s140, %s141
      %p150 = scmp.eq.s32.totalorder %s25, 0
      %p151 = por %p149, %p150
      %p152 = scmp.ne.s32.totalorder %s140, %s141
      %p153 = scmp.eq.s32.totalorder %s26, 1
      %p154 = por %p152, %p153
      %p156 = scmp.ne.s32.totalorder %s141, %s155
      %p157 = scmp.eq.s32.totalorder %s26, 0
      %p158 = por %p156, %p157
      %s160 = sadd.s32 %s159, 1
      %p163 = scmp.eq.s32.totalorder %s20, 1
      %p164 = scmp.ne.s32.totalorder %s159, %s161
      %p165 = scmp.eq.s32.totalorder %s20, 0
      %p166 = por %p164, %p165
      %p167 = scmp.ne.s32.totalorder %s159, %s161
      %p168 = scmp.eq.s32.totalorder %s25, 1
      %p169 = por %p167, %p168
      %p170 = scmp.ne.s32.totalorder %s161, %s162
      %p171 = scmp.eq.s32.totalorder %s25, 0
      %p172 = por %p170, %p171
      %p173 = scmp.ne.s32.totalorder %s161, %s162
      %p174 = scmp.eq.s32.totalorder %s26, 1
      %p175 = por %p173, %p174
      %p177 = scmp.ne.s32.totalorder %s162, %s176
      %p178 = scmp.eq.s32.totalorder %s26, 0
      %p179 = por %p177, %p178
      %s181 = sadd.s32 %s180, 1
      %p184 = scmp.eq.s32.totalorder %s20, 1
      %p185 = scmp.ne.s32.totalorder %s180, %s182
      %p186 = scmp.eq.s32.totalorder %s20, 0
      %p187 = por %p185, %p186
      %p188 = scmp.ne.s32.totalorder %s180, %s182
      %p189 = scmp.eq.s32.totalorder %s25, 1
      %p190 = por %p188, %p189
      %p191 = scmp.ne.s32.totalorder %s182, %s183
      %p192 = scmp.eq.s32.totalorder %s25, 0
      %p193 = por %p191, %p192
      %p194 = scmp.ne.s32.totalorder %s182, %s183
      %p195 = scmp.eq.s32.totalorder %s26, 1
      %p196 = por %p194, %p195
      %p198 = scmp.ne.s32.totalorder %s183, %s197
      %p199 = scmp.eq.s32.totalorder %s26, 0
      %p200 = por %p198, %p199
      %s202 = sadd.s32 %s201, 1
      %p205 = scmp.eq.s32.totalorder %s20, 1
      %p206 = scmp.ne.s32.totalorder %s201, %s203
      %p207 = scmp.eq.s32.totalorder %s20, 0
      %p208 = por %p206, %p207
      %p209 = scmp.ne.s32.totalorder %s201, %s203
      %p210 = scmp.eq.s32.totalorder %s25, 1
      %p211 = por %p209, %p210
      %p212 = scmp.ne.s32.totalorder %s203, %s204
      %p213 = scmp.eq.s32.totalorder %s25, 0
      %p214 = por %p212, %p213
      %p215 = scmp.ne.s32.totalorder %s203, %s204
      %p216 = scmp.eq.s32.totalorder %s26, 1
      %p217 = por %p215, %p216
      %p219 = scmp.ne.s32.totalorder %s204, %s218
      %p220 = scmp.eq.s32.totalorder %s26, 0
      %p221 = por %p219, %p220
      %s222 = ssub.s32 %s20, %s27
      %p223 = scmp.eq.s32.totalorder %s222, 0
      %s225 = sadd.s32 %s224, 1
      %s226 = scalar_select %p223, %s224, %s225
      %p229 = pneg %p223
      %p230 = scmp.eq.s32.totalorder %s20, 1
      %p231 = por %p229, %p230
      %p232 = scmp.ne.s32.totalorder %s224, %s227
      %p233 = scmp.eq.s32.totalorder %s20, 0
      %p234 = por %p232, %p233
      %p235 = scmp.ne.s32.totalorder %s224, %s227
      %p236 = scmp.eq.s32.totalorder %s25, 1
      %p237 = por %p235, %p236
      %p238 = scmp.ne.s32.totalorder %s227, %s228
      %p239 = scmp.eq.s32.totalorder %s25, 0
      %p240 = por %p238, %p239
      %p241 = scmp.ne.s32.totalorder %s227, %s228
      %p242 = scmp.eq.s32.totalorder %s26, 1
      %p243 = por %p241, %p242
      %p245 = scmp.ne.s32.totalorder %s228, %s244
      %p246 = scmp.eq.s32.totalorder %s26, 0
      %p247 = por %p245, %p246
      %p248 = scmp.le.s32.totalorder 1, %s20
      %p249 = scmp.lt.s32.totalorder %s20, 3
      %p250 = pnand %p248, %p249
      %p251 = pneg %p250
      // Predicated region
      $region9: #{tpu_custom_call.1} parent=5 // pred_check
        _
      $region10: #{tpu_custom_call.1} parent=5 // pred_check_branch
        %253 = sbr.rel (%p250) target = $region12
      $region11: #{tpu_custom_call.1} parent=5 // pred_region
        %s254 = ssub.s32 %s20, 1
        // Predicated region
        $region13: #{tpu_custom_call.1} parent=11 // pred_check
          %p255 = pneg %p41
        $region14: #{tpu_custom_call.1} parent=11 // pred_check_branch
          %257 = sbr.rel (%p255) target = $region16
        $region15: #{tpu_custom_call.1} parent=11 // pred_region
          _
        $region16: #{tpu_custom_call.1} parent=11 // pred_fallthru
          _
        // Predicated region
        $region17: #{tpu_custom_call.1} parent=11 // pred_check
          %p258 = pneg %p88
        $region18: #{tpu_custom_call.1} parent=11 // pred_check_branch
          %260 = sbr.rel (%p258) target = $region20
        $region19: #{tpu_custom_call.1} parent=11 // pred_region
          %s262 = ssub.s32 512, 512
          %263 = vsyncadd [#allocation6], %s262
          %s264 = sshll.u32 [#allocation5], 4
          %s265 = int_to_ptr.vmem [resolvable:$true] %s264
          %270 = dma.hbm_to_vmem [thread:$0]  %s2, 512, %s265, [#allocation6], 128, 128, 8
        $region20: #{tpu_custom_call.1} parent=11 // pred_fallthru
          _
        // Predicated region
        $region21: #{tpu_custom_call.1} parent=11 // pred_check
          %p271 = pneg %p109
        $region22: #{tpu_custom_call.1} parent=11 // pred_check_branch
          %273 = sbr.rel (%p271) target = $region24
        $region23: #{tpu_custom_call.1} parent=11 // pred_region
          %s275 = ssub.s32 256, 256
          %276 = vsyncadd [#allocation9], %s275
          %s278 = sshll.u32 [#allocation8], 4
          %s279 = int_to_ptr.vmem [resolvable:$true] %s278
          %281 = dma.hbm_to_vmem [thread:$0]  %s3, 256, %s279, [#allocation9]
        $region24: #{tpu_custom_call.1} parent=11 // pred_fallthru
          _
        // Predicated region
        $region25: #{tpu_custom_call.1} parent=11 // pred_check
          %p282 = pneg %p130
        $region26: #{tpu_custom_call.1} parent=11 // pred_check_branch
          %284 = sbr.rel (%p282) target = $region28
        $region27: #{tpu_custom_call.1} parent=11 // pred_region
          %s286 = ssub.s32 8192, 8192
          %287 = vsyncadd [#allocation9], %s286
          %s288 = sshll.u32 [#allocation10], 4
          %s289 = int_to_ptr.vmem [resolvable:$true] %s288
          %294 = dma.hbm_to_vmem [thread:$0]  %s4, 8192, %s289, [#allocation9], 512, 512, 32
        $region28: #{tpu_custom_call.1} parent=11 // pred_fallthru
          _
        // Predicated region
        $region29: #{tpu_custom_call.1} parent=11 // pred_check
          %p295 = pneg %p151
        $region30: #{tpu_custom_call.1} parent=11 // pred_check_branch
          %297 = sbr.rel (%p295) target = $region32
        $region31: #{tpu_custom_call.1} parent=11 // pred_region
          _
        $region32: #{tpu_custom_call.1} parent=11 // pred_fallthru
          _
        // Predicated region
        $region33: #{tpu_custom_call.1} parent=11 // pred_check
          %p298 = pneg %p172
        $region34: #{tpu_custom_call.1} parent=11 // pred_check_branch
          %300 = sbr.rel (%p298) target = $region36
        $region35: #{tpu_custom_call.1} parent=11 // pred_region
          _
        $region36: #{tpu_custom_call.1} parent=11 // pred_fallthru
          _
        // Predicated region
        $region37: #{tpu_custom_call.1} parent=11 // pred_check
          %p301 = pneg %p193
        $region38: #{tpu_custom_call.1} parent=11 // pred_check_branch
          %303 = sbr.rel (%p301) target = $region40
        $region39: #{tpu_custom_call.1} parent=11 // pred_region
          _
        $region40: #{tpu_custom_call.1} parent=11 // pred_fallthru
          _
        // Predicated region
        $region41: #{tpu_custom_call.1} parent=11 // pred_check
          %p304 = pneg %p214
        $region42: #{tpu_custom_call.1} parent=11 // pred_check_branch
          %306 = sbr.rel (%p304) target = $region44
        $region43: #{tpu_custom_call.1} parent=11 // pred_region
          _
        $region44: #{tpu_custom_call.1} parent=11 // pred_fallthru
          _
      $region12: #{tpu_custom_call.1} parent=5 // pred_fallthru
        _
      %p307 = scmp.lt.s32.totalorder %s20, 2
      // Predicated region
      $region45: #{tpu_custom_call.1} parent=5 // pred_check
        %p308 = pneg %p307
      $region46: #{tpu_custom_call.1} parent=5 // pred_check_branch
        %310 = sbr.rel (%p308) target = $region48
      $region47: #{tpu_custom_call.1} parent=5 // pred_region
        // Predicated region
        $region49: #{tpu_custom_call.1} parent=47 // pred_check
          %p311 = pneg %p61
        $region50: #{tpu_custom_call.1} parent=47 // pred_check_branch
          %313 = sbr.rel (%p311) target = $region52
        $region51: #{tpu_custom_call.1} parent=47 // pred_region
          %s314 = smul.u32 4, %s20
          %p315 = scmp.lt.s32.totalorder %s314, 7
          %s316 = scalar_select %p315, %s314, 7
          %s317 = smul.addr %s316, 4
          %s318 = smul.addr %s317, 8
          %s319 = scalar_lea.vmem %s1, %s318
          %s320 = smul.u32 4, %s20
        $region52: #{tpu_custom_call.1} parent=47 // pred_fallthru
          _
      $region48: #{tpu_custom_call.1} parent=5 // pred_fallthru
        _
      %p321 = scmp.le.s32.totalorder 1, %s20
      %p322 = scmp.lt.s32.totalorder %s20, 3
      %p323 = pnand %p321, %p322
      %p324 = pneg %p323
      // Predicated region
      $region53: #{tpu_custom_call.1} parent=5 // pred_check
        _
      $region54: #{tpu_custom_call.1} parent=5 // pred_check_branch
        %326 = sbr.rel (%p323) target = $region56
      $region55: #{tpu_custom_call.1} parent=5 // pred_region
        %s327 = ssub.s32 %s20, 1
        // Predicated region
        $region57: #{tpu_custom_call.1} parent=55 // pred_check
          %p328 = pneg %p88
        $region58: #{tpu_custom_call.1} parent=55 // pred_check_branch
          %330 = sbr.rel (%p328) target = $region60
        $region59: #{tpu_custom_call.1} parent=55 // pred_region
          %331 = dma.done [#allocation6], 512
        $region60: #{tpu_custom_call.1} parent=55 // pred_fallthru
          _
        // Predicated region
        $region61: #{tpu_custom_call.1} parent=55 // pred_check
          %p332 = pneg %p109
        $region62: #{tpu_custom_call.1} parent=55 // pred_check_branch
          %334 = sbr.rel (%p332) target = $region64
        $region63: #{tpu_custom_call.1} parent=55 // pred_region
          %335 = dma.done [#allocation9], 256
        $region64: #{tpu_custom_call.1} parent=55 // pred_fallthru
          _
        // Predicated region
        $region65: #{tpu_custom_call.1} parent=55 // pred_check
          %p336 = pneg %p130
        $region66: #{tpu_custom_call.1} parent=55 // pred_check_branch
          %338 = sbr.rel (%p336) target = $region68
        $region67: #{tpu_custom_call.1} parent=55 // pred_region
          %339 = dma.done [#allocation9], 8192
        $region68: #{tpu_custom_call.1} parent=55 // pred_fallthru
          _
        %p340 = pneg %p41
        %p341 = pneg %p38
        %s342 = smul.u32 4, %s25
        %p343 = scmp.lt.s32.totalorder %s342, 7
        %s344 = scalar_select %p343, %s342, 7
        %s345 = smul.addr %s344, 4
        %s346 = smul.addr %s345, 8
        %s347 = scalar_lea.vmem %s1, %s346
        %p348 = pneg %p67
        %p349 = pneg %p64
        %p350 = pneg %p88
        %p351 = pneg %p85
        %p352 = pneg %p109
        %p353 = pneg %p106
        %p354 = pneg %p130
        %p355 = pneg %p127
        %p356 = pneg %p151
        %p357 = pneg %p148
        %p358 = pneg %p172
        %p359 = pneg %p169
        %p360 = pneg %p193
        %p361 = pneg %p190
        %p362 = pneg %p214
        %p363 = pneg %p211
        %p364 = pneg %p240
        %p365 = pneg %p237
        %s366 = sand.u32 %s227, 1
        %s367 = scalar_lea.sflag [#allocation7], %s366
        %s368 = sand.u32 %s227, 1
        %s369 = smul.addr %s368, 128
        %s370 = scalar_lea.vmem [#allocation11], %s369
        %s371 = smul.u32 4, %s25
        %p372 = scmp.lt.s32.totalorder %s371, 7
        %s373 = scalar_select %p372, %s371, 7
        %s374 = smul.addr %s373, 4
        %s375 = smul.addr %s374, 8
        %s376 = scalar_lea.vmem %s1, %s375
        %s377 = smul.u32 4, %s25
        %s378 = smul.u32 4, %s25
        %p379 = scmp.eq.s32.totalorder %s25, 0
        // Predicated region
        $region69: #{tpu_custom_call.1} parent=55 // pred_check
          %p380 = pneg %p379
        $region70: #{tpu_custom_call.1} parent=55 // pred_check_branch
          %382 = sbr.rel (%p380) target = $region72
        $region71: #{tpu_custom_call.1} parent=55 // pred_region
          %v383 = vld [vmem:[#allocation5] sm:$0xff]
          %v384 = vld [vmem:[#allocation5 + $0x8] sm:$0xff]
          %v385 = vld [vmem:[#allocation5 + $0x10] sm:$0xff]
          %v386 = vld [vmem:[#allocation5 + $0x18] sm:$0xff]
          %387 = vst [vmem:[#allocation2] sm:$0xff] %v383
          %388 = vst [vmem:[#allocation2 + $0x8] sm:$0xff] %v384
          %389 = vst [vmem:[#allocation2 + $0x10] sm:$0xff] %v385
          %390 = vst [vmem:[#allocation2 + $0x18] sm:$0xff] %v386
        $region72: #{tpu_custom_call.1} parent=55 // pred_fallthru
          _
        %v391 = vld [vmem:[%s376] sm:$0xff]
        %v392 = vld [vmem:[%s376 + $0x8] sm:$0xff]
        %v393 = vld [vmem:[%s376 + $0x10] sm:$0xff]
        %v394 = vld [vmem:[%s376 + $0x18] sm:$0xff]
        %v395 = vld [vmem:[%s376 + $0x20] sm:$0xff]
        %v396 = vld [vmem:[%s376 + $0x28] sm:$0xff]
        %v397 = vld [vmem:[%s376 + $0x30] sm:$0xff]
        %v398 = vld [vmem:[%s376 + $0x38] sm:$0xff]
        %v399 = vld [vmem:[%s376 + $0x40] sm:$0xff]
        %v400 = vld [vmem:[%s376 + $0x48] sm:$0xff]
        %v401 = vld [vmem:[%s376 + $0x50] sm:$0xff]
        %v402 = vld [vmem:[%s376 + $0x58] sm:$0xff]
        %v403 = vld [vmem:[%s376 + $0x60] sm:$0xff]
        %v404 = vld [vmem:[%s376 + $0x68] sm:$0xff]
        %v405 = vld [vmem:[%s376 + $0x70] sm:$0xff]
        %v406 = vld [vmem:[%s376 + $0x78] sm:$0xff]
        %v407 = vld [vmem:[#allocation8] sm:$0xff]
        %v408 = vld [vmem:[#allocation8 + $0x8] sm:$0xff]
        %v411 = vcombine.high %v407, %v407
        %v412 = vcombine.high %v408, %v408
        %vm413 = vcmask 31744
        %v415 = vsel %vm413, %v391, 0
        %v418 = vsel %vm413, %v392, 0
        %v421 = vsel %vm413, %v393, 0
        %v424 = vsel %vm413, %v394, 0
        %v427 = vsel %vm413, %v395, 0
        %v430 = vsel %vm413, %v396, 0
        %v433 = vsel %vm413, %v397, 0
        %v436 = vsel %vm413, %v398, 0
        %v439 = vsel %vm413, %v399, 0
        %v442 = vsel %vm413, %v400, 0
        %v445 = vsel %vm413, %v401, 0
        %v448 = vsel %vm413, %v402, 0
        %v451 = vsel %vm413, %v403, 0
        %v454 = vsel %vm413, %v404, 0
        %v457 = vsel %vm413, %v405, 0
        %v460 = vsel %vm413, %v406, 0
        %vm462 = vcmask 1043456
        %v463 = vsel %vm462, %v407, 0
        %v465 = vsel %vm462, %v411, 0
        %v467 = vsel %vm462, %v408, 0
        %v469 = vsel %vm462, %v412, 0
        %471 = vmatprep.subr.mxu0 0.0
        %472 = vmatpush1.msra.mxu0 0.0
        %473 = vmatprep.subr.mxu0 0.0
        %474 = vmatpush1.msra.mxu0 0.0
        %475 = vmatprep.subr.mxu0 0.0
        %476 = vmatpush1.msra.mxu0 0.0
        %477 = vmatprep.subr.mxu0 0.0
        %478 = vmatpush1.msra.mxu0 0.0
        %479 = vmatprep.subr.mxu0 0.0
        %480 = vmatpush1.msra.mxu0 0.0
        %481 = vmatprep.subr.mxu0 0.0
        %482 = vmatpush1.msra.mxu0 0.0
        %483 = vmatprep.subr.mxu0 0.0
        %484 = vmatpush1.msra.mxu0 0.0
        %485 = vmatprep.subr.mxu0 0.0
        %486 = vmatpush1.msra.mxu0 0.0
        %487 = vmatprep.subr.mxu0 0.0
        %488 = vmatpush1.msra.mxu0 0.0
        %489 = vmatprep.subr.mxu0 0.0
        %490 = vmatpush1.msra.mxu0 0.0
        %491 = vmatprep.subr.mxu0 0.0
        %492 = vmatpush1.msra.mxu0 0.0
        %493 = vmatprep.subr.mxu0 0.0
        %494 = vmatpush1.msra.mxu0 0.0
        %495 = vmatprep.subr.mxu0 0.0
        %496 = vmatpush1.msra.mxu0 0.0
        %497 = vmatprep.subr.mxu0 0.0
        %498 = vmatpush1.msra.mxu0 0.0
        %499 = vmatprep.subr.mxu0 0.0
        %500 = vmatpush1.msra.mxu0 0.0
        %501 = vmatprep.subr.mxu0 %v465
        %502 = vmatpush1.msra.mxu0 %v463
        %503 = vmatprep.subr.mxu0 0.0
        %504 = vmatpush2.msra.mxu0 0.0
        %505 = vmatprep.subr.mxu0 0.0
        %506 = vmatpush2.msra.mxu0 0.0
        %507 = vmatprep.subr.mxu0 0.0
        %508 = vmatpush2.msra.mxu0 0.0
        %509 = vmatprep.subr.mxu0 0.0
        %510 = vmatpush2.msra.mxu0 0.0
        %511 = vmatprep.subr.mxu0 0.0
        %512 = vmatpush2.msra.mxu0 0.0
        %513 = vmatprep.subr.mxu0 0.0
        %514 = vmatpush2.msra.mxu0 0.0
        %515 = vmatprep.subr.mxu0 0.0
        %516 = vmatpush2.msra.mxu0 0.0
        %517 = vmatprep.subr.mxu0 0.0
        %518 = vmatpush2.msra.mxu0 0.0
        %519 = vmatprep.subr.mxu0 0.0
        %520 = vmatpush2.msra.mxu0 0.0
        %521 = vmatprep.subr.mxu0 0.0
        %522 = vmatpush2.msra.mxu0 0.0
        %523 = vmatprep.subr.mxu0 0.0
        %524 = vmatpush2.msra.mxu0 0.0
        %525 = vmatprep.subr.mxu0 0.0
        %526 = vmatpush2.msra.mxu0 0.0
        %527 = vmatprep.subr.mxu0 0.0
        %528 = vmatpush2.msra.mxu0 0.0
        %529 = vmatprep.subr.mxu0 0.0
        %530 = vmatpush2.msra.mxu0 0.0
        %531 = vmatprep.subr.mxu0 0.0
        %532 = vmatpush2.msra.mxu0 0.0
        %533 = vmatprep.subr.mxu0 0.0
        %534 = vmatpush2.msra.mxu0 0.0
        %535 = vmatprep.mubr.f32.mxu0 0.0
        %536 = vmatmul.mubr.f32.gmra.mxu0 %v415
        %v537 = vpop.f32.mrf.mxu0
        %v538 = vadd.f32 0.0, %v537
        %v539 = vpop.f32.mrf.mxu0
        %v540 = vadd.f32 0.0, %v539
        %541 = vmatprep.mubr.f32.mxu0 0.0
        %542 = vmatmul.mubr.f32.gmra.mxu0 %v418
        %v543 = vpop.f32.mrf.mxu0
        %v544 = vadd.f32 0.0, %v543
        %v545 = vpop.f32.mrf.mxu0
        %v546 = vadd.f32 0.0, %v545
        %547 = vmatprep.mubr.f32.mxu0 0.0
        %548 = vmatmul.mubr.f32.gmra.mxu0 %v421
        %v549 = vpop.f32.mrf.mxu0
        %v550 = vadd.f32 0.0, %v549
        %v551 = vpop.f32.mrf.mxu0
        %v552 = vadd.f32 0.0, %v551
        %553 = vmatprep.mubr.f32.mxu0 0.0
        %554 = vmatmul.mubr.f32.gmra.mxu0 %v424
        %v555 = vpop.f32.mrf.mxu0
        %v556 = vadd.f32 0.0, %v555
        %v557 = vpop.f32.mrf.mxu0
        %v558 = vadd.f32 0.0, %v557
        %559 = vmatprep.mubr.f32.mxu0 0.0
        %560 = vmatmul.mubr.f32.gmra.mxu0 %v427
        %v561 = vpop.f32.mrf.mxu0
        %v562 = vadd.f32 0.0, %v561
        %v563 = vpop.f32.mrf.mxu0
        %v564 = vadd.f32 0.0, %v563
        %565 = vmatprep.mubr.f32.mxu0 0.0
        %566 = vmatmul.mubr.f32.gmra.mxu0 %v430
        %v567 = vpop.f32.mrf.mxu0
        %v568 = vadd.f32 0.0, %v567
        %v569 = vpop.f32.mrf.mxu0
        %v570 = vadd.f32 0.0, %v569
        %571 = vmatprep.mubr.f32.mxu0 0.0
        %572 = vmatmul.mubr.f32.gmra.mxu0 %v433
        %v573 = vpop.f32.mrf.mxu0
        %v574 = vadd.f32 0.0, %v573
        %v575 = vpop.f32.mrf.mxu0
        %v576 = vadd.f32 0.0, %v575
        %577 = vmatprep.mubr.f32.mxu0 0.0
        %578 = vmatmul.mubr.f32.gmra.mxu0 %v436
        %v579 = vpop.f32.mrf.mxu0
        %v580 = vadd.f32 0.0, %v579
        %v581 = vpop.f32.mrf.mxu0
        %v582 = vadd.f32 0.0, %v581
        %583 = vmatprep.mubr.f32.mxu0 0.0
        %584 = vmatmul.mubr.f32.gmra.mxu0 %v439
        %v585 = vpop.f32.mrf.mxu0
        %v586 = vadd.f32 0.0, %v585
        %v587 = vpop.f32.mrf.mxu0
        %v588 = vadd.f32 0.0, %v587
        %589 = vmatprep.mubr.f32.mxu0 0.0
        %590 = vmatmul.mubr.f32.gmra.mxu0 %v442
        %v591 = vpop.f32.mrf.mxu0
        %v592 = vadd.f32 0.0, %v591
        %v593 = vpop.f32.mrf.mxu0
        %v594 = vadd.f32 0.0, %v593
        %595 = vmatprep.mubr.f32.mxu0 0.0
        %596 = vmatmul.mubr.f32.gmra.mxu0 %v445
        %v597 = vpop.f32.mrf.mxu0
        %v598 = vadd.f32 0.0, %v597
        %v599 = vpop.f32.mrf.mxu0
        %v600 = vadd.f32 0.0, %v599
        %601 = vmatprep.mubr.f32.mxu0 0.0
        %602 = vmatmul.mubr.f32.gmra.mxu0 %v448
        %v603 = vpop.f32.mrf.mxu0
        %v604 = vadd.f32 0.0, %v603
        %v605 = vpop.f32.mrf.mxu0
        %v606 = vadd.f32 0.0, %v605
        %607 = vmatprep.mubr.f32.mxu0 0.0
        %608 = vmatmul.mubr.f32.gmra.mxu0 %v451
        %v609 = vpop.f32.mrf.mxu0
        %v610 = vadd.f32 0.0, %v609
        %v611 = vpop.f32.mrf.mxu0
        %v612 = vadd.f32 0.0, %v611
        %613 = vmatprep.mubr.f32.mxu0 0.0
        %614 = vmatmul.mubr.f32.gmra.mxu0 %v454
        %v615 = vpop.f32.mrf.mxu0
        %v616 = vadd.f32 0.0, %v615
        %v617 = vpop.f32.mrf.mxu0
        %v618 = vadd.f32 0.0, %v617
        %619 = vmatprep.mubr.f32.mxu0 0.0
        %620 = vmatmul.mubr.f32.gmra.mxu0 %v457
        %v621 = vpop.f32.mrf.mxu0
        %v622 = vadd.f32 0.0, %v621
        %v623 = vpop.f32.mrf.mxu0
        %v624 = vadd.f32 0.0, %v623
        %625 = vmatprep.mubr.f32.mxu0 0.0
        %626 = vmatmul.mubr.f32.gmra.mxu0 %v460
        %v627 = vpop.f32.mrf.mxu0
        %v628 = vadd.f32 0.0, %v627
        %v629 = vpop.f32.mrf.mxu0
        %v630 = vadd.f32 0.0, %v629
        %631 = vdwg.mxu0
        %632 = vmatprep.subr.mxu0 0.0
        %633 = vmatpush1.msra.mxu0 0.0
        %634 = vmatprep.subr.mxu0 0.0
        %635 = vmatpush1.msra.mxu0 0.0
        %636 = vmatprep.subr.mxu0 0.0
        %637 = vmatpush1.msra.mxu0 0.0
        %638 = vmatprep.subr.mxu0 0.0
        %639 = vmatpush1.msra.mxu0 0.0
        %640 = vmatprep.subr.mxu0 0.0
        %641 = vmatpush1.msra.mxu0 0.0
        %642 = vmatprep.subr.mxu0 0.0
        %643 = vmatpush1.msra.mxu0 0.0
        %644 = vmatprep.subr.mxu0 0.0
        %645 = vmatpush1.msra.mxu0 0.0
        %646 = vmatprep.subr.mxu0 0.0
        %647 = vmatpush1.msra.mxu0 0.0
        %648 = vmatprep.subr.mxu0 0.0
        %649 = vmatpush1.msra.mxu0 0.0
        %650 = vmatprep.subr.mxu0 0.0
        %651 = vmatpush1.msra.mxu0 0.0
        %652 = vmatprep.subr.mxu0 0.0
        %653 = vmatpush1.msra.mxu0 0.0
        %654 = vmatprep.subr.mxu0 0.0
        %655 = vmatpush1.msra.mxu0 0.0
        %656 = vmatprep.subr.mxu0 0.0
        %657 = vmatpush1.msra.mxu0 0.0
        %658 = vmatprep.subr.mxu0 0.0
        %659 = vmatpush1.msra.mxu0 0.0
        %660 = vmatprep.subr.mxu0 0.0
        %661 = vmatpush1.msra.mxu0 0.0
        %662 = vmatprep.subr.mxu0 %v469
        %663 = vmatpush1.msra.mxu0 %v467
        %664 = vmatprep.subr.mxu0 0.0
        %665 = vmatpush2.msra.mxu0 0.0
        %666 = vmatprep.subr.mxu0 0.0
        %667 = vmatpush2.msra.mxu0 0.0
        %668 = vmatprep.subr.mxu0 0.0
        %669 = vmatpush2.msra.mxu0 0.0
        %670 = vmatprep.subr.mxu0 0.0
        %671 = vmatpush2.msra.mxu0 0.0
        %672 = vmatprep.subr.mxu0 0.0
        %673 = vmatpush2.msra.mxu0 0.0
        %674 = vmatprep.subr.mxu0 0.0
        %675 = vmatpush2.msra.mxu0 0.0
        %676 = vmatprep.subr.mxu0 0.0
        %677 = vmatpush2.msra.mxu0 0.0
        %678 = vmatprep.subr.mxu0 0.0
        %679 = vmatpush2.msra.mxu0 0.0
        %680 = vmatprep.subr.mxu0 0.0
        %681 = vmatpush2.msra.mxu0 0.0
        %682 = vmatprep.subr.mxu0 0.0
        %683 = vmatpush2.msra.mxu0 0.0
        %684 = vmatprep.subr.mxu0 0.0
        %685 = vmatpush2.msra.mxu0 0.0
        %686 = vmatprep.subr.mxu0 0.0
        %687 = vmatpush2.msra.mxu0 0.0
        %688 = vmatprep.subr.mxu0 0.0
        %689 = vmatpush2.msra.mxu0 0.0
        %690 = vmatprep.subr.mxu0 0.0
        %691 = vmatpush2.msra.mxu0 0.0
        %692 = vmatprep.subr.mxu0 0.0
        %693 = vmatpush2.msra.mxu0 0.0
        %694 = vmatprep.subr.mxu0 0.0
        %695 = vmatpush2.msra.mxu0 0.0
        %696 = vmatprep.mubr.f32.mxu0 0.0
        %697 = vmatmul.mubr.f32.gmra.mxu0 %v415
        %v698 = vpop.f32.mrf.mxu0
        %v699 = vadd.f32 0.0, %v698
        %v700 = vpop.f32.mrf.mxu0
        %v701 = vadd.f32 0.0, %v700
        %702 = vmatprep.mubr.f32.mxu0 0.0
        %703 = vmatmul.mubr.f32.gmra.mxu0 %v418
        %v704 = vpop.f32.mrf.mxu0
        %v705 = vadd.f32 0.0, %v704
        %v706 = vpop.f32.mrf.mxu0
        %v707 = vadd.f32 0.0, %v706
        %708 = vmatprep.mubr.f32.mxu0 0.0
        %709 = vmatmul.mubr.f32.gmra.mxu0 %v421
        %v710 = vpop.f32.mrf.mxu0
        %v711 = vadd.f32 0.0, %v710
        %v712 = vpop.f32.mrf.mxu0
        %v713 = vadd.f32 0.0, %v712
        %714 = vmatprep.mubr.f32.mxu0 0.0
        %715 = vmatmul.mubr.f32.gmra.mxu0 %v424
        %v716 = vpop.f32.mrf.mxu0
        %v717 = vadd.f32 0.0, %v716
        %v718 = vpop.f32.mrf.mxu0
        %v719 = vadd.f32 0.0, %v718
        %720 = vmatprep.mubr.f32.mxu0 0.0
        %721 = vmatmul.mubr.f32.gmra.mxu0 %v427
        %v722 = vpop.f32.mrf.mxu0
        %v723 = vadd.f32 0.0, %v722
        %v724 = vpop.f32.mrf.mxu0
        %v725 = vadd.f32 0.0, %v724
        %726 = vmatprep.mubr.f32.mxu0 0.0
        %727 = vmatmul.mubr.f32.gmra.mxu0 %v430
        %v728 = vpop.f32.mrf.mxu0
        %v729 = vadd.f32 0.0, %v728
        %v730 = vpop.f32.mrf.mxu0
        %v731 = vadd.f32 0.0, %v730
        %732 = vmatprep.mubr.f32.mxu0 0.0
        %733 = vmatmul.mubr.f32.gmra.mxu0 %v433
        %v734 = vpop.f32.mrf.mxu0
        %v735 = vadd.f32 0.0, %v734
        %v736 = vpop.f32.mrf.mxu0
        %v737 = vadd.f32 0.0, %v736
        %738 = vmatprep.mubr.f32.mxu0 0.0
        %739 = vmatmul.mubr.f32.gmra.mxu0 %v436
        %v740 = vpop.f32.mrf.mxu0
        %v741 = vadd.f32 0.0, %v740
        %v742 = vpop.f32.mrf.mxu0
        %v743 = vadd.f32 0.0, %v742
        %744 = vmatprep.mubr.f32.mxu0 0.0
        %745 = vmatmul.mubr.f32.gmra.mxu0 %v439
        %v746 = vpop.f32.mrf.mxu0
        %v747 = vadd.f32 0.0, %v746
        %v748 = vpop.f32.mrf.mxu0
        %v749 = vadd.f32 0.0, %v748
        %750 = vmatprep.mubr.f32.mxu0 0.0
        %751 = vmatmul.mubr.f32.gmra.mxu0 %v442
        %v752 = vpop.f32.mrf.mxu0
        %v753 = vadd.f32 0.0, %v752
        %v754 = vpop.f32.mrf.mxu0
        %v755 = vadd.f32 0.0, %v754
        %756 = vmatprep.mubr.f32.mxu0 0.0
        %757 = vmatmul.mubr.f32.gmra.mxu0 %v445
        %v758 = vpop.f32.mrf.mxu0
        %v759 = vadd.f32 0.0, %v758
        %v760 = vpop.f32.mrf.mxu0
        %v761 = vadd.f32 0.0, %v760
        %762 = vmatprep.mubr.f32.mxu0 0.0
        %763 = vmatmul.mubr.f32.gmra.mxu0 %v448
        %v764 = vpop.f32.mrf.mxu0
        %v765 = vadd.f32 0.0, %v764
        %v766 = vpop.f32.mrf.mxu0
        %v767 = vadd.f32 0.0, %v766
        %768 = vmatprep.mubr.f32.mxu0 0.0
        %769 = vmatmul.mubr.f32.gmra.mxu0 %v451
        %v770 = vpop.f32.mrf.mxu0
        %v771 = vadd.f32 0.0, %v770
        %v772 = vpop.f32.mrf.mxu0
        %v773 = vadd.f32 0.0, %v772
        %774 = vmatprep.mubr.f32.mxu0 0.0
        %775 = vmatmul.mubr.f32.gmra.mxu0 %v454
        %v776 = vpop.f32.mrf.mxu0
        %v777 = vadd.f32 0.0, %v776
        %v778 = vpop.f32.mrf.mxu0
        %v779 = vadd.f32 0.0, %v778
        %780 = vmatprep.mubr.f32.mxu0 0.0
        %781 = vmatmul.mubr.f32.gmra.mxu0 %v457
        %v782 = vpop.f32.mrf.mxu0
        %v783 = vadd.f32 0.0, %v782
        %v784 = vpop.f32.mrf.mxu0
        %v785 = vadd.f32 0.0, %v784
        %786 = vmatprep.mubr.f32.mxu0 0.0
        %787 = vmatmul.mubr.f32.gmra.mxu0 %v460
        %v788 = vpop.f32.mrf.mxu0
        %v789 = vadd.f32 0.0, %v788
        %v790 = vpop.f32.mrf.mxu0
        %v791 = vadd.f32 0.0, %v790
        %792 = vdwg.mxu0
        %793 = vst [vmem:[#allocation3] sm:$0xff] %v538
        %794 = vst [vmem:[#allocation3 + $0x8] sm:$0xff] %v540
        %795 = vst [vmem:[#allocation3 + $0x10] sm:$0xff] %v699
        %796 = vst [vmem:[#allocation3 + $0x18] sm:$0xff] %v701
        %797 = vst [vmem:[#allocation3 + $0x20] sm:$0xff] %v544
        %798 = vst [vmem:[#allocation3 + $0x28] sm:$0xff] %v546
        %799 = vst [vmem:[#allocation3 + $0x30] sm:$0xff] %v705
        %800 = vst [vmem:[#allocation3 + $0x38] sm:$0xff] %v707
        %801 = vst [vmem:[#allocation3 + $0x40] sm:$0xff] %v550
        %802 = vst [vmem:[#allocation3 + $0x48] sm:$0xff] %v552
        %803 = vst [vmem:[#allocation3 + $0x50] sm:$0xff] %v711
        %804 = vst [vmem:[#allocation3 + $0x58] sm:$0xff] %v713
        %805 = vst [vmem:[#allocation3 + $0x60] sm:$0xff] %v556
        %806 = vst [vmem:[#allocation3 + $0x68] sm:$0xff] %v558
        %807 = vst [vmem:[#allocation3 + $0x70] sm:$0xff] %v717
        %808 = vst [vmem:[#allocation3 + $0x78] sm:$0xff] %v719
        %809 = vst [vmem:[#allocation3 + $0x80] sm:$0xff] %v562
        %810 = vst [vmem:[#allocation3 + $0x88] sm:$0xff] %v564
        %811 = vst [vmem:[#allocation3 + $0x90] sm:$0xff] %v723
        %812 = vst [vmem:[#allocation3 + $0x98] sm:$0xff] %v725
        %813 = vst [vmem:[#allocation3 + $0xa0] sm:$0xff] %v568
        %814 = vst [vmem:[#allocation3 + $0xa8] sm:$0xff] %v570
        %815 = vst [vmem:[#allocation3 + $0xb0] sm:$0xff] %v729
        %816 = vst [vmem:[#allocation3 + $0xb8] sm:$0xff] %v731
        %817 = vst [vmem:[#allocation3 + $0xc0] sm:$0xff] %v574
        %818 = vst [vmem:[#allocation3 + $0xc8] sm:$0xff] %v576
        %819 = vst [vmem:[#allocation3 + $0xd0] sm:$0xff] %v735
        %820 = vst [vmem:[#allocation3 + $0xd8] sm:$0xff] %v737
        %821 = vst [vmem:[#allocation3 + $0xe0] sm:$0xff] %v580
        %822 = vst [vmem:[#allocation3 + $0xe8] sm:$0xff] %v582
        %823 = vst [vmem:[#allocation3 + $0xf0] sm:$0xff] %v741
        %824 = vst [vmem:[#allocation3 + $0xf8] sm:$0xff] %v743
        %825 = vst [vmem:[#allocation3 + $0x100] sm:$0xff] %v586
        %826 = vst [vmem:[#allocation3 + $0x108] sm:$0xff] %v588
        %827 = vst [vmem:[#allocation3 + $0x110] sm:$0xff] %v747
        %828 = vst [vmem:[#allocation3 + $0x118] sm:$0xff] %v749
        %829 = vst [vmem:[#allocation3 + $0x120] sm:$0xff] %v592
        %830 = vst [vmem:[#allocation3 + $0x128] sm:$0xff] %v594
        %831 = vst [vmem:[#allocation3 + $0x130] sm:$0xff] %v753
        %832 = vst [vmem:[#allocation3 + $0x138] sm:$0xff] %v755
        %833 = vst [vmem:[#allocation3 + $0x140] sm:$0xff] %v598
        %834 = vst [vmem:[#allocation3 + $0x148] sm:$0xff] %v600
        %835 = vst [vmem:[#allocation3 + $0x150] sm:$0xff] %v759
        %836 = vst [vmem:[#allocation3 + $0x158] sm:$0xff] %v761
        %837 = vst [vmem:[#allocation3 + $0x160] sm:$0xff] %v604
        %838 = vst [vmem:[#allocation3 + $0x168] sm:$0xff] %v606
        %839 = vst [vmem:[#allocation3 + $0x170] sm:$0xff] %v765
        %840 = vst [vmem:[#allocation3 + $0x178] sm:$0xff] %v767
        %841 = vst [vmem:[#allocation3 + $0x180] sm:$0xff] %v610
        %842 = vst [vmem:[#allocation3 + $0x188] sm:$0xff] %v612
        %843 = vst [vmem:[#allocation3 + $0x190] sm:$0xff] %v771
        %844 = vst [vmem:[#allocation3 + $0x198] sm:$0xff] %v773
        %845 = vst [vmem:[#allocation3 + $0x1a0] sm:$0xff] %v616
        %846 = vst [vmem:[#allocation3 + $0x1a8] sm:$0xff] %v618
        %847 = vst [vmem:[#allocation3 + $0x1b0] sm:$0xff] %v777
        %848 = vst [vmem:[#allocation3 + $0x1b8] sm:$0xff] %v779
        %849 = vst [vmem:[#allocation3 + $0x1c0] sm:$0xff] %v622
        %850 = vst [vmem:[#allocation3 + $0x1c8] sm:$0xff] %v624
        %851 = vst [vmem:[#allocation3 + $0x1d0] sm:$0xff] %v783
        %852 = vst [vmem:[#allocation3 + $0x1d8] sm:$0xff] %v785
        %853 = vst [vmem:[#allocation3 + $0x1e0] sm:$0xff] %v628
        %854 = vst [vmem:[#allocation3 + $0x1e8] sm:$0xff] %v630
        %855 = vst [vmem:[#allocation3 + $0x1f0] sm:$0xff] %v789
        %856 = vst [vmem:[#allocation3 + $0x1f8] sm:$0xff] %v791
        %v857 = vld [vmem:[%s5] sm:$0xff]
        %v859 = vcombine.high %v857, %v857
        %v860 = vsel %vm462, %v857, 0
        %v862 = vsel %vm462, %v859, 0
        %864 = vmatprep.subr.mxu0 0.0
        %865 = vmatpush1.msra.mxu0 0.0
        %866 = vmatprep.subr.mxu0 0.0
        %867 = vmatpush1.msra.mxu0 0.0
        %868 = vmatprep.subr.mxu0 0.0
        %869 = vmatpush1.msra.mxu0 0.0
        %870 = vmatprep.subr.mxu0 0.0
        %871 = vmatpush1.msra.mxu0 0.0
        %872 = vmatprep.subr.mxu0 0.0
        %873 = vmatpush1.msra.mxu0 0.0
        %874 = vmatprep.subr.mxu0 0.0
        %875 = vmatpush1.msra.mxu0 0.0
        %876 = vmatprep.subr.mxu0 0.0
        %877 = vmatpush1.msra.mxu0 0.0
        %878 = vmatprep.subr.mxu0 0.0
        %879 = vmatpush1.msra.mxu0 0.0
        %880 = vmatprep.subr.mxu0 0.0
        %881 = vmatpush1.msra.mxu0 0.0
        %882 = vmatprep.subr.mxu0 0.0
        %883 = vmatpush1.msra.mxu0 0.0
        %884 = vmatprep.subr.mxu0 0.0
        %885 = vmatpush1.msra.mxu0 0.0
        %886 = vmatprep.subr.mxu0 0.0
        %887 = vmatpush1.msra.mxu0 0.0
        %888 = vmatprep.subr.mxu0 0.0
        %889 = vmatpush1.msra.mxu0 0.0
        %890 = vmatprep.subr.mxu0 0.0
        %891 = vmatpush1.msra.mxu0 0.0
        %892 = vmatprep.subr.mxu0 0.0
        %893 = vmatpush1.msra.mxu0 0.0
        %894 = vmatprep.subr.mxu0 %v862
        %895 = vmatpush1.msra.mxu0 %v860
        %896 = vmatprep.subr.mxu0 0.0
        %897 = vmatpush2.msra.mxu0 0.0
        %898 = vmatprep.subr.mxu0 0.0
        %899 = vmatpush2.msra.mxu0 0.0
        %900 = vmatprep.subr.mxu0 0.0
        %901 = vmatpush2.msra.mxu0 0.0
        %902 = vmatprep.subr.mxu0 0.0
        %903 = vmatpush2.msra.mxu0 0.0
        %904 = vmatprep.subr.mxu0 0.0
        %905 = vmatpush2.msra.mxu0 0.0
        %906 = vmatprep.subr.mxu0 0.0
        %907 = vmatpush2.msra.mxu0 0.0
        %908 = vmatprep.subr.mxu0 0.0
        %909 = vmatpush2.msra.mxu0 0.0
        %910 = vmatprep.subr.mxu0 0.0
        %911 = vmatpush2.msra.mxu0 0.0
        %912 = vmatprep.subr.mxu0 0.0
        %913 = vmatpush2.msra.mxu0 0.0
        %914 = vmatprep.subr.mxu0 0.0
        %915 = vmatpush2.msra.mxu0 0.0
        %916 = vmatprep.subr.mxu0 0.0
        %917 = vmatpush2.msra.mxu0 0.0
        %918 = vmatprep.subr.mxu0 0.0
        %919 = vmatpush2.msra.mxu0 0.0
        %920 = vmatprep.subr.mxu0 0.0
        %921 = vmatpush2.msra.mxu0 0.0
        %922 = vmatprep.subr.mxu0 0.0
        %923 = vmatpush2.msra.mxu0 0.0
        %924 = vmatprep.subr.mxu0 0.0
        %925 = vmatpush2.msra.mxu0 0.0
        %926 = vmatprep.subr.mxu0 0.0
        %927 = vmatpush2.msra.mxu0 0.0
        %928 = vmatprep.mubr.f32.mxu0 0.0
        %929 = vmatmul.mubr.f32.gmra.mxu0 %v415
        %v930 = vpop.f32.mrf.mxu0
        %v931 = vadd.f32 0.0, %v930
        %v932 = vpop.f32.mrf.mxu0
        %v933 = vadd.f32 0.0, %v932
        %934 = vmatprep.mubr.f32.mxu0 0.0
        %935 = vmatmul.mubr.f32.gmra.mxu0 %v418
        %v936 = vpop.f32.mrf.mxu0
        %v937 = vadd.f32 0.0, %v936
        %v938 = vpop.f32.mrf.mxu0
        %v939 = vadd.f32 0.0, %v938
        %940 = vmatprep.mubr.f32.mxu0 0.0
        %941 = vmatmul.mubr.f32.gmra.mxu0 %v421
        %v942 = vpop.f32.mrf.mxu0
        %v943 = vadd.f32 0.0, %v942
        %v944 = vpop.f32.mrf.mxu0
        %v945 = vadd.f32 0.0, %v944
        %946 = vmatprep.mubr.f32.mxu0 0.0
        %947 = vmatmul.mubr.f32.gmra.mxu0 %v424
        %v948 = vpop.f32.mrf.mxu0
        %v949 = vadd.f32 0.0, %v948
        %v950 = vpop.f32.mrf.mxu0
        %v951 = vadd.f32 0.0, %v950
        %952 = vmatprep.mubr.f32.mxu0 0.0
        %953 = vmatmul.mubr.f32.gmra.mxu0 %v427
        %v954 = vpop.f32.mrf.mxu0
        %v955 = vadd.f32 0.0, %v954
        %v956 = vpop.f32.mrf.mxu0
        %v957 = vadd.f32 0.0, %v956
        %958 = vmatprep.mubr.f32.mxu0 0.0
        %959 = vmatmul.mubr.f32.gmra.mxu0 %v430
        %v960 = vpop.f32.mrf.mxu0
        %v961 = vadd.f32 0.0, %v960
        %v962 = vpop.f32.mrf.mxu0
        %v963 = vadd.f32 0.0, %v962
        %964 = vmatprep.mubr.f32.mxu0 0.0
        %965 = vmatmul.mubr.f32.gmra.mxu0 %v433
        %v966 = vpop.f32.mrf.mxu0
        %v967 = vadd.f32 0.0, %v966
        %v968 = vpop.f32.mrf.mxu0
        %v969 = vadd.f32 0.0, %v968
        %970 = vmatprep.mubr.f32.mxu0 0.0
        %971 = vmatmul.mubr.f32.gmra.mxu0 %v436
        %v972 = vpop.f32.mrf.mxu0
        %v973 = vadd.f32 0.0, %v972
        %v974 = vpop.f32.mrf.mxu0
        %v975 = vadd.f32 0.0, %v974
        %976 = vmatprep.mubr.f32.mxu0 0.0
        %977 = vmatmul.mubr.f32.gmra.mxu0 %v439
        %v978 = vpop.f32.mrf.mxu0
        %v979 = vadd.f32 0.0, %v978
        %v980 = vpop.f32.mrf.mxu0
        %v981 = vadd.f32 0.0, %v980
        %982 = vmatprep.mubr.f32.mxu0 0.0
        %983 = vmatmul.mubr.f32.gmra.mxu0 %v442
        %v984 = vpop.f32.mrf.mxu0
        %v985 = vadd.f32 0.0, %v984
        %v986 = vpop.f32.mrf.mxu0
        %v987 = vadd.f32 0.0, %v986
        %988 = vmatprep.mubr.f32.mxu0 0.0
        %989 = vmatmul.mubr.f32.gmra.mxu0 %v445
        %v990 = vpop.f32.mrf.mxu0
        %v991 = vadd.f32 0.0, %v990
        %v992 = vpop.f32.mrf.mxu0
        %v993 = vadd.f32 0.0, %v992
        %994 = vmatprep.mubr.f32.mxu0 0.0
        %995 = vmatmul.mubr.f32.gmra.mxu0 %v448
        %v996 = vpop.f32.mrf.mxu0
        %v997 = vadd.f32 0.0, %v996
        %v998 = vpop.f32.mrf.mxu0
        %v999 = vadd.f32 0.0, %v998
        %1000 = vmatprep.mubr.f32.mxu0 0.0
        %1001 = vmatmul.mubr.f32.gmra.mxu0 %v451
        %v1002 = vpop.f32.mrf.mxu0
        %v1003 = vadd.f32 0.0, %v1002
        %v1004 = vpop.f32.mrf.mxu0
        %v1005 = vadd.f32 0.0, %v1004
        %1006 = vmatprep.mubr.f32.mxu0 0.0
        %1007 = vmatmul.mubr.f32.gmra.mxu0 %v454
        %v1008 = vpop.f32.mrf.mxu0
        %v1009 = vadd.f32 0.0, %v1008
        %v1010 = vpop.f32.mrf.mxu0
        %v1011 = vadd.f32 0.0, %v1010
        %1012 = vmatprep.mubr.f32.mxu0 0.0
        %1013 = vmatmul.mubr.f32.gmra.mxu0 %v457
        %v1014 = vpop.f32.mrf.mxu0
        %v1015 = vadd.f32 0.0, %v1014
        %v1016 = vpop.f32.mrf.mxu0
        %v1017 = vadd.f32 0.0, %v1016
        %1018 = vmatprep.mubr.f32.mxu0 0.0
        %1019 = vmatmul.mubr.f32.gmra.mxu0 %v460
        %v1020 = vpop.f32.mrf.mxu0
        %v1021 = vadd.f32 0.0, %v1020
        %v1022 = vpop.f32.mrf.mxu0
        %v1023 = vadd.f32 0.0, %v1022
        %1024 = vdwg.mxu0
        %1025 = vst [vmem:[#allocation4] sm:$0xff] %v931
        %1026 = vst [vmem:[#allocation4 + $0x8] sm:$0xff] %v933
        %1027 = vst [vmem:[#allocation4 + $0x10] sm:$0xff] %v937
        %1028 = vst [vmem:[#allocation4 + $0x18] sm:$0xff] %v939
        %1029 = vst [vmem:[#allocation4 + $0x20] sm:$0xff] %v943
        %1030 = vst [vmem:[#allocation4 + $0x28] sm:$0xff] %v945
        %1031 = vst [vmem:[#allocation4 + $0x30] sm:$0xff] %v949
        %1032 = vst [vmem:[#allocation4 + $0x38] sm:$0xff] %v951
        %1033 = vst [vmem:[#allocation4 + $0x40] sm:$0xff] %v955
        %1034 = vst [vmem:[#allocation4 + $0x48] sm:$0xff] %v957
        %1035 = vst [vmem:[#allocation4 + $0x50] sm:$0xff] %v961
        %1036 = vst [vmem:[#allocation4 + $0x58] sm:$0xff] %v963
        %1037 = vst [vmem:[#allocation4 + $0x60] sm:$0xff] %v967
        %1038 = vst [vmem:[#allocation4 + $0x68] sm:$0xff] %v969
        %1039 = vst [vmem:[#allocation4 + $0x70] sm:$0xff] %v973
        %1040 = vst [vmem:[#allocation4 + $0x78] sm:$0xff] %v975
        %1041 = vst [vmem:[#allocation4 + $0x80] sm:$0xff] %v979
        %1042 = vst [vmem:[#allocation4 + $0x88] sm:$0xff] %v981
        %1043 = vst [vmem:[#allocation4 + $0x90] sm:$0xff] %v985
        %1044 = vst [vmem:[#allocation4 + $0x98] sm:$0xff] %v987
        %1045 = vst [vmem:[#allocation4 + $0xa0] sm:$0xff] %v991
        %1046 = vst [vmem:[#allocation4 + $0xa8] sm:$0xff] %v993
        %1047 = vst [vmem:[#allocation4 + $0xb0] sm:$0xff] %v997
        %1048 = vst [vmem:[#allocation4 + $0xb8] sm:$0xff] %v999
        %1049 = vst [vmem:[#allocation4 + $0xc0] sm:$0xff] %v1003
        %1050 = vst [vmem:[#allocation4 + $0xc8] sm:$0xff] %v1005
        %1051 = vst [vmem:[#allocation4 + $0xd0] sm:$0xff] %v1009
        %1052 = vst [vmem:[#allocation4 + $0xd8] sm:$0xff] %v1011
        %1053 = vst [vmem:[#allocation4 + $0xe0] sm:$0xff] %v1015
        %1054 = vst [vmem:[#allocation4 + $0xe8] sm:$0xff] %v1017
        %1055 = vst [vmem:[#allocation4 + $0xf0] sm:$0xff] %v1021
        %1056 = vst [vmem:[#allocation4 + $0xf8] sm:$0xff] %v1023
        %v1057 = vld [vmem:[%s0] sm:$0xff]
        %v1058 = vld [vmem:[%s0 + $0x8] sm:$0xff]
        %v1059 = vld [vmem:[%s0 + $0x10] sm:$0xff]
        %v1060 = vld [vmem:[%s0 + $0x18] sm:$0xff]
        %v1061 = vld [vmem:[%s0 + $0x20] sm:$0xff]
        %v1062 = vld [vmem:[%s0 + $0x28] sm:$0xff]
        %v1063 = vld [vmem:[%s0 + $0x30] sm:$0xff]
        %v1064 = vld [vmem:[%s0 + $0x38] sm:$0xff]
        %v1065 = vld [vmem:[#allocation10] sm:$0xff]
        %v1066 = vld [vmem:[#allocation10 + $0x8] sm:$0xff]
        %v1067 = vld [vmem:[#allocation10 + $0x10] sm:$0xff]
        %v1068 = vld [vmem:[#allocation10 + $0x18] sm:$0xff]
        %v1069 = vld [vmem:[#allocation10 + $0x20] sm:$0xff]
        %v1070 = vld [vmem:[#allocation10 + $0x28] sm:$0xff]
        %v1071 = vld [vmem:[#allocation10 + $0x30] sm:$0xff]
        %v1072 = vld [vmem:[#allocation10 + $0x38] sm:$0xff]
        %v1073 = vld [vmem:[#allocation10 + $0x40] sm:$0xff]
        %v1074 = vld [vmem:[#allocation10 + $0x48] sm:$0xff]
        %v1075 = vld [vmem:[#allocation10 + $0x50] sm:$0xff]
        %v1076 = vld [vmem:[#allocation10 + $0x58] sm:$0xff]
        %v1077 = vld [vmem:[#allocation10 + $0x60] sm:$0xff]
        %v1078 = vld [vmem:[#allocation10 + $0x68] sm:$0xff]
        %v1079 = vld [vmem:[#allocation10 + $0x70] sm:$0xff]
        %v1080 = vld [vmem:[#allocation10 + $0x78] sm:$0xff]
        %v1081 = vld [vmem:[#allocation10 + $0x80] sm:$0xff]
        %v1082 = vld [vmem:[#allocation10 + $0x88] sm:$0xff]
        %v1083 = vld [vmem:[#allocation10 + $0x90] sm:$0xff]
        %v1084 = vld [vmem:[#allocation10 + $0x98] sm:$0xff]
        %v1085 = vld [vmem:[#allocation10 + $0xa0] sm:$0xff]
        %v1086 = vld [vmem:[#allocation10 + $0xa8] sm:$0xff]
        %v1087 = vld [vmem:[#allocation10 + $0xb0] sm:$0xff]
        %v1088 = vld [vmem:[#allocation10 + $0xb8] sm:$0xff]
        %v1089 = vld [vmem:[#allocation10 + $0xc0] sm:$0xff]
        %v1090 = vld [vmem:[#allocation10 + $0xc8] sm:$0xff]
        %v1091 = vld [vmem:[#allocation10 + $0xd0] sm:$0xff]
        %v1092 = vld [vmem:[#allocation10 + $0xd8] sm:$0xff]
        %v1093 = vld [vmem:[#allocation10 + $0xe0] sm:$0xff]
        %v1094 = vld [vmem:[#allocation10 + $0xe8] sm:$0xff]
        %v1095 = vld [vmem:[#allocation10 + $0xf0] sm:$0xff]
        %v1096 = vld [vmem:[#allocation10 + $0xf8] sm:$0xff]
        %v1097 = vld [vmem:[#allocation10 + $0x100] sm:$0xff]
        %v1098 = vld [vmem:[#allocation10 + $0x108] sm:$0xff]
        %v1099 = vld [vmem:[#allocation10 + $0x110] sm:$0xff]
        %v1100 = vld [vmem:[#allocation10 + $0x118] sm:$0xff]
        %v1101 = vld [vmem:[#allocation10 + $0x120] sm:$0xff]
        %v1102 = vld [vmem:[#allocation10 + $0x128] sm:$0xff]
        %v1103 = vld [vmem:[#allocation10 + $0x130] sm:$0xff]
        %v1104 = vld [vmem:[#allocation10 + $0x138] sm:$0xff]
        %v1105 = vld [vmem:[#allocation10 + $0x140] sm:$0xff]
        %v1106 = vld [vmem:[#allocation10 + $0x148] sm:$0xff]
        %v1107 = vld [vmem:[#allocation10 + $0x150] sm:$0xff]
        %v1108 = vld [vmem:[#allocation10 + $0x158] sm:$0xff]
        %v1109 = vld [vmem:[#allocation10 + $0x160] sm:$0xff]
        %v1110 = vld [vmem:[#allocation10 + $0x168] sm:$0xff]
        %v1111 = vld [vmem:[#allocation10 + $0x170] sm:$0xff]
        %v1112 = vld [vmem:[#allocation10 + $0x178] sm:$0xff]
        %v1113 = vld [vmem:[#allocation10 + $0x180] sm:$0xff]
        %v1114 = vld [vmem:[#allocation10 + $0x188] sm:$0xff]
        %v1115 = vld [vmem:[#allocation10 + $0x190] sm:$0xff]
        %v1116 = vld [vmem:[#allocation10 + $0x198] sm:$0xff]
        %v1117 = vld [vmem:[#allocation10 + $0x1a0] sm:$0xff]
        %v1118 = vld [vmem:[#allocation10 + $0x1a8] sm:$0xff]
        %v1119 = vld [vmem:[#allocation10 + $0x1b0] sm:$0xff]
        %v1120 = vld [vmem:[#allocation10 + $0x1b8] sm:$0xff]
        %v1121 = vld [vmem:[#allocation10 + $0x1c0] sm:$0xff]
        %v1122 = vld [vmem:[#allocation10 + $0x1c8] sm:$0xff]
        %v1123 = vld [vmem:[#allocation10 + $0x1d0] sm:$0xff]
        %v1124 = vld [vmem:[#allocation10 + $0x1d8] sm:$0xff]
        %v1125 = vld [vmem:[#allocation10 + $0x1e0] sm:$0xff]
        %v1126 = vld [vmem:[#allocation10 + $0x1e8] sm:$0xff]
        %v1127 = vld [vmem:[#allocation10 + $0x1f0] sm:$0xff]
        %v1128 = vld [vmem:[#allocation10 + $0x1f8] sm:$0xff]
        %v1129 = vld [vmem:[%s6] sm:$0xff]
        %v1130 = vld [vmem:[%s6 + $0x8] sm:$0xff]
        %v1131 = vld [vmem:[%s6 + $0x10] sm:$0xff]
        %v1132 = vld [vmem:[%s6 + $0x18] sm:$0xff]
        %v1133 = vld [vmem:[%s6 + $0x20] sm:$0xff]
        %v1134 = vld [vmem:[%s6 + $0x28] sm:$0xff]
        %v1135 = vld [vmem:[%s6 + $0x30] sm:$0xff]
        %v1136 = vld [vmem:[%s6 + $0x38] sm:$0xff]
        %v1137 = vld [vmem:[%s6 + $0x40] sm:$0xff]
        %v1138 = vld [vmem:[%s6 + $0x48] sm:$0xff]
        %v1139 = vld [vmem:[%s6 + $0x50] sm:$0xff]
        %v1140 = vld [vmem:[%s6 + $0x58] sm:$0xff]
        %v1141 = vld [vmem:[%s6 + $0x60] sm:$0xff]
        %v1142 = vld [vmem:[%s6 + $0x68] sm:$0xff]
        %v1143 = vld [vmem:[%s6 + $0x70] sm:$0xff]
        %v1144 = vld [vmem:[%s6 + $0x78] sm:$0xff]
        %v1145 = vld [vmem:[%s6 + $0x80] sm:$0xff]
        %v1146 = vld [vmem:[%s6 + $0x88] sm:$0xff]
        %v1147 = vld [vmem:[%s6 + $0x90] sm:$0xff]
        %v1148 = vld [vmem:[%s6 + $0x98] sm:$0xff]
        %v1149 = vld [vmem:[%s6 + $0xa0] sm:$0xff]
        %v1150 = vld [vmem:[%s6 + $0xa8] sm:$0xff]
        %v1151 = vld [vmem:[%s6 + $0xb0] sm:$0xff]
        %v1152 = vld [vmem:[%s6 + $0xb8] sm:$0xff]
        %v1153 = vld [vmem:[%s6 + $0xc0] sm:$0xff]
        %v1154 = vld [vmem:[%s6 + $0xc8] sm:$0xff]
        %v1155 = vld [vmem:[%s6 + $0xd0] sm:$0xff]
        %v1156 = vld [vmem:[%s6 + $0xd8] sm:$0xff]
        %v1157 = vld [vmem:[%s6 + $0xe0] sm:$0xff]
        %v1158 = vld [vmem:[%s6 + $0xe8] sm:$0xff]
        %v1159 = vld [vmem:[%s6 + $0xf0] sm:$0xff]
        %v1160 = vld [vmem:[%s6 + $0xf8] sm:$0xff]
        %v1161 = vld [vmem:[%s7] sm:$0x3]
        %v1162 = vld [vmem:[%s8] sm:$0x1]
        %v1163 = vld [vmem:[#allocation2] sm:$0xff]
        %v1164 = vld [vmem:[#allocation2 + $0x8] sm:$0xff]
        %v1165 = vld [vmem:[#allocation2 + $0x10] sm:$0xff]
        %v1166 = vld [vmem:[#allocation2 + $0x18] sm:$0xff]
        %v1167 = vld [vmem:[#allocation3] sm:$0xff]
        %v1168 = vld [vmem:[#allocation3 + $0x8] sm:$0xff]
        %v1169 = vld [vmem:[#allocation3 + $0x10] sm:$0xff]
        %v1170 = vld [vmem:[#allocation3 + $0x18] sm:$0xff]
        %v1171 = vld [vmem:[#allocation3 + $0x20] sm:$0xff]
        %v1172 = vld [vmem:[#allocation3 + $0x28] sm:$0xff]
        %v1173 = vld [vmem:[#allocation3 + $0x30] sm:$0xff]
        %v1174 = vld [vmem:[#allocation3 + $0x38] sm:$0xff]
        %v1175 = vld [vmem:[#allocation3 + $0x40] sm:$0xff]
        %v1176 = vld [vmem:[#allocation3 + $0x48] sm:$0xff]
        %v1177 = vld [vmem:[#allocation3 + $0x50] sm:$0xff]
        %v1178 = vld [vmem:[#allocation3 + $0x58] sm:$0xff]
        %v1179 = vld [vmem:[#allocation3 + $0x60] sm:$0xff]
        %v1180 = vld [vmem:[#allocation3 + $0x68] sm:$0xff]
        %v1181 = vld [vmem:[#allocation3 + $0x70] sm:$0xff]
        %v1182 = vld [vmem:[#allocation3 + $0x78] sm:$0xff]
        %1183 = vmatprep.subr.mxu0 %v1126
        %1184 = vmatpush1.msra.mxu0 %v1125
        %1185 = vmatprep.subr.mxu0 %v1122
        %1186 = vmatpush1.msra.mxu0 %v1121
        %1187 = vmatprep.subr.mxu0 %v1118
        %1188 = vmatpush1.msra.mxu0 %v1117
        %1189 = vmatprep.subr.mxu0 %v1114
        %1190 = vmatpush1.msra.mxu0 %v1113
        %1191 = vmatprep.subr.mxu0 %v1110
        %1192 = vmatpush1.msra.mxu0 %v1109
        %1193 = vmatprep.subr.mxu0 %v1106
        %1194 = vmatpush1.msra.mxu0 %v1105
        %1195 = vmatprep.subr.mxu0 %v1102
        %1196 = vmatpush1.msra.mxu0 %v1101
        %1197 = vmatprep.subr.mxu0 %v1098
        %1198 = vmatpush1.msra.mxu0 %v1097
        %1199 = vmatprep.subr.mxu0 %v1094
        %1200 = vmatpush1.msra.mxu0 %v1093
        %1201 = vmatprep.subr.mxu0 %v1090
        %1202 = vmatpush1.msra.mxu0 %v1089
        %1203 = vmatprep.subr.mxu0 %v1086
        %1204 = vmatpush1.msra.mxu0 %v1085
        %1205 = vmatprep.subr.mxu0 %v1082
        %1206 = vmatpush1.msra.mxu0 %v1081
        %1207 = vmatprep.subr.mxu0 %v1078
        %1208 = vmatpush1.msra.mxu0 %v1077
        %1209 = vmatprep.subr.mxu0 %v1074
        %1210 = vmatpush1.msra.mxu0 %v1073
        %1211 = vmatprep.subr.mxu0 %v1070
        %1212 = vmatpush1.msra.mxu0 %v1069
        %1213 = vmatprep.subr.mxu0 %v1066
        %1214 = vmatpush1.msra.mxu0 %v1065
        %1215 = vmatprep.subr.mxu0 0.0
        %1216 = vmatpush2.msra.mxu0 0.0
        %1217 = vmatprep.subr.mxu0 0.0
        %1218 = vmatpush2.msra.mxu0 0.0
        %1219 = vmatprep.subr.mxu0 0.0
        %1220 = vmatpush2.msra.mxu0 0.0
        %1221 = vmatprep.subr.mxu0 0.0
        %1222 = vmatpush2.msra.mxu0 0.0
        %1223 = vmatprep.subr.mxu0 0.0
        %1224 = vmatpush2.msra.mxu0 0.0
        %1225 = vmatprep.subr.mxu0 0.0
        %1226 = vmatpush2.msra.mxu0 0.0
        %1227 = vmatprep.subr.mxu0 0.0
        %1228 = vmatpush2.msra.mxu0 0.0
        %1229 = vmatprep.subr.mxu0 0.0
        %1230 = vmatpush2.msra.mxu0 0.0
        %1231 = vmatprep.subr.mxu0 0.0
        %1232 = vmatpush2.msra.mxu0 0.0
        %1233 = vmatprep.subr.mxu0 0.0
        %1234 = vmatpush2.msra.mxu0 0.0
        %1235 = vmatprep.subr.mxu0 0.0
        %1236 = vmatpush2.msra.mxu0 0.0
        %1237 = vmatprep.subr.mxu0 0.0
        %1238 = vmatpush2.msra.mxu0 0.0
        %1239 = vmatprep.subr.mxu0 0.0
        %1240 = vmatpush2.msra.mxu0 0.0
        %1241 = vmatprep.subr.mxu0 0.0
        %1242 = vmatpush2.msra.mxu0 0.0
        %1243 = vmatprep.subr.mxu0 0.0
        %1244 = vmatpush2.msra.mxu0 0.0
        %1245 = vmatprep.subr.mxu0 0.0
        %1246 = vmatpush2.msra.mxu0 0.0
        %1247 = vmatprep.mubr.f32.mxu0 0.0
        %1248 = vmatmul.mubr.f32.gmra.mxu0 %v1163
        %v1249 = vpop.f32.mrf.mxu0
        %v1250 = vadd.f32 0.0, %v1249
        %v1251 = vpop.f32.mrf.mxu0
        %v1252 = vadd.f32 0.0, %v1251
        %1253 = vmatprep.mubr.f32.mxu0 0.0
        %1254 = vmatmul.mubr.f32.gmra.mxu0 %v1164
        %v1255 = vpop.f32.mrf.mxu0
        %v1256 = vadd.f32 0.0, %v1255
        %v1257 = vpop.f32.mrf.mxu0
        %v1258 = vadd.f32 0.0, %v1257
        %1259 = vmatprep.mubr.f32.mxu0 0.0
        %1260 = vmatmul.mubr.f32.gmra.mxu0 %v1165
        %v1261 = vpop.f32.mrf.mxu0
        %v1262 = vadd.f32 0.0, %v1261
        %v1263 = vpop.f32.mrf.mxu0
        %v1264 = vadd.f32 0.0, %v1263
        %1265 = vmatprep.mubr.f32.mxu0 0.0
        %1266 = vmatmul.mubr.f32.gmra.mxu0 %v1166
        %v1267 = vpop.f32.mrf.mxu0
        %v1268 = vadd.f32 0.0, %v1267
        %v1269 = vpop.f32.mrf.mxu0
        %v1270 = vadd.f32 0.0, %v1269
        %1271 = vdwg.mxu0
        %1272 = vmatprep.subr.mxu0 %v1128
        %1273 = vmatpush1.msra.mxu0 %v1127
        %1274 = vmatprep.subr.mxu0 %v1124
        %1275 = vmatpush1.msra.mxu0 %v1123
        %1276 = vmatprep.subr.mxu0 %v1120
        %1277 = vmatpush1.msra.mxu0 %v1119
        %1278 = vmatprep.subr.mxu0 %v1116
        %1279 = vmatpush1.msra.mxu0 %v1115
        %1280 = vmatprep.subr.mxu0 %v1112
        %1281 = vmatpush1.msra.mxu0 %v1111
        %1282 = vmatprep.subr.mxu0 %v1108
        %1283 = vmatpush1.msra.mxu0 %v1107
        %1284 = vmatprep.subr.mxu0 %v1104
        %1285 = vmatpush1.msra.mxu0 %v1103
        %1286 = vmatprep.subr.mxu0 %v1100
        %1287 = vmatpush1.msra.mxu0 %v1099
        %1288 = vmatprep.subr.mxu0 %v1096
        %1289 = vmatpush1.msra.mxu0 %v1095
        %1290 = vmatprep.subr.mxu0 %v1092
        %1291 = vmatpush1.msra.mxu0 %v1091
        %1292 = vmatprep.subr.mxu0 %v1088
        %1293 = vmatpush1.msra.mxu0 %v1087
        %1294 = vmatprep.subr.mxu0 %v1084
        %1295 = vmatpush1.msra.mxu0 %v1083
        %1296 = vmatprep.subr.mxu0 %v1080
        %1297 = vmatpush1.msra.mxu0 %v1079
        %1298 = vmatprep.subr.mxu0 %v1076
        %1299 = vmatpush1.msra.mxu0 %v1075
        %1300 = vmatprep.subr.mxu0 %v1072
        %1301 = vmatpush1.msra.mxu0 %v1071
        %1302 = vmatprep.subr.mxu0 %v1068
        %1303 = vmatpush1.msra.mxu0 %v1067
        %1304 = vmatprep.subr.mxu0 0.0
        %1305 = vmatpush2.msra.mxu0 0.0
        %1306 = vmatprep.subr.mxu0 0.0
        %1307 = vmatpush2.msra.mxu0 0.0
        %1308 = vmatprep.subr.mxu0 0.0
        %1309 = vmatpush2.msra.mxu0 0.0
        %1310 = vmatprep.subr.mxu0 0.0
        %1311 = vmatpush2.msra.mxu0 0.0
        %1312 = vmatprep.subr.mxu0 0.0
        %1313 = vmatpush2.msra.mxu0 0.0
        %1314 = vmatprep.subr.mxu0 0.0
        %1315 = vmatpush2.msra.mxu0 0.0
        %1316 = vmatprep.subr.mxu0 0.0
        %1317 = vmatpush2.msra.mxu0 0.0
        %1318 = vmatprep.subr.mxu0 0.0
        %1319 = vmatpush2.msra.mxu0 0.0
        %1320 = vmatprep.subr.mxu0 0.0
        %1321 = vmatpush2.msra.mxu0 0.0
        %1322 = vmatprep.subr.mxu0 0.0
        %1323 = vmatpush2.msra.mxu0 0.0
        %1324 = vmatprep.subr.mxu0 0.0
        %1325 = vmatpush2.msra.mxu0 0.0
        %1326 = vmatprep.subr.mxu0 0.0
        %1327 = vmatpush2.msra.mxu0 0.0
        %1328 = vmatprep.subr.mxu0 0.0
        %1329 = vmatpush2.msra.mxu0 0.0
        %1330 = vmatprep.subr.mxu0 0.0
        %1331 = vmatpush2.msra.mxu0 0.0
        %1332 = vmatprep.subr.mxu0 0.0
        %1333 = vmatpush2.msra.mxu0 0.0
        %1334 = vmatprep.subr.mxu0 0.0
        %1335 = vmatpush2.msra.mxu0 0.0
        %1336 = vmatprep.mubr.f32.mxu0 0.0
        %1337 = vmatmul.mubr.f32.gmra.mxu0 %v1163
        %v1338 = vpop.f32.mrf.mxu0
        %v1339 = vadd.f32 0.0, %v1338
        %v1340 = vpop.f32.mrf.mxu0
        %v1341 = vadd.f32 0.0, %v1340
        %1342 = vmatprep.mubr.f32.mxu0 0.0
        %1343 = vmatmul.mubr.f32.gmra.mxu0 %v1164
        %v1344 = vpop.f32.mrf.mxu0
        %v1345 = vadd.f32 0.0, %v1344
        %v1346 = vpop.f32.mrf.mxu0
        %v1347 = vadd.f32 0.0, %v1346
        %1348 = vmatprep.mubr.f32.mxu0 0.0
        %1349 = vmatmul.mubr.f32.gmra.mxu0 %v1165
        %v1350 = vpop.f32.mrf.mxu0
        %v1351 = vadd.f32 0.0, %v1350
        %v1352 = vpop.f32.mrf.mxu0
        %v1353 = vadd.f32 0.0, %v1352
        %1354 = vmatprep.mubr.f32.mxu0 0.0
        %1355 = vmatmul.mubr.f32.gmra.mxu0 %v1166
        %v1356 = vpop.f32.mrf.mxu0
        %v1357 = vadd.f32 0.0, %v1356
        %v1358 = vpop.f32.mrf.mxu0
        %v1359 = vadd.f32 0.0, %v1358
        %1360 = vdwg.mxu0
        %v1361 = vadd.f32 %v1167, %v1250
        %v1362 = vadd.f32 %v1168, %v1252
        %v1363 = vadd.f32 %v1169, %v1339
        %v1364 = vadd.f32 %v1170, %v1341
        %v1365 = vadd.f32 %v1171, %v1256
        %v1366 = vadd.f32 %v1172, %v1258
        %v1367 = vadd.f32 %v1173, %v1345
        %v1368 = vadd.f32 %v1174, %v1347
        %v1369 = vadd.f32 %v1175, %v1262
        %v1370 = vadd.f32 %v1176, %v1264
        %v1371 = vadd.f32 %v1177, %v1351
        %v1372 = vadd.f32 %v1178, %v1353
        %v1373 = vadd.f32 %v1179, %v1268
        %v1374 = vadd.f32 %v1180, %v1270
        %v1375 = vadd.f32 %v1181, %v1357
        %v1376 = vadd.f32 %v1182, %v1359
        %vm1377 = vcmask 261120
        %v1379 = vsel %vm1377, %v1061, 0
        %v1382 = vsel %vm1377, %v1062, 0
        %v1385 = vsel %vm1377, %v1063, 0
        %v1388 = vsel %vm1377, %v1064, 0
        %1390 = vmatprep.subr.mxu0 0.0
        %1391 = vmatpush1.msra.mxu0 0.0
        %1392 = vmatprep.subr.mxu0 0.0
        %1393 = vmatpush1.msra.mxu0 0.0
        %1394 = vmatprep.subr.mxu0 0.0
        %1395 = vmatpush1.msra.mxu0 0.0
        %1396 = vmatprep.subr.mxu0 0.0
        %1397 = vmatpush1.msra.mxu0 0.0
        %1398 = vmatprep.subr.mxu0 0.0
        %1399 = vmatpush1.msra.mxu0 0.0
        %1400 = vmatprep.subr.mxu0 0.0
        %1401 = vmatpush1.msra.mxu0 0.0
        %1402 = vmatprep.subr.mxu0 0.0
        %1403 = vmatpush1.msra.mxu0 0.0
        %1404 = vmatprep.subr.mxu0 0.0
        %1405 = vmatpush1.msra.mxu0 0.0
        %1406 = vmatprep.subr.mxu0 0.0
        %1407 = vmatpush1.msra.mxu0 0.0
        %1408 = vmatprep.subr.mxu0 0.0
        %1409 = vmatpush1.msra.mxu0 0.0
        %1410 = vmatprep.subr.mxu0 0.0
        %1411 = vmatpush1.msra.mxu0 0.0
        %1412 = vmatprep.subr.mxu0 0.0
        %1413 = vmatpush1.msra.mxu0 0.0
        %1414 = vmatprep.subr.mxu0 %v1376
        %1415 = vmatpush1.msra.mxu0 %v1375
        %1416 = vmatprep.subr.mxu0 %v1372
        %1417 = vmatpush1.msra.mxu0 %v1371
        %1418 = vmatprep.subr.mxu0 %v1368
        %1419 = vmatpush1.msra.mxu0 %v1367
        %1420 = vmatprep.subr.mxu0 %v1364
        %1421 = vmatpush1.msra.mxu0 %v1363
        %1422 = vmatprep.subr.mxu0 0.0
        %1423 = vmatpush2.msra.mxu0 0.0
        %1424 = vmatprep.subr.mxu0 0.0
        %1425 = vmatpush2.msra.mxu0 0.0
        %1426 = vmatprep.subr.mxu0 0.0
        %1427 = vmatpush2.msra.mxu0 0.0
        %1428 = vmatprep.subr.mxu0 0.0
        %1429 = vmatpush2.msra.mxu0 0.0
        %1430 = vmatprep.subr.mxu0 0.0
        %1431 = vmatpush2.msra.mxu0 0.0
        %1432 = vmatprep.subr.mxu0 0.0
        %1433 = vmatpush2.msra.mxu0 0.0
        %1434 = vmatprep.subr.mxu0 0.0
        %1435 = vmatpush2.msra.mxu0 0.0
        %1436 = vmatprep.subr.mxu0 0.0
        %1437 = vmatpush2.msra.mxu0 0.0
        %1438 = vmatprep.subr.mxu0 0.0
        %1439 = vmatpush2.msra.mxu0 0.0
        %1440 = vmatprep.subr.mxu0 0.0
        %1441 = vmatpush2.msra.mxu0 0.0
        %1442 = vmatprep.subr.mxu0 0.0
        %1443 = vmatpush2.msra.mxu0 0.0
        %1444 = vmatprep.subr.mxu0 0.0
        %1445 = vmatpush2.msra.mxu0 0.0
        %1446 = vmatprep.subr.mxu0 0.0
        %1447 = vmatpush2.msra.mxu0 0.0
        %1448 = vmatprep.subr.mxu0 0.0
        %1449 = vmatpush2.msra.mxu0 0.0
        %1450 = vmatprep.subr.mxu0 0.0
        %1451 = vmatpush2.msra.mxu0 0.0
        %1452 = vmatprep.subr.mxu0 0.0
        %1453 = vmatpush2.msra.mxu0 0.0
        %1454 = vmatprep.mubr.f32.mxu0 0.0
        %1455 = vmatmul.mubr.f32.gmra.mxu0 %v1379
        %v1456 = vpop.f32.mrf.mxu0
        %v1457 = vadd.f32 0.0, %v1456
        %v1458 = vpop.f32.mrf.mxu0
        %v1459 = vadd.f32 0.0, %v1458
        %1460 = vmatprep.mubr.f32.mxu0 0.0
        %1461 = vmatmul.mubr.f32.gmra.mxu0 %v1382
        %v1462 = vpop.f32.mrf.mxu0
        %v1463 = vadd.f32 0.0, %v1462
        %v1464 = vpop.f32.mrf.mxu0
        %v1465 = vadd.f32 0.0, %v1464
        %1466 = vmatprep.mubr.f32.mxu0 0.0
        %1467 = vmatmul.mubr.f32.gmra.mxu0 %v1385
        %v1468 = vpop.f32.mrf.mxu0
        %v1469 = vadd.f32 0.0, %v1468
        %v1470 = vpop.f32.mrf.mxu0
        %v1471 = vadd.f32 0.0, %v1470
        %1472 = vmatprep.mubr.f32.mxu0 0.0
        %1473 = vmatmul.mubr.f32.gmra.mxu0 %v1388
        %v1474 = vpop.f32.mrf.mxu0
        %v1475 = vadd.f32 0.0, %v1474
        %v1476 = vpop.f32.mrf.mxu0
        %v1477 = vadd.f32 0.0, %v1476
        %1478 = vdwg.mxu0
        %v1480 = vsel %vm1377, %v1057, 0
        %v1483 = vsel %vm1377, %v1058, 0
        %v1486 = vsel %vm1377, %v1059, 0
        %v1489 = vsel %vm1377, %v1060, 0
        %1491 = vmatprep.subr.mxu0 0.0
        %1492 = vmatpush1.msra.mxu0 0.0
        %1493 = vmatprep.subr.mxu0 0.0
        %1494 = vmatpush1.msra.mxu0 0.0
        %1495 = vmatprep.subr.mxu0 0.0
        %1496 = vmatpush1.msra.mxu0 0.0
        %1497 = vmatprep.subr.mxu0 0.0
        %1498 = vmatpush1.msra.mxu0 0.0
        %1499 = vmatprep.subr.mxu0 0.0
        %1500 = vmatpush1.msra.mxu0 0.0
        %1501 = vmatprep.subr.mxu0 0.0
        %1502 = vmatpush1.msra.mxu0 0.0
        %1503 = vmatprep.subr.mxu0 0.0
        %1504 = vmatpush1.msra.mxu0 0.0
        %1505 = vmatprep.subr.mxu0 0.0
        %1506 = vmatpush1.msra.mxu0 0.0
        %1507 = vmatprep.subr.mxu0 0.0
        %1508 = vmatpush1.msra.mxu0 0.0
        %1509 = vmatprep.subr.mxu0 0.0
        %1510 = vmatpush1.msra.mxu0 0.0
        %1511 = vmatprep.subr.mxu0 0.0
        %1512 = vmatpush1.msra.mxu0 0.0
        %1513 = vmatprep.subr.mxu0 0.0
        %1514 = vmatpush1.msra.mxu0 0.0
        %1515 = vmatprep.subr.mxu0 %v1374
        %1516 = vmatpush1.msra.mxu0 %v1373
        %1517 = vmatprep.subr.mxu0 %v1370
        %1518 = vmatpush1.msra.mxu0 %v1369
        %1519 = vmatprep.subr.mxu0 %v1366
        %1520 = vmatpush1.msra.mxu0 %v1365
        %1521 = vmatprep.subr.mxu0 %v1362
        %1522 = vmatpush1.msra.mxu0 %v1361
        %1523 = vmatprep.subr.mxu0 0.0
        %1524 = vmatpush2.msra.mxu0 0.0
        %1525 = vmatprep.subr.mxu0 0.0
        %1526 = vmatpush2.msra.mxu0 0.0
        %1527 = vmatprep.subr.mxu0 0.0
        %1528 = vmatpush2.msra.mxu0 0.0
        %1529 = vmatprep.subr.mxu0 0.0
        %1530 = vmatpush2.msra.mxu0 0.0
        %1531 = vmatprep.subr.mxu0 0.0
        %1532 = vmatpush2.msra.mxu0 0.0
        %1533 = vmatprep.subr.mxu0 0.0
        %1534 = vmatpush2.msra.mxu0 0.0
        %1535 = vmatprep.subr.mxu0 0.0
        %1536 = vmatpush2.msra.mxu0 0.0
        %1537 = vmatprep.subr.mxu0 0.0
        %1538 = vmatpush2.msra.mxu0 0.0
        %1539 = vmatprep.subr.mxu0 0.0
        %1540 = vmatpush2.msra.mxu0 0.0
        %1541 = vmatprep.subr.mxu0 0.0
        %1542 = vmatpush2.msra.mxu0 0.0
        %1543 = vmatprep.subr.mxu0 0.0
        %1544 = vmatpush2.msra.mxu0 0.0
        %1545 = vmatprep.subr.mxu0 0.0
        %1546 = vmatpush2.msra.mxu0 0.0
        %1547 = vmatprep.subr.mxu0 0.0
        %1548 = vmatpush2.msra.mxu0 0.0
        %1549 = vmatprep.subr.mxu0 0.0
        %1550 = vmatpush2.msra.mxu0 0.0
        %1551 = vmatprep.subr.mxu0 0.0
        %1552 = vmatpush2.msra.mxu0 0.0
        %1553 = vmatprep.subr.mxu0 0.0
        %1554 = vmatpush2.msra.mxu0 0.0
        %1555 = vmatprep.mubr.f32.mxu0 0.0
        %1556 = vmatmul.mubr.f32.gmra.mxu0 %v1480
        %v1557 = vpop.f32.mrf.mxu0
        %v1558 = vadd.f32 %v1457, %v1557
        %v1559 = vpop.f32.mrf.mxu0
        %v1560 = vadd.f32 %v1459, %v1559
        %1561 = vmatprep.mubr.f32.mxu0 0.0
        %1562 = vmatmul.mubr.f32.gmra.mxu0 %v1483
        %v1563 = vpop.f32.mrf.mxu0
        %v1564 = vadd.f32 %v1463, %v1563
        %v1565 = vpop.f32.mrf.mxu0
        %v1566 = vadd.f32 %v1465, %v1565
        %1567 = vmatprep.mubr.f32.mxu0 0.0
        %1568 = vmatmul.mubr.f32.gmra.mxu0 %v1486
        %v1569 = vpop.f32.mrf.mxu0
        %v1570 = vadd.f32 %v1469, %v1569
        %v1571 = vpop.f32.mrf.mxu0
        %v1572 = vadd.f32 %v1471, %v1571
        %1573 = vmatprep.mubr.f32.mxu0 0.0
        %1574 = vmatmul.mubr.f32.gmra.mxu0 %v1489
        %v1575 = vpop.f32.mrf.mxu0
        %v1576 = vadd.f32 %v1475, %v1575
        %v1577 = vpop.f32.mrf.mxu0
        %v1578 = vadd.f32 %v1477, %v1577
        %1579 = vdwg.mxu0
        %v1581 = vlaneseq
        %v1582 = vshrl.u32 %v1581, 7
        %v1583 = vsub.s32 0, %v1582
        %v1584 = vrot.slane %v1161, %v1583
        %v1585 = vlaneseq
        %v1586 = vshrl.u32 %v1585, 7
        %v1587 = vsub.s32 1, %v1586
        %v1588 = vrot.slane %v1161, %v1587
        %v1591 = vadd.f32 %v1558, %v1584
        %v1592 = vadd.f32 %v1560, %v1588
        %v1593 = vadd.f32 %v1564, %v1584
        %v1594 = vadd.f32 %v1566, %v1588
        %v1595 = vadd.f32 %v1570, %v1584
        %v1596 = vadd.f32 %v1572, %v1588
        %v1597 = vadd.f32 %v1576, %v1584
        %v1598 = vadd.f32 %v1578, %v1588
        %v1599 = vxor.u32 %v1591, 2147483648
        %v1600 = vxor.u32 %v1593, 2147483648
        %v1601 = vxor.u32 %v1595, 2147483648
        %v1602 = vxor.u32 %v1597, 2147483648
        %v1603 = vmul.f32 %v1599, 1.442695
        %v1604 = vpow.pop %v1603
        %v1605 = vmul.f32 %v1600, 1.442695
        %v1606 = vpow.pop %v1605
        %v1607 = vmul.f32 %v1601, 1.442695
        %v1608 = vpow.pop %v1607
        %v1609 = vmul.f32 %v1602, 1.442695
        %v1610 = vpow.pop %v1609
        %v1611 = vadd.f32 %v1604, 1.0
        %v1612 = vadd.f32 %v1606, 1.0
        %v1613 = vadd.f32 %v1608, 1.0
        %v1614 = vadd.f32 %v1610, 1.0
        %v1615 = vrcp.pop %v1611
        %v1616 = vmul.f32 1.0, %v1615
        %v1617 = vrcp.pop %v1612
        %v1618 = vmul.f32 1.0, %v1617
        %v1619 = vrcp.pop %v1613
        %v1620 = vmul.f32 1.0, %v1619
        %v1621 = vrcp.pop %v1614
        %v1622 = vmul.f32 1.0, %v1621
        %v1623 = vxor.u32 %v1592, 2147483648
        %v1624 = vxor.u32 %v1594, 2147483648
        %v1625 = vxor.u32 %v1596, 2147483648
        %v1626 = vxor.u32 %v1598, 2147483648
        %v1627 = vmul.f32 %v1623, 1.442695
        %v1628 = vpow.pop %v1627
        %v1629 = vmul.f32 %v1624, 1.442695
        %v1630 = vpow.pop %v1629
        %v1631 = vmul.f32 %v1625, 1.442695
        %v1632 = vpow.pop %v1631
        %v1633 = vmul.f32 %v1626, 1.442695
        %v1634 = vpow.pop %v1633
        %v1635 = vadd.f32 %v1628, 1.0
        %v1636 = vadd.f32 %v1630, 1.0
        %v1637 = vadd.f32 %v1632, 1.0
        %v1638 = vadd.f32 %v1634, 1.0
        %v1639 = vrcp.pop %v1635
        %v1640 = vmul.f32 1.0, %v1639
        %v1641 = vrcp.pop %v1636
        %v1642 = vmul.f32 1.0, %v1641
        %v1643 = vrcp.pop %v1637
        %v1644 = vmul.f32 1.0, %v1643
        %v1645 = vrcp.pop %v1638
        %v1646 = vmul.f32 1.0, %v1645
        %v1647 = vld [vmem:[#allocation4] sm:$0xff]
        %v1648 = vld [vmem:[#allocation4 + $0x8] sm:$0xff]
        %v1649 = vld [vmem:[#allocation4 + $0x10] sm:$0xff]
        %v1650 = vld [vmem:[#allocation4 + $0x18] sm:$0xff]
        %v1651 = vld [vmem:[#allocation4 + $0x20] sm:$0xff]
        %v1652 = vld [vmem:[#allocation4 + $0x28] sm:$0xff]
        %v1653 = vld [vmem:[#allocation4 + $0x30] sm:$0xff]
        %v1654 = vld [vmem:[#allocation4 + $0x38] sm:$0xff]
        %v1655 = vmul.f32 %v1640, %v1163
        %v1656 = vmul.f32 %v1642, %v1164
        %v1657 = vmul.f32 %v1644, %v1165
        %v1658 = vmul.f32 %v1646, %v1166
        %1659 = vmatprep.subr.mxu0 %v1160
        %1660 = vmatpush1.msra.mxu0 %v1159
        %1661 = vmatprep.subr.mxu0 %v1158
        %1662 = vmatpush1.msra.mxu0 %v1157
        %1663 = vmatprep.subr.mxu0 %v1156
        %1664 = vmatpush1.msra.mxu0 %v1155
        %1665 = vmatprep.subr.mxu0 %v1154
        %1666 = vmatpush1.msra.mxu0 %v1153
        %1667 = vmatprep.subr.mxu0 %v1152
        %1668 = vmatpush1.msra.mxu0 %v1151
        %1669 = vmatprep.subr.mxu0 %v1150
        %1670 = vmatpush1.msra.mxu0 %v1149
        %1671 = vmatprep.subr.mxu0 %v1148
        %1672 = vmatpush1.msra.mxu0 %v1147
        %1673 = vmatprep.subr.mxu0 %v1146
        %1674 = vmatpush1.msra.mxu0 %v1145
        %1675 = vmatprep.subr.mxu0 %v1144
        %1676 = vmatpush1.msra.mxu0 %v1143
        %1677 = vmatprep.subr.mxu0 %v1142
        %1678 = vmatpush1.msra.mxu0 %v1141
        %1679 = vmatprep.subr.mxu0 %v1140
        %1680 = vmatpush1.msra.mxu0 %v1139
        %1681 = vmatprep.subr.mxu0 %v1138
        %1682 = vmatpush1.msra.mxu0 %v1137
        %1683 = vmatprep.subr.mxu0 %v1136
        %1684 = vmatpush1.msra.mxu0 %v1135
        %1685 = vmatprep.subr.mxu0 %v1134
        %1686 = vmatpush1.msra.mxu0 %v1133
        %1687 = vmatprep.subr.mxu0 %v1132
        %1688 = vmatpush1.msra.mxu0 %v1131
        %1689 = vmatprep.subr.mxu0 %v1130
        %1690 = vmatpush1.msra.mxu0 %v1129
        %1691 = vmatprep.subr.mxu0 0.0
        %1692 = vmatpush2.msra.mxu0 0.0
        %1693 = vmatprep.subr.mxu0 0.0
        %1694 = vmatpush2.msra.mxu0 0.0
        %1695 = vmatprep.subr.mxu0 0.0
        %1696 = vmatpush2.msra.mxu0 0.0
        %1697 = vmatprep.subr.mxu0 0.0
        %1698 = vmatpush2.msra.mxu0 0.0
        %1699 = vmatprep.subr.mxu0 0.0
        %1700 = vmatpush2.msra.mxu0 0.0
        %1701 = vmatprep.subr.mxu0 0.0
        %1702 = vmatpush2.msra.mxu0 0.0
        %1703 = vmatprep.subr.mxu0 0.0
        %1704 = vmatpush2.msra.mxu0 0.0
        %1705 = vmatprep.subr.mxu0 0.0
        %1706 = vmatpush2.msra.mxu0 0.0
        %1707 = vmatprep.subr.mxu0 0.0
        %1708 = vmatpush2.msra.mxu0 0.0
        %1709 = vmatprep.subr.mxu0 0.0
        %1710 = vmatpush2.msra.mxu0 0.0
        %1711 = vmatprep.subr.mxu0 0.0
        %1712 = vmatpush2.msra.mxu0 0.0
        %1713 = vmatprep.subr.mxu0 0.0
        %1714 = vmatpush2.msra.mxu0 0.0
        %1715 = vmatprep.subr.mxu0 0.0
        %1716 = vmatpush2.msra.mxu0 0.0
        %1717 = vmatprep.subr.mxu0 0.0
        %1718 = vmatpush2.msra.mxu0 0.0
        %1719 = vmatprep.subr.mxu0 0.0
        %1720 = vmatpush2.msra.mxu0 0.0
        %1721 = vmatprep.subr.mxu0 0.0
        %1722 = vmatpush2.msra.mxu0 0.0
        %1723 = vmatprep.mubr.f32.mxu0 0.0
        %1724 = vmatmul.mubr.f32.gmra.mxu0 %v1655
        %v1725 = vpop.f32.mrf.mxu0
        %v1726 = vadd.f32 0.0, %v1725
        %v1727 = vpop.f32.mrf.mxu0
        %v1728 = vadd.f32 0.0, %v1727
        %1729 = vmatprep.mubr.f32.mxu0 0.0
        %1730 = vmatmul.mubr.f32.gmra.mxu0 %v1656
        %v1731 = vpop.f32.mrf.mxu0
        %v1732 = vadd.f32 0.0, %v1731
        %v1733 = vpop.f32.mrf.mxu0
        %v1734 = vadd.f32 0.0, %v1733
        %1735 = vmatprep.mubr.f32.mxu0 0.0
        %1736 = vmatmul.mubr.f32.gmra.mxu0 %v1657
        %v1737 = vpop.f32.mrf.mxu0
        %v1738 = vadd.f32 0.0, %v1737
        %v1739 = vpop.f32.mrf.mxu0
        %v1740 = vadd.f32 0.0, %v1739
        %1741 = vmatprep.mubr.f32.mxu0 0.0
        %1742 = vmatmul.mubr.f32.gmra.mxu0 %v1658
        %v1743 = vpop.f32.mrf.mxu0
        %v1744 = vadd.f32 0.0, %v1743
        %v1745 = vpop.f32.mrf.mxu0
        %v1746 = vadd.f32 0.0, %v1745
        %1747 = vdwg.mxu0
        %v1748 = vadd.f32 %v1647, %v1726
        %v1749 = vadd.f32 %v1648, %v1728
        %v1750 = vadd.f32 %v1649, %v1732
        %v1751 = vadd.f32 %v1650, %v1734
        %v1752 = vadd.f32 %v1651, %v1738
        %v1753 = vadd.f32 %v1652, %v1740
        %v1754 = vadd.f32 %v1653, %v1744
        %v1755 = vadd.f32 %v1654, %v1746
        %1756 = vmatprep.subr.mxu0 0.0
        %1757 = vmatpush1.msra.mxu0 0.0
        %1758 = vmatprep.subr.mxu0 0.0
        %1759 = vmatpush1.msra.mxu0 0.0
        %1760 = vmatprep.subr.mxu0 0.0
        %1761 = vmatpush1.msra.mxu0 0.0
        %1762 = vmatprep.subr.mxu0 0.0
        %1763 = vmatpush1.msra.mxu0 0.0
        %1764 = vmatprep.subr.mxu0 0.0
        %1765 = vmatpush1.msra.mxu0 0.0
        %1766 = vmatprep.subr.mxu0 0.0
        %1767 = vmatpush1.msra.mxu0 0.0
        %1768 = vmatprep.subr.mxu0 0.0
        %1769 = vmatpush1.msra.mxu0 0.0
        %1770 = vmatprep.subr.mxu0 0.0
        %1771 = vmatpush1.msra.mxu0 0.0
        %1772 = vmatprep.subr.mxu0 0.0
        %1773 = vmatpush1.msra.mxu0 0.0
        %1774 = vmatprep.subr.mxu0 0.0
        %1775 = vmatpush1.msra.mxu0 0.0
        %1776 = vmatprep.subr.mxu0 0.0
        %1777 = vmatpush1.msra.mxu0 0.0
        %1778 = vmatprep.subr.mxu0 0.0
        %1779 = vmatpush1.msra.mxu0 0.0
        %1780 = vmatprep.subr.mxu0 0.0
        %1781 = vmatpush1.msra.mxu0 %v1755
        %1782 = vmatprep.subr.mxu0 0.0
        %1783 = vmatpush1.msra.mxu0 %v1753
        %1784 = vmatprep.subr.mxu0 0.0
        %1785 = vmatpush1.msra.mxu0 %v1751
        %1786 = vmatprep.subr.mxu0 0.0
        %1787 = vmatpush1.msra.mxu0 %v1749
        %1788 = vmatprep.subr.mxu0 0.0
        %1789 = vmatpush2.msra.mxu0 0.0
        %1790 = vmatprep.subr.mxu0 0.0
        %1791 = vmatpush2.msra.mxu0 0.0
        %1792 = vmatprep.subr.mxu0 0.0
        %1793 = vmatpush2.msra.mxu0 0.0
        %1794 = vmatprep.subr.mxu0 0.0
        %1795 = vmatpush2.msra.mxu0 0.0
        %1796 = vmatprep.subr.mxu0 0.0
        %1797 = vmatpush2.msra.mxu0 0.0
        %1798 = vmatprep.subr.mxu0 0.0
        %1799 = vmatpush2.msra.mxu0 0.0
        %1800 = vmatprep.subr.mxu0 0.0
        %1801 = vmatpush2.msra.mxu0 0.0
        %1802 = vmatprep.subr.mxu0 0.0
        %1803 = vmatpush2.msra.mxu0 0.0
        %1804 = vmatprep.subr.mxu0 0.0
        %1805 = vmatpush2.msra.mxu0 0.0
        %1806 = vmatprep.subr.mxu0 0.0
        %1807 = vmatpush2.msra.mxu0 0.0
        %1808 = vmatprep.subr.mxu0 0.0
        %1809 = vmatpush2.msra.mxu0 0.0
        %1810 = vmatprep.subr.mxu0 0.0
        %1811 = vmatpush2.msra.mxu0 0.0
        %1812 = vmatprep.subr.mxu0 0.0
        %1813 = vmatpush2.msra.mxu0 0.0
        %1814 = vmatprep.subr.mxu0 0.0
        %1815 = vmatpush2.msra.mxu0 0.0
        %1816 = vmatprep.subr.mxu0 0.0
        %1817 = vmatpush2.msra.mxu0 0.0
        %1818 = vmatprep.subr.mxu0 0.0
        %1819 = vmatpush2.msra.mxu0 0.0
        %1820 = vmatprep.mubr.f32.mxu0 0.0
        %1821 = vmatmul.mubr.f32.gmra.mxu0 %v1379
        %v1822 = vpop.f32.mrf.mxu0
        %v1823 = vadd.f32 0.0, %v1822
        %v1824 = vpop.f32.mrf.mxu0
        %1825 = vmatprep.mubr.f32.mxu0 0.0
        %1826 = vmatmul.mubr.f32.gmra.mxu0 %v1382
        %v1827 = vpop.f32.mrf.mxu0
        %v1828 = vadd.f32 0.0, %v1827
        %v1829 = vpop.f32.mrf.mxu0
        %1830 = vmatprep.mubr.f32.mxu0 0.0
        %1831 = vmatmul.mubr.f32.gmra.mxu0 %v1385
        %v1832 = vpop.f32.mrf.mxu0
        %v1833 = vadd.f32 0.0, %v1832
        %v1834 = vpop.f32.mrf.mxu0
        %1835 = vmatprep.mubr.f32.mxu0 0.0
        %1836 = vmatmul.mubr.f32.gmra.mxu0 %v1388
        %v1837 = vpop.f32.mrf.mxu0
        %v1838 = vadd.f32 0.0, %v1837
        %v1839 = vpop.f32.mrf.mxu0
        %1840 = vdwg.mxu0
        %1841 = vmatprep.subr.mxu0 0.0
        %1842 = vmatpush1.msra.mxu0 0.0
        %1843 = vmatprep.subr.mxu0 0.0
        %1844 = vmatpush1.msra.mxu0 0.0
        %1845 = vmatprep.subr.mxu0 0.0
        %1846 = vmatpush1.msra.mxu0 0.0
        %1847 = vmatprep.subr.mxu0 0.0
        %1848 = vmatpush1.msra.mxu0 0.0
        %1849 = vmatprep.subr.mxu0 0.0
        %1850 = vmatpush1.msra.mxu0 0.0
        %1851 = vmatprep.subr.mxu0 0.0
        %1852 = vmatpush1.msra.mxu0 0.0
        %1853 = vmatprep.subr.mxu0 0.0
        %1854 = vmatpush1.msra.mxu0 0.0
        %1855 = vmatprep.subr.mxu0 0.0
        %1856 = vmatpush1.msra.mxu0 0.0
        %1857 = vmatprep.subr.mxu0 0.0
        %1858 = vmatpush1.msra.mxu0 0.0
        %1859 = vmatprep.subr.mxu0 0.0
        %1860 = vmatpush1.msra.mxu0 0.0
        %1861 = vmatprep.subr.mxu0 0.0
        %1862 = vmatpush1.msra.mxu0 0.0
        %1863 = vmatprep.subr.mxu0 0.0
        %1864 = vmatpush1.msra.mxu0 0.0
        %1865 = vmatprep.subr.mxu0 0.0
        %1866 = vmatpush1.msra.mxu0 %v1754
        %1867 = vmatprep.subr.mxu0 0.0
        %1868 = vmatpush1.msra.mxu0 %v1752
        %1869 = vmatprep.subr.mxu0 0.0
        %1870 = vmatpush1.msra.mxu0 %v1750
        %1871 = vmatprep.subr.mxu0 0.0
        %1872 = vmatpush1.msra.mxu0 %v1748
        %1873 = vmatprep.subr.mxu0 0.0
        %1874 = vmatpush2.msra.mxu0 0.0
        %1875 = vmatprep.subr.mxu0 0.0
        %1876 = vmatpush2.msra.mxu0 0.0
        %1877 = vmatprep.subr.mxu0 0.0
        %1878 = vmatpush2.msra.mxu0 0.0
        %1879 = vmatprep.subr.mxu0 0.0
        %1880 = vmatpush2.msra.mxu0 0.0
        %1881 = vmatprep.subr.mxu0 0.0
        %1882 = vmatpush2.msra.mxu0 0.0
        %1883 = vmatprep.subr.mxu0 0.0
        %1884 = vmatpush2.msra.mxu0 0.0
        %1885 = vmatprep.subr.mxu0 0.0
        %1886 = vmatpush2.msra.mxu0 0.0
        %1887 = vmatprep.subr.mxu0 0.0
        %1888 = vmatpush2.msra.mxu0 0.0
        %1889 = vmatprep.subr.mxu0 0.0
        %1890 = vmatpush2.msra.mxu0 0.0
        %1891 = vmatprep.subr.mxu0 0.0
        %1892 = vmatpush2.msra.mxu0 0.0
        %1893 = vmatprep.subr.mxu0 0.0
        %1894 = vmatpush2.msra.mxu0 0.0
        %1895 = vmatprep.subr.mxu0 0.0
        %1896 = vmatpush2.msra.mxu0 0.0
        %1897 = vmatprep.subr.mxu0 0.0
        %1898 = vmatpush2.msra.mxu0 0.0
        %1899 = vmatprep.subr.mxu0 0.0
        %1900 = vmatpush2.msra.mxu0 0.0
        %1901 = vmatprep.subr.mxu0 0.0
        %1902 = vmatpush2.msra.mxu0 0.0
        %1903 = vmatprep.subr.mxu0 0.0
        %1904 = vmatpush2.msra.mxu0 0.0
        %1905 = vmatprep.mubr.f32.mxu0 0.0
        %1906 = vmatmul.mubr.f32.gmra.mxu0 %v1480
        %v1907 = vpop.f32.mrf.mxu0
        %v1908 = vadd.f32 %v1823, %v1907
        %v1909 = vpop.f32.mrf.mxu0
        %1910 = vmatprep.mubr.f32.mxu0 0.0
        %1911 = vmatmul.mubr.f32.gmra.mxu0 %v1483
        %v1912 = vpop.f32.mrf.mxu0
        %v1913 = vadd.f32 %v1828, %v1912
        %v1914 = vpop.f32.mrf.mxu0
        %1915 = vmatprep.mubr.f32.mxu0 0.0
        %1916 = vmatmul.mubr.f32.gmra.mxu0 %v1486
        %v1917 = vpop.f32.mrf.mxu0
        %v1918 = vadd.f32 %v1833, %v1917
        %v1919 = vpop.f32.mrf.mxu0
        %1920 = vmatprep.mubr.f32.mxu0 0.0
        %1921 = vmatmul.mubr.f32.gmra.mxu0 %v1489
        %v1922 = vpop.f32.mrf.mxu0
        %v1923 = vadd.f32 %v1838, %v1922
        %v1924 = vpop.f32.mrf.mxu0
        %1925 = vdwg.mxu0
        %v1927 = vlaneseq
        %v1928 = vshrl.u32 %v1927, 7
        %v1929 = vsub.s32 0, %v1928
        %v1930 = vrot.slane %v1162, %v1929
        %v1932 = vadd.f32 %v1908, %v1930
        %v1933 = vadd.f32 %v1913, %v1930
        %v1934 = vadd.f32 %v1918, %v1930
        %v1935 = vadd.f32 %v1923, %v1930
        %v1936 = vtanh.pop %v1932
        %v1937 = vtanh.pop %v1933
        %v1938 = vtanh.pop %v1934
        %v1939 = vtanh.pop %v1935
        %v1940 = vsub.f32 1.0, %v1616
        %v1941 = vsub.f32 1.0, %v1618
        %v1942 = vsub.f32 1.0, %v1620
        %v1943 = vsub.f32 1.0, %v1622
        %v1944 = vmul.f32 %v1940, %v1163
        %v1945 = vmul.f32 %v1941, %v1164
        %v1946 = vmul.f32 %v1942, %v1165
        %v1947 = vmul.f32 %v1943, %v1166
        %v1948 = vmul.f32 %v1616, %v1936
        %v1949 = vmul.f32 %v1618, %v1937
        %v1950 = vmul.f32 %v1620, %v1938
        %v1951 = vmul.f32 %v1622, %v1939
        %v1952 = vadd.f32 %v1944, %v1948
        %v1953 = vadd.f32 %v1945, %v1949
        %v1954 = vadd.f32 %v1946, %v1950
        %v1955 = vadd.f32 %v1947, %v1951
        %1956 = vst [vmem:[%s370] sm:$0xff] %v1952
        %1957 = vst [vmem:[%s370 + $0x8] sm:$0xff] %v1953
        %1958 = vst [vmem:[%s370 + $0x10] sm:$0xff] %v1954
        %1959 = vst [vmem:[%s370 + $0x18] sm:$0xff] %v1955
        %s1960 = scalar_lea.vmem [#allocation3], 128
        %v1961 = vld [vmem:[%s1960] sm:$0xff]
        %v1962 = vld [vmem:[%s1960 + $0x8] sm:$0xff]
        %v1963 = vld [vmem:[%s1960 + $0x10] sm:$0xff]
        %v1964 = vld [vmem:[%s1960 + $0x18] sm:$0xff]
        %v1965 = vld [vmem:[%s1960 + $0x20] sm:$0xff]
        %v1966 = vld [vmem:[%s1960 + $0x28] sm:$0xff]
        %v1967 = vld [vmem:[%s1960 + $0x30] sm:$0xff]
        %v1968 = vld [vmem:[%s1960 + $0x38] sm:$0xff]
        %v1969 = vld [vmem:[%s1960 + $0x40] sm:$0xff]
        %v1970 = vld [vmem:[%s1960 + $0x48] sm:$0xff]
        %v1971 = vld [vmem:[%s1960 + $0x50] sm:$0xff]
        %v1972 = vld [vmem:[%s1960 + $0x58] sm:$0xff]
        %v1973 = vld [vmem:[%s1960 + $0x60] sm:$0xff]
        %v1974 = vld [vmem:[%s1960 + $0x68] sm:$0xff]
        %v1975 = vld [vmem:[%s1960 + $0x70] sm:$0xff]
        %v1976 = vld [vmem:[%s1960 + $0x78] sm:$0xff]
        %1977 = vmatprep.subr.mxu0 %v1126
        %1978 = vmatpush1.msra.mxu0 %v1125
        %1979 = vmatprep.subr.mxu0 %v1122
        %1980 = vmatpush1.msra.mxu0 %v1121
        %1981 = vmatprep.subr.mxu0 %v1118
        %1982 = vmatpush1.msra.mxu0 %v1117
        %1983 = vmatprep.subr.mxu0 %v1114
        %1984 = vmatpush1.msra.mxu0 %v1113
        %1985 = vmatprep.subr.mxu0 %v1110
        %1986 = vmatpush1.msra.mxu0 %v1109
        %1987 = vmatprep.subr.mxu0 %v1106
        %1988 = vmatpush1.msra.mxu0 %v1105
        %1989 = vmatprep.subr.mxu0 %v1102
        %1990 = vmatpush1.msra.mxu0 %v1101
        %1991 = vmatprep.subr.mxu0 %v1098
        %1992 = vmatpush1.msra.mxu0 %v1097
        %1993 = vmatprep.subr.mxu0 %v1094
        %1994 = vmatpush1.msra.mxu0 %v1093
        %1995 = vmatprep.subr.mxu0 %v1090
        %1996 = vmatpush1.msra.mxu0 %v1089
        %1997 = vmatprep.subr.mxu0 %v1086
        %1998 = vmatpush1.msra.mxu0 %v1085
        %1999 = vmatprep.subr.mxu0 %v1082
        %2000 = vmatpush1.msra.mxu0 %v1081
        %2001 = vmatprep.subr.mxu0 %v1078
        %2002 = vmatpush1.msra.mxu0 %v1077
        %2003 = vmatprep.subr.mxu0 %v1074
        %2004 = vmatpush1.msra.mxu0 %v1073
        %2005 = vmatprep.subr.mxu0 %v1070
        %2006 = vmatpush1.msra.mxu0 %v1069
        %2007 = vmatprep.subr.mxu0 %v1066
        %2008 = vmatpush1.msra.mxu0 %v1065
        %2009 = vmatprep.subr.mxu0 0.0
        %2010 = vmatpush2.msra.mxu0 0.0
        %2011 = vmatprep.subr.mxu0 0.0
        %2012 = vmatpush2.msra.mxu0 0.0
        %2013 = vmatprep.subr.mxu0 0.0
        %2014 = vmatpush2.msra.mxu0 0.0
        %2015 = vmatprep.subr.mxu0 0.0
        %2016 = vmatpush2.msra.mxu0 0.0
        %2017 = vmatprep.subr.mxu0 0.0
        %2018 = vmatpush2.msra.mxu0 0.0
        %2019 = vmatprep.subr.mxu0 0.0
        %2020 = vmatpush2.msra.mxu0 0.0
        %2021 = vmatprep.subr.mxu0 0.0
        %2022 = vmatpush2.msra.mxu0 0.0
        %2023 = vmatprep.subr.mxu0 0.0
        %2024 = vmatpush2.msra.mxu0 0.0
        %2025 = vmatprep.subr.mxu0 0.0
        %2026 = vmatpush2.msra.mxu0 0.0
        %2027 = vmatprep.subr.mxu0 0.0
        %2028 = vmatpush2.msra.mxu0 0.0
        %2029 = vmatprep.subr.mxu0 0.0
        %2030 = vmatpush2.msra.mxu0 0.0
        %2031 = vmatprep.subr.mxu0 0.0
        %2032 = vmatpush2.msra.mxu0 0.0
        %2033 = vmatprep.subr.mxu0 0.0
        %2034 = vmatpush2.msra.mxu0 0.0
        %2035 = vmatprep.subr.mxu0 0.0
        %2036 = vmatpush2.msra.mxu0 0.0
        %2037 = vmatprep.subr.mxu0 0.0
        %2038 = vmatpush2.msra.mxu0 0.0
        %2039 = vmatprep.subr.mxu0 0.0
        %2040 = vmatpush2.msra.mxu0 0.0
        %2041 = vmatprep.mubr.f32.mxu0 0.0
        %2042 = vmatmul.mubr.f32.gmra.mxu0 %v1952
        %v2043 = vpop.f32.mrf.mxu0
        %v2044 = vadd.f32 0.0, %v2043
        %v2045 = vpop.f32.mrf.mxu0
        %v2046 = vadd.f32 0.0, %v2045
        %2047 = vmatprep.mubr.f32.mxu0 0.0
        %2048 = vmatmul.mubr.f32.gmra.mxu0 %v1953
        %v2049 = vpop.f32.mrf.mxu0
        %v2050 = vadd.f32 0.0, %v2049
        %v2051 = vpop.f32.mrf.mxu0
        %v2052 = vadd.f32 0.0, %v2051
        %2053 = vmatprep.mubr.f32.mxu0 0.0
        %2054 = vmatmul.mubr.f32.gmra.mxu0 %v1954
        %v2055 = vpop.f32.mrf.mxu0
        %v2056 = vadd.f32 0.0, %v2055
        %v2057 = vpop.f32.mrf.mxu0
        %v2058 = vadd.f32 0.0, %v2057
        %2059 = vmatprep.mubr.f32.mxu0 0.0
        %2060 = vmatmul.mubr.f32.gmra.mxu0 %v1955
        %v2061 = vpop.f32.mrf.mxu0
        %v2062 = vadd.f32 0.0, %v2061
        %v2063 = vpop.f32.mrf.mxu0
        %v2064 = vadd.f32 0.0, %v2063
        %2065 = vdwg.mxu0
        %2066 = vmatprep.subr.mxu0 %v1128
        %2067 = vmatpush1.msra.mxu0 %v1127
        %2068 = vmatprep.subr.mxu0 %v1124
        %2069 = vmatpush1.msra.mxu0 %v1123
        %2070 = vmatprep.subr.mxu0 %v1120
        %2071 = vmatpush1.msra.mxu0 %v1119
        %2072 = vmatprep.subr.mxu0 %v1116
        %2073 = vmatpush1.msra.mxu0 %v1115
        %2074 = vmatprep.subr.mxu0 %v1112
        %2075 = vmatpush1.msra.mxu0 %v1111
        %2076 = vmatprep.subr.mxu0 %v1108
        %2077 = vmatpush1.msra.mxu0 %v1107
        %2078 = vmatprep.subr.mxu0 %v1104
        %2079 = vmatpush1.msra.mxu0 %v1103
        %2080 = vmatprep.subr.mxu0 %v1100
        %2081 = vmatpush1.msra.mxu0 %v1099
        %2082 = vmatprep.subr.mxu0 %v1096
        %2083 = vmatpush1.msra.mxu0 %v1095
        %2084 = vmatprep.subr.mxu0 %v1092
        %2085 = vmatpush1.msra.mxu0 %v1091
        %2086 = vmatprep.subr.mxu0 %v1088
        %2087 = vmatpush1.msra.mxu0 %v1087
        %2088 = vmatprep.subr.mxu0 %v1084
        %2089 = vmatpush1.msra.mxu0 %v1083
        %2090 = vmatprep.subr.mxu0 %v1080
        %2091 = vmatpush1.msra.mxu0 %v1079
        %2092 = vmatprep.subr.mxu0 %v1076
        %2093 = vmatpush1.msra.mxu0 %v1075
        %2094 = vmatprep.subr.mxu0 %v1072
        %2095 = vmatpush1.msra.mxu0 %v1071
        %2096 = vmatprep.subr.mxu0 %v1068
        %2097 = vmatpush1.msra.mxu0 %v1067
        %2098 = vmatprep.subr.mxu0 0.0
        %2099 = vmatpush2.msra.mxu0 0.0
        %2100 = vmatprep.subr.mxu0 0.0
        %2101 = vmatpush2.msra.mxu0 0.0
        %2102 = vmatprep.subr.mxu0 0.0
        %2103 = vmatpush2.msra.mxu0 0.0
        %2104 = vmatprep.subr.mxu0 0.0
        %2105 = vmatpush2.msra.mxu0 0.0
        %2106 = vmatprep.subr.mxu0 0.0
        %2107 = vmatpush2.msra.mxu0 0.0
        %2108 = vmatprep.subr.mxu0 0.0
        %2109 = vmatpush2.msra.mxu0 0.0
        %2110 = vmatprep.subr.mxu0 0.0
        %2111 = vmatpush2.msra.mxu0 0.0
        %2112 = vmatprep.subr.mxu0 0.0
        %2113 = vmatpush2.msra.mxu0 0.0
        %2114 = vmatprep.subr.mxu0 0.0
        %2115 = vmatpush2.msra.mxu0 0.0
        %2116 = vmatprep.subr.mxu0 0.0
        %2117 = vmatpush2.msra.mxu0 0.0
        %2118 = vmatprep.subr.mxu0 0.0
        %2119 = vmatpush2.msra.mxu0 0.0
        %2120 = vmatprep.subr.mxu0 0.0
        %2121 = vmatpush2.msra.mxu0 0.0
        %2122 = vmatprep.subr.mxu0 0.0
        %2123 = vmatpush2.msra.mxu0 0.0
        %2124 = vmatprep.subr.mxu0 0.0
        %2125 = vmatpush2.msra.mxu0 0.0
        %2126 = vmatprep.subr.mxu0 0.0
        %2127 = vmatpush2.msra.mxu0 0.0
        %2128 = vmatprep.subr.mxu0 0.0
        %2129 = vmatpush2.msra.mxu0 0.0
        %2130 = vmatprep.mubr.f32.mxu0 0.0
        %2131 = vmatmul.mubr.f32.gmra.mxu0 %v1952
        %v2132 = vpop.f32.mrf.mxu0
        %v2133 = vadd.f32 0.0, %v2132
        %v2134 = vpop.f32.mrf.mxu0
        %v2135 = vadd.f32 0.0, %v2134
        %2136 = vmatprep.mubr.f32.mxu0 0.0
        %2137 = vmatmul.mubr.f32.gmra.mxu0 %v1953
        %v2138 = vpop.f32.mrf.mxu0
        %v2139 = vadd.f32 0.0, %v2138
        %v2140 = vpop.f32.mrf.mxu0
        %v2141 = vadd.f32 0.0, %v2140
        %2142 = vmatprep.mubr.f32.mxu0 0.0
        %2143 = vmatmul.mubr.f32.gmra.mxu0 %v1954
        %v2144 = vpop.f32.mrf.mxu0
        %v2145 = vadd.f32 0.0, %v2144
        %v2146 = vpop.f32.mrf.mxu0
        %v2147 = vadd.f32 0.0, %v2146
        %2148 = vmatprep.mubr.f32.mxu0 0.0
        %2149 = vmatmul.mubr.f32.gmra.mxu0 %v1955
        %v2150 = vpop.f32.mrf.mxu0
        %v2151 = vadd.f32 0.0, %v2150
        %v2152 = vpop.f32.mrf.mxu0
        %v2153 = vadd.f32 0.0, %v2152
        %2154 = vdwg.mxu0
        %v2155 = vadd.f32 %v1961, %v2044
        %v2156 = vadd.f32 %v1962, %v2046
        %v2157 = vadd.f32 %v1963, %v2133
        %v2158 = vadd.f32 %v1964, %v2135
        %v2159 = vadd.f32 %v1965, %v2050
        %v2160 = vadd.f32 %v1966, %v2052
        %v2161 = vadd.f32 %v1967, %v2139
        %v2162 = vadd.f32 %v1968, %v2141
        %v2163 = vadd.f32 %v1969, %v2056
        %v2164 = vadd.f32 %v1970, %v2058
        %v2165 = vadd.f32 %v1971, %v2145
        %v2166 = vadd.f32 %v1972, %v2147
        %v2167 = vadd.f32 %v1973, %v2062
        %v2168 = vadd.f32 %v1974, %v2064
        %v2169 = vadd.f32 %v1975, %v2151
        %v2170 = vadd.f32 %v1976, %v2153
        %2171 = vmatprep.subr.mxu0 0.0
        %2172 = vmatpush1.msra.mxu0 0.0
        %2173 = vmatprep.subr.mxu0 0.0
        %2174 = vmatpush1.msra.mxu0 0.0
        %2175 = vmatprep.subr.mxu0 0.0
        %2176 = vmatpush1.msra.mxu0 0.0
        %2177 = vmatprep.subr.mxu0 0.0
        %2178 = vmatpush1.msra.mxu0 0.0
        %2179 = vmatprep.subr.mxu0 0.0
        %2180 = vmatpush1.msra.mxu0 0.0
        %2181 = vmatprep.subr.mxu0 0.0
        %2182 = vmatpush1.msra.mxu0 0.0
        %2183 = vmatprep.subr.mxu0 0.0
        %2184 = vmatpush1.msra.mxu0 0.0
        %2185 = vmatprep.subr.mxu0 0.0
        %2186 = vmatpush1.msra.mxu0 0.0
        %2187 = vmatprep.subr.mxu0 0.0
        %2188 = vmatpush1.msra.mxu0 0.0
        %2189 = vmatprep.subr.mxu0 0.0
        %2190 = vmatpush1.msra.mxu0 0.0
        %2191 = vmatprep.subr.mxu0 0.0
        %2192 = vmatpush1.msra.mxu0 0.0
        %2193 = vmatprep.subr.mxu0 0.0
        %2194 = vmatpush1.msra.mxu0 0.0
        %2195 = vmatprep.subr.mxu0 %v2170
        %2196 = vmatpush1.msra.mxu0 %v2169
        %2197 = vmatprep.subr.mxu0 %v2166
        %2198 = vmatpush1.msra.mxu0 %v2165
        %2199 = vmatprep.subr.mxu0 %v2162
        %2200 = vmatpush1.msra.mxu0 %v2161
        %2201 = vmatprep.subr.mxu0 %v2158
        %2202 = vmatpush1.msra.mxu0 %v2157
        %2203 = vmatprep.subr.mxu0 0.0
        %2204 = vmatpush2.msra.mxu0 0.0
        %2205 = vmatprep.subr.mxu0 0.0
        %2206 = vmatpush2.msra.mxu0 0.0
        %2207 = vmatprep.subr.mxu0 0.0
        %2208 = vmatpush2.msra.mxu0 0.0
        %2209 = vmatprep.subr.mxu0 0.0
        %2210 = vmatpush2.msra.mxu0 0.0
        %2211 = vmatprep.subr.mxu0 0.0
        %2212 = vmatpush2.msra.mxu0 0.0
        %2213 = vmatprep.subr.mxu0 0.0
        %2214 = vmatpush2.msra.mxu0 0.0
        %2215 = vmatprep.subr.mxu0 0.0
        %2216 = vmatpush2.msra.mxu0 0.0
        %2217 = vmatprep.subr.mxu0 0.0
        %2218 = vmatpush2.msra.mxu0 0.0
        %2219 = vmatprep.subr.mxu0 0.0
        %2220 = vmatpush2.msra.mxu0 0.0
        %2221 = vmatprep.subr.mxu0 0.0
        %2222 = vmatpush2.msra.mxu0 0.0
        %2223 = vmatprep.subr.mxu0 0.0
        %2224 = vmatpush2.msra.mxu0 0.0
        %2225 = vmatprep.subr.mxu0 0.0
        %2226 = vmatpush2.msra.mxu0 0.0
        %2227 = vmatprep.subr.mxu0 0.0
        %2228 = vmatpush2.msra.mxu0 0.0
        %2229 = vmatprep.subr.mxu0 0.0
        %2230 = vmatpush2.msra.mxu0 0.0
        %2231 = vmatprep.subr.mxu0 0.0
        %2232 = vmatpush2.msra.mxu0 0.0
        %2233 = vmatprep.subr.mxu0 0.0
        %2234 = vmatpush2.msra.mxu0 0.0
        %2235 = vmatprep.mubr.f32.mxu0 0.0
        %2236 = vmatmul.mubr.f32.gmra.mxu0 %v1379
        %v2237 = vpop.f32.mrf.mxu0
        %v2238 = vadd.f32 0.0, %v2237
        %v2239 = vpop.f32.mrf.mxu0
        %v2240 = vadd.f32 0.0, %v2239
        %2241 = vmatprep.mubr.f32.mxu0 0.0
        %2242 = vmatmul.mubr.f32.gmra.mxu0 %v1382
        %v2243 = vpop.f32.mrf.mxu0
        %v2244 = vadd.f32 0.0, %v2243
        %v2245 = vpop.f32.mrf.mxu0
        %v2246 = vadd.f32 0.0, %v2245
        %2247 = vmatprep.mubr.f32.mxu0 0.0
        %2248 = vmatmul.mubr.f32.gmra.mxu0 %v1385
        %v2249 = vpop.f32.mrf.mxu0
        %v2250 = vadd.f32 0.0, %v2249
        %v2251 = vpop.f32.mrf.mxu0
        %v2252 = vadd.f32 0.0, %v2251
        %2253 = vmatprep.mubr.f32.mxu0 0.0
        %2254 = vmatmul.mubr.f32.gmra.mxu0 %v1388
        %v2255 = vpop.f32.mrf.mxu0
        %v2256 = vadd.f32 0.0, %v2255
        %v2257 = vpop.f32.mrf.mxu0
        %v2258 = vadd.f32 0.0, %v2257
        %2259 = vdwg.mxu0
        %2260 = vmatprep.subr.mxu0 0.0
        %2261 = vmatpush1.msra.mxu0 0.0
        %2262 = vmatprep.subr.mxu0 0.0
        %2263 = vmatpush1.msra.mxu0 0.0
        %2264 = vmatprep.subr.mxu0 0.0
        %2265 = vmatpush1.msra.mxu0 0.0
        %2266 = vmatprep.subr.mxu0 0.0
        %2267 = vmatpush1.msra.mxu0 0.0
        %2268 = vmatprep.subr.mxu0 0.0
        %2269 = vmatpush1.msra.mxu0 0.0
        %2270 = vmatprep.subr.mxu0 0.0
        %2271 = vmatpush1.msra.mxu0 0.0
        %2272 = vmatprep.subr.mxu0 0.0
        %2273 = vmatpush1.msra.mxu0 0.0
        %2274 = vmatprep.subr.mxu0 0.0
        %2275 = vmatpush1.msra.mxu0 0.0
        %2276 = vmatprep.subr.mxu0 0.0
        %2277 = vmatpush1.msra.mxu0 0.0
        %2278 = vmatprep.subr.mxu0 0.0
        %2279 = vmatpush1.msra.mxu0 0.0
        %2280 = vmatprep.subr.mxu0 0.0
        %2281 = vmatpush1.msra.mxu0 0.0
        %2282 = vmatprep.subr.mxu0 0.0
        %2283 = vmatpush1.msra.mxu0 0.0
        %2284 = vmatprep.subr.mxu0 %v2168
        %2285 = vmatpush1.msra.mxu0 %v2167
        %2286 = vmatprep.subr.mxu0 %v2164
        %2287 = vmatpush1.msra.mxu0 %v2163
        %2288 = vmatprep.subr.mxu0 %v2160
        %2289 = vmatpush1.msra.mxu0 %v2159
        %2290 = vmatprep.subr.mxu0 %v2156
        %2291 = vmatpush1.msra.mxu0 %v2155
        %2292 = vmatprep.subr.mxu0 0.0
        %2293 = vmatpush2.msra.mxu0 0.0
        %2294 = vmatprep.subr.mxu0 0.0
        %2295 = vmatpush2.msra.mxu0 0.0
        %2296 = vmatprep.subr.mxu0 0.0
        %2297 = vmatpush2.msra.mxu0 0.0
        %2298 = vmatprep.subr.mxu0 0.0
        %2299 = vmatpush2.msra.mxu0 0.0
        %2300 = vmatprep.subr.mxu0 0.0
        %2301 = vmatpush2.msra.mxu0 0.0
        %2302 = vmatprep.subr.mxu0 0.0
        %2303 = vmatpush2.msra.mxu0 0.0
        %2304 = vmatprep.subr.mxu0 0.0
        %2305 = vmatpush2.msra.mxu0 0.0
        %2306 = vmatprep.subr.mxu0 0.0
        %2307 = vmatpush2.msra.mxu0 0.0
        %2308 = vmatprep.subr.mxu0 0.0
        %2309 = vmatpush2.msra.mxu0 0.0
        %2310 = vmatprep.subr.mxu0 0.0
        %2311 = vmatpush2.msra.mxu0 0.0
        %2312 = vmatprep.subr.mxu0 0.0
        %2313 = vmatpush2.msra.mxu0 0.0
        %2314 = vmatprep.subr.mxu0 0.0
        %2315 = vmatpush2.msra.mxu0 0.0
        %2316 = vmatprep.subr.mxu0 0.0
        %2317 = vmatpush2.msra.mxu0 0.0
        %2318 = vmatprep.subr.mxu0 0.0
        %2319 = vmatpush2.msra.mxu0 0.0
        %2320 = vmatprep.subr.mxu0 0.0
        %2321 = vmatpush2.msra.mxu0 0.0
        %2322 = vmatprep.subr.mxu0 0.0
        %2323 = vmatpush2.msra.mxu0 0.0
        %2324 = vmatprep.mubr.f32.mxu0 0.0
        %2325 = vmatmul.mubr.f32.gmra.mxu0 %v1480
        %v2326 = vpop.f32.mrf.mxu0
        %v2327 = vadd.f32 %v2238, %v2326
        %v2328 = vpop.f32.mrf.mxu0
        %v2329 = vadd.f32 %v2240, %v2328
        %2330 = vmatprep.mubr.f32.mxu0 0.0
        %2331 = vmatmul.mubr.f32.gmra.mxu0 %v1483
        %v2332 = vpop.f32.mrf.mxu0
        %v2333 = vadd.f32 %v2244, %v2332
        %v2334 = vpop.f32.mrf.mxu0
        %v2335 = vadd.f32 %v2246, %v2334
        %2336 = vmatprep.mubr.f32.mxu0 0.0
        %2337 = vmatmul.mubr.f32.gmra.mxu0 %v1486
        %v2338 = vpop.f32.mrf.mxu0
        %v2339 = vadd.f32 %v2250, %v2338
        %v2340 = vpop.f32.mrf.mxu0
        %v2341 = vadd.f32 %v2252, %v2340
        %2342 = vmatprep.mubr.f32.mxu0 0.0
        %2343 = vmatmul.mubr.f32.gmra.mxu0 %v1489
        %v2344 = vpop.f32.mrf.mxu0
        %v2345 = vadd.f32 %v2256, %v2344
        %v2346 = vpop.f32.mrf.mxu0
        %v2347 = vadd.f32 %v2258, %v2346
        %2348 = vdwg.mxu0
        %v2349 = vadd.f32 %v2327, %v1584
        %v2350 = vadd.f32 %v2329, %v1588
        %v2351 = vadd.f32 %v2333, %v1584
        %v2352 = vadd.f32 %v2335, %v1588
        %v2353 = vadd.f32 %v2339, %v1584
        %v2354 = vadd.f32 %v2341, %v1588
        %v2355 = vadd.f32 %v2345, %v1584
        %v2356 = vadd.f32 %v2347, %v1588
        %v2357 = vxor.u32 %v2349, 2147483648
        %v2358 = vxor.u32 %v2351, 2147483648
        %v2359 = vxor.u32 %v2353, 2147483648
        %v2360 = vxor.u32 %v2355, 2147483648
        %v2361 = vmul.f32 %v2357, 1.442695
        %v2362 = vpow.pop %v2361
        %v2363 = vmul.f32 %v2358, 1.442695
        %v2364 = vpow.pop %v2363
        %v2365 = vmul.f32 %v2359, 1.442695
        %v2366 = vpow.pop %v2365
        %v2367 = vmul.f32 %v2360, 1.442695
        %v2368 = vpow.pop %v2367
        %v2369 = vadd.f32 %v2362, 1.0
        %v2370 = vadd.f32 %v2364, 1.0
        %v2371 = vadd.f32 %v2366, 1.0
        %v2372 = vadd.f32 %v2368, 1.0
        %v2373 = vrcp.pop %v2369
        %v2374 = vmul.f32 1.0, %v2373
        %v2375 = vrcp.pop %v2370
        %v2376 = vmul.f32 1.0, %v2375
        %v2377 = vrcp.pop %v2371
        %v2378 = vmul.f32 1.0, %v2377
        %v2379 = vrcp.pop %v2372
        %v2380 = vmul.f32 1.0, %v2379
        %v2381 = vxor.u32 %v2350, 2147483648
        %v2382 = vxor.u32 %v2352, 2147483648
        %v2383 = vxor.u32 %v2354, 2147483648
        %v2384 = vxor.u32 %v2356, 2147483648
        %v2385 = vmul.f32 %v2381, 1.442695
        %v2386 = vpow.pop %v2385
        %v2387 = vmul.f32 %v2382, 1.442695
        %v2388 = vpow.pop %v2387
        %v2389 = vmul.f32 %v2383, 1.442695
        %v2390 = vpow.pop %v2389
        %v2391 = vmul.f32 %v2384, 1.442695
        %v2392 = vpow.pop %v2391
        %v2393 = vadd.f32 %v2386, 1.0
        %v2394 = vadd.f32 %v2388, 1.0
        %v2395 = vadd.f32 %v2390, 1.0
        %v2396 = vadd.f32 %v2392, 1.0
        %v2397 = vrcp.pop %v2393
        %v2398 = vmul.f32 1.0, %v2397
        %v2399 = vrcp.pop %v2394
        %v2400 = vmul.f32 1.0, %v2399
        %v2401 = vrcp.pop %v2395
        %v2402 = vmul.f32 1.0, %v2401
        %v2403 = vrcp.pop %v2396
        %v2404 = vmul.f32 1.0, %v2403
        %s2405 = scalar_lea.vmem [#allocation4], 64
        %v2406 = vld [vmem:[%s2405] sm:$0xff]
        %v2407 = vld [vmem:[%s2405 + $0x8] sm:$0xff]
        %v2408 = vld [vmem:[%s2405 + $0x10] sm:$0xff]
        %v2409 = vld [vmem:[%s2405 + $0x18] sm:$0xff]
        %v2410 = vld [vmem:[%s2405 + $0x20] sm:$0xff]
        %v2411 = vld [vmem:[%s2405 + $0x28] sm:$0xff]
        %v2412 = vld [vmem:[%s2405 + $0x30] sm:$0xff]
        %v2413 = vld [vmem:[%s2405 + $0x38] sm:$0xff]
        %v2414 = vmul.f32 %v2398, %v1952
        %v2415 = vmul.f32 %v2400, %v1953
        %v2416 = vmul.f32 %v2402, %v1954
        %v2417 = vmul.f32 %v2404, %v1955
        %2418 = vmatprep.subr.mxu0 %v1160
        %2419 = vmatpush1.msra.mxu0 %v1159
        %2420 = vmatprep.subr.mxu0 %v1158
        %2421 = vmatpush1.msra.mxu0 %v1157
        %2422 = vmatprep.subr.mxu0 %v1156
        %2423 = vmatpush1.msra.mxu0 %v1155
        %2424 = vmatprep.subr.mxu0 %v1154
        %2425 = vmatpush1.msra.mxu0 %v1153
        %2426 = vmatprep.subr.mxu0 %v1152
        %2427 = vmatpush1.msra.mxu0 %v1151
        %2428 = vmatprep.subr.mxu0 %v1150
        %2429 = vmatpush1.msra.mxu0 %v1149
        %2430 = vmatprep.subr.mxu0 %v1148
        %2431 = vmatpush1.msra.mxu0 %v1147
        %2432 = vmatprep.subr.mxu0 %v1146
        %2433 = vmatpush1.msra.mxu0 %v1145
        %2434 = vmatprep.subr.mxu0 %v1144
        %2435 = vmatpush1.msra.mxu0 %v1143
        %2436 = vmatprep.subr.mxu0 %v1142
        %2437 = vmatpush1.msra.mxu0 %v1141
        %2438 = vmatprep.subr.mxu0 %v1140
        %2439 = vmatpush1.msra.mxu0 %v1139
        %2440 = vmatprep.subr.mxu0 %v1138
        %2441 = vmatpush1.msra.mxu0 %v1137
        %2442 = vmatprep.subr.mxu0 %v1136
        %2443 = vmatpush1.msra.mxu0 %v1135
        %2444 = vmatprep.subr.mxu0 %v1134
        %2445 = vmatpush1.msra.mxu0 %v1133
        %2446 = vmatprep.subr.mxu0 %v1132
        %2447 = vmatpush1.msra.mxu0 %v1131
        %2448 = vmatprep.subr.mxu0 %v1130
        %2449 = vmatpush1.msra.mxu0 %v1129
        %2450 = vmatprep.subr.mxu0 0.0
        %2451 = vmatpush2.msra.mxu0 0.0
        %2452 = vmatprep.subr.mxu0 0.0
        %2453 = vmatpush2.msra.mxu0 0.0
        %2454 = vmatprep.subr.mxu0 0.0
        %2455 = vmatpush2.msra.mxu0 0.0
        %2456 = vmatprep.subr.mxu0 0.0
        %2457 = vmatpush2.msra.mxu0 0.0
        %2458 = vmatprep.subr.mxu0 0.0
        %2459 = vmatpush2.msra.mxu0 0.0
        %2460 = vmatprep.subr.mxu0 0.0
        %2461 = vmatpush2.msra.mxu0 0.0
        %2462 = vmatprep.subr.mxu0 0.0
        %2463 = vmatpush2.msra.mxu0 0.0
        %2464 = vmatprep.subr.mxu0 0.0
        %2465 = vmatpush2.msra.mxu0 0.0
        %2466 = vmatprep.subr.mxu0 0.0
        %2467 = vmatpush2.msra.mxu0 0.0
        %2468 = vmatprep.subr.mxu0 0.0
        %2469 = vmatpush2.msra.mxu0 0.0
        %2470 = vmatprep.subr.mxu0 0.0
        %2471 = vmatpush2.msra.mxu0 0.0
        %2472 = vmatprep.subr.mxu0 0.0
        %2473 = vmatpush2.msra.mxu0 0.0
        %2474 = vmatprep.subr.mxu0 0.0
        %2475 = vmatpush2.msra.mxu0 0.0
        %2476 = vmatprep.subr.mxu0 0.0
        %2477 = vmatpush2.msra.mxu0 0.0
        %2478 = vmatprep.subr.mxu0 0.0
        %2479 = vmatpush2.msra.mxu0 0.0
        %2480 = vmatprep.subr.mxu0 0.0
        %2481 = vmatpush2.msra.mxu0 0.0
        %2482 = vmatprep.mubr.f32.mxu0 0.0
        %2483 = vmatmul.mubr.f32.gmra.mxu0 %v2414
        %v2484 = vpop.f32.mrf.mxu0
        %v2485 = vadd.f32 0.0, %v2484
        %v2486 = vpop.f32.mrf.mxu0
        %v2487 = vadd.f32 0.0, %v2486
        %2488 = vmatprep.mubr.f32.mxu0 0.0
        %2489 = vmatmul.mubr.f32.gmra.mxu0 %v2415
        %v2490 = vpop.f32.mrf.mxu0
        %v2491 = vadd.f32 0.0, %v2490
        %v2492 = vpop.f32.mrf.mxu0
        %v2493 = vadd.f32 0.0, %v2492
        %2494 = vmatprep.mubr.f32.mxu0 0.0
        %2495 = vmatmul.mubr.f32.gmra.mxu0 %v2416
        %v2496 = vpop.f32.mrf.mxu0
        %v2497 = vadd.f32 0.0, %v2496
        %v2498 = vpop.f32.mrf.mxu0
        %v2499 = vadd.f32 0.0, %v2498
        %2500 = vmatprep.mubr.f32.mxu0 0.0
        %2501 = vmatmul.mubr.f32.gmra.mxu0 %v2417
        %v2502 = vpop.f32.mrf.mxu0
        %v2503 = vadd.f32 0.0, %v2502
        %v2504 = vpop.f32.mrf.mxu0
        %v2505 = vadd.f32 0.0, %v2504
        %2506 = vdwg.mxu0
        %v2507 = vadd.f32 %v2406, %v2485
        %v2508 = vadd.f32 %v2407, %v2487
        %v2509 = vadd.f32 %v2408, %v2491
        %v2510 = vadd.f32 %v2409, %v2493
        %v2511 = vadd.f32 %v2410, %v2497
        %v2512 = vadd.f32 %v2411, %v2499
        %v2513 = vadd.f32 %v2412, %v2503
        %v2514 = vadd.f32 %v2413, %v2505
        %2515 = vmatprep.subr.mxu0 0.0
        %2516 = vmatpush1.msra.mxu0 0.0
        %2517 = vmatprep.subr.mxu0 0.0
        %2518 = vmatpush1.msra.mxu0 0.0
        %2519 = vmatprep.subr.mxu0 0.0
        %2520 = vmatpush1.msra.mxu0 0.0
        %2521 = vmatprep.subr.mxu0 0.0
        %2522 = vmatpush1.msra.mxu0 0.0
        %2523 = vmatprep.subr.mxu0 0.0
        %2524 = vmatpush1.msra.mxu0 0.0
        %2525 = vmatprep.subr.mxu0 0.0
        %2526 = vmatpush1.msra.mxu0 0.0
        %2527 = vmatprep.subr.mxu0 0.0
        %2528 = vmatpush1.msra.mxu0 0.0
        %2529 = vmatprep.subr.mxu0 0.0
        %2530 = vmatpush1.msra.mxu0 0.0
        %2531 = vmatprep.subr.mxu0 0.0
        %2532 = vmatpush1.msra.mxu0 0.0
        %2533 = vmatprep.subr.mxu0 0.0
        %2534 = vmatpush1.msra.mxu0 0.0
        %2535 = vmatprep.subr.mxu0 0.0
        %2536 = vmatpush1.msra.mxu0 0.0
        %2537 = vmatprep.subr.mxu0 0.0
        %2538 = vmatpush1.msra.mxu0 0.0
        %2539 = vmatprep.subr.mxu0 0.0
        %2540 = vmatpush1.msra.mxu0 %v2514
        %2541 = vmatprep.subr.mxu0 0.0
        %2542 = vmatpush1.msra.mxu0 %v2512
        %2543 = vmatprep.subr.mxu0 0.0
        %2544 = vmatpush1.msra.mxu0 %v2510
        %2545 = vmatprep.subr.mxu0 0.0
        %2546 = vmatpush1.msra.mxu0 %v2508
        %2547 = vmatprep.subr.mxu0 0.0
        %2548 = vmatpush2.msra.mxu0 0.0
        %2549 = vmatprep.subr.mxu0 0.0
        %2550 = vmatpush2.msra.mxu0 0.0
        %2551 = vmatprep.subr.mxu0 0.0
        %2552 = vmatpush2.msra.mxu0 0.0
        %2553 = vmatprep.subr.mxu0 0.0
        %2554 = vmatpush2.msra.mxu0 0.0
        %2555 = vmatprep.subr.mxu0 0.0
        %2556 = vmatpush2.msra.mxu0 0.0
        %2557 = vmatprep.subr.mxu0 0.0
        %2558 = vmatpush2.msra.mxu0 0.0
        %2559 = vmatprep.subr.mxu0 0.0
        %2560 = vmatpush2.msra.mxu0 0.0
        %2561 = vmatprep.subr.mxu0 0.0
        %2562 = vmatpush2.msra.mxu0 0.0
        %2563 = vmatprep.subr.mxu0 0.0
        %2564 = vmatpush2.msra.mxu0 0.0
        %2565 = vmatprep.subr.mxu0 0.0
        %2566 = vmatpush2.msra.mxu0 0.0
        %2567 = vmatprep.subr.mxu0 0.0
        %2568 = vmatpush2.msra.mxu0 0.0
        %2569 = vmatprep.subr.mxu0 0.0
        %2570 = vmatpush2.msra.mxu0 0.0
        %2571 = vmatprep.subr.mxu0 0.0
        %2572 = vmatpush2.msra.mxu0 0.0
        %2573 = vmatprep.subr.mxu0 0.0
        %2574 = vmatpush2.msra.mxu0 0.0
        %2575 = vmatprep.subr.mxu0 0.0
        %2576 = vmatpush2.msra.mxu0 0.0
        %2577 = vmatprep.subr.mxu0 0.0
        %2578 = vmatpush2.msra.mxu0 0.0
        %2579 = vmatprep.mubr.f32.mxu0 0.0
        %2580 = vmatmul.mubr.f32.gmra.mxu0 %v1379
        %v2581 = vpop.f32.mrf.mxu0
        %v2582 = vadd.f32 0.0, %v2581
        %v2583 = vpop.f32.mrf.mxu0
        %2584 = vmatprep.mubr.f32.mxu0 0.0
        %2585 = vmatmul.mubr.f32.gmra.mxu0 %v1382
        %v2586 = vpop.f32.mrf.mxu0
        %v2587 = vadd.f32 0.0, %v2586
        %v2588 = vpop.f32.mrf.mxu0
        %2589 = vmatprep.mubr.f32.mxu0 0.0
        %2590 = vmatmul.mubr.f32.gmra.mxu0 %v1385
        %v2591 = vpop.f32.mrf.mxu0
        %v2592 = vadd.f32 0.0, %v2591
        %v2593 = vpop.f32.mrf.mxu0
        %2594 = vmatprep.mubr.f32.mxu0 0.0
        %2595 = vmatmul.mubr.f32.gmra.mxu0 %v1388
        %v2596 = vpop.f32.mrf.mxu0
        %v2597 = vadd.f32 0.0, %v2596
        %v2598 = vpop.f32.mrf.mxu0
        %2599 = vdwg.mxu0
        %2600 = vmatprep.subr.mxu0 0.0
        %2601 = vmatpush1.msra.mxu0 0.0
        %2602 = vmatprep.subr.mxu0 0.0
        %2603 = vmatpush1.msra.mxu0 0.0
        %2604 = vmatprep.subr.mxu0 0.0
        %2605 = vmatpush1.msra.mxu0 0.0
        %2606 = vmatprep.subr.mxu0 0.0
        %2607 = vmatpush1.msra.mxu0 0.0
        %2608 = vmatprep.subr.mxu0 0.0
        %2609 = vmatpush1.msra.mxu0 0.0
        %2610 = vmatprep.subr.mxu0 0.0
        %2611 = vmatpush1.msra.mxu0 0.0
        %2612 = vmatprep.subr.mxu0 0.0
        %2613 = vmatpush1.msra.mxu0 0.0
        %2614 = vmatprep.subr.mxu0 0.0
        %2615 = vmatpush1.msra.mxu0 0.0
        %2616 = vmatprep.subr.mxu0 0.0
        %2617 = vmatpush1.msra.mxu0 0.0
        %2618 = vmatprep.subr.mxu0 0.0
        %2619 = vmatpush1.msra.mxu0 0.0
        %2620 = vmatprep.subr.mxu0 0.0
        %2621 = vmatpush1.msra.mxu0 0.0
        %2622 = vmatprep.subr.mxu0 0.0
        %2623 = vmatpush1.msra.mxu0 0.0
        %2624 = vmatprep.subr.mxu0 0.0
        %2625 = vmatpush1.msra.mxu0 %v2513
        %2626 = vmatprep.subr.mxu0 0.0
        %2627 = vmatpush1.msra.mxu0 %v2511
        %2628 = vmatprep.subr.mxu0 0.0
        %2629 = vmatpush1.msra.mxu0 %v2509
        %2630 = vmatprep.subr.mxu0 0.0
        %2631 = vmatpush1.msra.mxu0 %v2507
        %2632 = vmatprep.subr.mxu0 0.0
        %2633 = vmatpush2.msra.mxu0 0.0
        %2634 = vmatprep.subr.mxu0 0.0
        %2635 = vmatpush2.msra.mxu0 0.0
        %2636 = vmatprep.subr.mxu0 0.0
        %2637 = vmatpush2.msra.mxu0 0.0
        %2638 = vmatprep.subr.mxu0 0.0
        %2639 = vmatpush2.msra.mxu0 0.0
        %2640 = vmatprep.subr.mxu0 0.0
        %2641 = vmatpush2.msra.mxu0 0.0
        %2642 = vmatprep.subr.mxu0 0.0
        %2643 = vmatpush2.msra.mxu0 0.0
        %2644 = vmatprep.subr.mxu0 0.0
        %2645 = vmatpush2.msra.mxu0 0.0
        %2646 = vmatprep.subr.mxu0 0.0
        %2647 = vmatpush2.msra.mxu0 0.0
        %2648 = vmatprep.subr.mxu0 0.0
        %2649 = vmatpush2.msra.mxu0 0.0
        %2650 = vmatprep.subr.mxu0 0.0
        %2651 = vmatpush2.msra.mxu0 0.0
        %2652 = vmatprep.subr.mxu0 0.0
        %2653 = vmatpush2.msra.mxu0 0.0
        %2654 = vmatprep.subr.mxu0 0.0
        %2655 = vmatpush2.msra.mxu0 0.0
        %2656 = vmatprep.subr.mxu0 0.0
        %2657 = vmatpush2.msra.mxu0 0.0
        %2658 = vmatprep.subr.mxu0 0.0
        %2659 = vmatpush2.msra.mxu0 0.0
        %2660 = vmatprep.subr.mxu0 0.0
        %2661 = vmatpush2.msra.mxu0 0.0
        %2662 = vmatprep.subr.mxu0 0.0
        %2663 = vmatpush2.msra.mxu0 0.0
        %2664 = vmatprep.mubr.f32.mxu0 0.0
        %2665 = vmatmul.mubr.f32.gmra.mxu0 %v1480
        %v2666 = vpop.f32.mrf.mxu0
        %v2667 = vadd.f32 %v2582, %v2666
        %v2668 = vpop.f32.mrf.mxu0
        %2669 = vmatprep.mubr.f32.mxu0 0.0
        %2670 = vmatmul.mubr.f32.gmra.mxu0 %v1483
        %v2671 = vpop.f32.mrf.mxu0
        %v2672 = vadd.f32 %v2587, %v2671
        %v2673 = vpop.f32.mrf.mxu0
        %2674 = vmatprep.mubr.f32.mxu0 0.0
        %2675 = vmatmul.mubr.f32.gmra.mxu0 %v1486
        %v2676 = vpop.f32.mrf.mxu0
        %v2677 = vadd.f32 %v2592, %v2676
        %v2678 = vpop.f32.mrf.mxu0
        %2679 = vmatprep.mubr.f32.mxu0 0.0
        %2680 = vmatmul.mubr.f32.gmra.mxu0 %v1489
        %v2681 = vpop.f32.mrf.mxu0
        %v2682 = vadd.f32 %v2597, %v2681
        %v2683 = vpop.f32.mrf.mxu0
        %2684 = vdwg.mxu0
        %v2685 = vadd.f32 %v2667, %v1930
        %v2686 = vadd.f32 %v2672, %v1930
        %v2687 = vadd.f32 %v2677, %v1930
        %v2688 = vadd.f32 %v2682, %v1930
        %v2689 = vtanh.pop %v2685
        %v2690 = vtanh.pop %v2686
        %v2691 = vtanh.pop %v2687
        %v2692 = vtanh.pop %v2688
        %v2693 = vsub.f32 1.0, %v2374
        %v2694 = vsub.f32 1.0, %v2376
        %v2695 = vsub.f32 1.0, %v2378
        %v2696 = vsub.f32 1.0, %v2380
        %v2697 = vmul.f32 %v2693, %v1952
        %v2698 = vmul.f32 %v2694, %v1953
        %v2699 = vmul.f32 %v2695, %v1954
        %v2700 = vmul.f32 %v2696, %v1955
        %v2701 = vmul.f32 %v2374, %v2689
        %v2702 = vmul.f32 %v2376, %v2690
        %v2703 = vmul.f32 %v2378, %v2691
        %v2704 = vmul.f32 %v2380, %v2692
        %v2705 = vadd.f32 %v2697, %v2701
        %v2706 = vadd.f32 %v2698, %v2702
        %v2707 = vadd.f32 %v2699, %v2703
        %v2708 = vadd.f32 %v2700, %v2704
        %s2709 = scalar_lea.vmem %s370, 32 [#allocation11]
        %2710 = vst [vmem:[%s2709] sm:$0xff] %v2705
        %2711 = vst [vmem:[%s2709 + $0x8] sm:$0xff] %v2706
        %2712 = vst [vmem:[%s2709 + $0x10] sm:$0xff] %v2707
        %2713 = vst [vmem:[%s2709 + $0x18] sm:$0xff] %v2708
        %s2714 = scalar_lea.vmem [#allocation3], 256
        %v2715 = vld [vmem:[%s2714] sm:$0xff]
        %v2716 = vld [vmem:[%s2714 + $0x8] sm:$0xff]
        %v2717 = vld [vmem:[%s2714 + $0x10] sm:$0xff]
        %v2718 = vld [vmem:[%s2714 + $0x18] sm:$0xff]
        %v2719 = vld [vmem:[%s2714 + $0x20] sm:$0xff]
        %v2720 = vld [vmem:[%s2714 + $0x28] sm:$0xff]
        %v2721 = vld [vmem:[%s2714 + $0x30] sm:$0xff]
        %v2722 = vld [vmem:[%s2714 + $0x38] sm:$0xff]
        %v2723 = vld [vmem:[%s2714 + $0x40] sm:$0xff]
        %v2724 = vld [vmem:[%s2714 + $0x48] sm:$0xff]
        %v2725 = vld [vmem:[%s2714 + $0x50] sm:$0xff]
        %v2726 = vld [vmem:[%s2714 + $0x58] sm:$0xff]
        %v2727 = vld [vmem:[%s2714 + $0x60] sm:$0xff]
        %v2728 = vld [vmem:[%s2714 + $0x68] sm:$0xff]
        %v2729 = vld [vmem:[%s2714 + $0x70] sm:$0xff]
        %v2730 = vld [vmem:[%s2714 + $0x78] sm:$0xff]
        %2731 = vmatprep.subr.mxu0 %v1126
        %2732 = vmatpush1.msra.mxu0 %v1125
        %2733 = vmatprep.subr.mxu0 %v1122
        %2734 = vmatpush1.msra.mxu0 %v1121
        %2735 = vmatprep.subr.mxu0 %v1118
        %2736 = vmatpush1.msra.mxu0 %v1117
        %2737 = vmatprep.subr.mxu0 %v1114
        %2738 = vmatpush1.msra.mxu0 %v1113
        %2739 = vmatprep.subr.mxu0 %v1110
        %2740 = vmatpush1.msra.mxu0 %v1109
        %2741 = vmatprep.subr.mxu0 %v1106
        %2742 = vmatpush1.msra.mxu0 %v1105
        %2743 = vmatprep.subr.mxu0 %v1102
        %2744 = vmatpush1.msra.mxu0 %v1101
        %2745 = vmatprep.subr.mxu0 %v1098
        %2746 = vmatpush1.msra.mxu0 %v1097
        %2747 = vmatprep.subr.mxu0 %v1094
        %2748 = vmatpush1.msra.mxu0 %v1093
        %2749 = vmatprep.subr.mxu0 %v1090
        %2750 = vmatpush1.msra.mxu0 %v1089
        %2751 = vmatprep.subr.mxu0 %v1086
        %2752 = vmatpush1.msra.mxu0 %v1085
        %2753 = vmatprep.subr.mxu0 %v1082
        %2754 = vmatpush1.msra.mxu0 %v1081
        %2755 = vmatprep.subr.mxu0 %v1078
        %2756 = vmatpush1.msra.mxu0 %v1077
        %2757 = vmatprep.subr.mxu0 %v1074
        %2758 = vmatpush1.msra.mxu0 %v1073
        %2759 = vmatprep.subr.mxu0 %v1070
        %2760 = vmatpush1.msra.mxu0 %v1069
        %2761 = vmatprep.subr.mxu0 %v1066
        %2762 = vmatpush1.msra.mxu0 %v1065
        %2763 = vmatprep.subr.mxu0 0.0
        %2764 = vmatpush2.msra.mxu0 0.0
        %2765 = vmatprep.subr.mxu0 0.0
        %2766 = vmatpush2.msra.mxu0 0.0
        %2767 = vmatprep.subr.mxu0 0.0
        %2768 = vmatpush2.msra.mxu0 0.0
        %2769 = vmatprep.subr.mxu0 0.0
        %2770 = vmatpush2.msra.mxu0 0.0
        %2771 = vmatprep.subr.mxu0 0.0
        %2772 = vmatpush2.msra.mxu0 0.0
        %2773 = vmatprep.subr.mxu0 0.0
        %2774 = vmatpush2.msra.mxu0 0.0
        %2775 = vmatprep.subr.mxu0 0.0
        %2776 = vmatpush2.msra.mxu0 0.0
        %2777 = vmatprep.subr.mxu0 0.0
        %2778 = vmatpush2.msra.mxu0 0.0
        %2779 = vmatprep.subr.mxu0 0.0
        %2780 = vmatpush2.msra.mxu0 0.0
        %2781 = vmatprep.subr.mxu0 0.0
        %2782 = vmatpush2.msra.mxu0 0.0
        %2783 = vmatprep.subr.mxu0 0.0
        %2784 = vmatpush2.msra.mxu0 0.0
        %2785 = vmatprep.subr.mxu0 0.0
        %2786 = vmatpush2.msra.mxu0 0.0
        %2787 = vmatprep.subr.mxu0 0.0
        %2788 = vmatpush2.msra.mxu0 0.0
        %2789 = vmatprep.subr.mxu0 0.0
        %2790 = vmatpush2.msra.mxu0 0.0
        %2791 = vmatprep.subr.mxu0 0.0
        %2792 = vmatpush2.msra.mxu0 0.0
        %2793 = vmatprep.subr.mxu0 0.0
        %2794 = vmatpush2.msra.mxu0 0.0
        %2795 = vmatprep.mubr.f32.mxu0 0.0
        %2796 = vmatmul.mubr.f32.gmra.mxu0 %v2705
        %v2797 = vpop.f32.mrf.mxu0
        %v2798 = vadd.f32 0.0, %v2797
        %v2799 = vpop.f32.mrf.mxu0
        %v2800 = vadd.f32 0.0, %v2799
        %2801 = vmatprep.mubr.f32.mxu0 0.0
        %2802 = vmatmul.mubr.f32.gmra.mxu0 %v2706
        %v2803 = vpop.f32.mrf.mxu0
        %v2804 = vadd.f32 0.0, %v2803
        %v2805 = vpop.f32.mrf.mxu0
        %v2806 = vadd.f32 0.0, %v2805
        %2807 = vmatprep.mubr.f32.mxu0 0.0
        %2808 = vmatmul.mubr.f32.gmra.mxu0 %v2707
        %v2809 = vpop.f32.mrf.mxu0
        %v2810 = vadd.f32 0.0, %v2809
        %v2811 = vpop.f32.mrf.mxu0
        %v2812 = vadd.f32 0.0, %v2811
        %2813 = vmatprep.mubr.f32.mxu0 0.0
        %2814 = vmatmul.mubr.f32.gmra.mxu0 %v2708
        %v2815 = vpop.f32.mrf.mxu0
        %v2816 = vadd.f32 0.0, %v2815
        %v2817 = vpop.f32.mrf.mxu0
        %v2818 = vadd.f32 0.0, %v2817
        %2819 = vdwg.mxu0
        %2820 = vmatprep.subr.mxu0 %v1128
        %2821 = vmatpush1.msra.mxu0 %v1127
        %2822 = vmatprep.subr.mxu0 %v1124
        %2823 = vmatpush1.msra.mxu0 %v1123
        %2824 = vmatprep.subr.mxu0 %v1120
        %2825 = vmatpush1.msra.mxu0 %v1119
        %2826 = vmatprep.subr.mxu0 %v1116
        %2827 = vmatpush1.msra.mxu0 %v1115
        %2828 = vmatprep.subr.mxu0 %v1112
        %2829 = vmatpush1.msra.mxu0 %v1111
        %2830 = vmatprep.subr.mxu0 %v1108
        %2831 = vmatpush1.msra.mxu0 %v1107
        %2832 = vmatprep.subr.mxu0 %v1104
        %2833 = vmatpush1.msra.mxu0 %v1103
        %2834 = vmatprep.subr.mxu0 %v1100
        %2835 = vmatpush1.msra.mxu0 %v1099
        %2836 = vmatprep.subr.mxu0 %v1096
        %2837 = vmatpush1.msra.mxu0 %v1095
        %2838 = vmatprep.subr.mxu0 %v1092
        %2839 = vmatpush1.msra.mxu0 %v1091
        %2840 = vmatprep.subr.mxu0 %v1088
        %2841 = vmatpush1.msra.mxu0 %v1087
        %2842 = vmatprep.subr.mxu0 %v1084
        %2843 = vmatpush1.msra.mxu0 %v1083
        %2844 = vmatprep.subr.mxu0 %v1080
        %2845 = vmatpush1.msra.mxu0 %v1079
        %2846 = vmatprep.subr.mxu0 %v1076
        %2847 = vmatpush1.msra.mxu0 %v1075
        %2848 = vmatprep.subr.mxu0 %v1072
        %2849 = vmatpush1.msra.mxu0 %v1071
        %2850 = vmatprep.subr.mxu0 %v1068
        %2851 = vmatpush1.msra.mxu0 %v1067
        %2852 = vmatprep.subr.mxu0 0.0
        %2853 = vmatpush2.msra.mxu0 0.0
        %2854 = vmatprep.subr.mxu0 0.0
        %2855 = vmatpush2.msra.mxu0 0.0
        %2856 = vmatprep.subr.mxu0 0.0
        %2857 = vmatpush2.msra.mxu0 0.0
        %2858 = vmatprep.subr.mxu0 0.0
        %2859 = vmatpush2.msra.mxu0 0.0
        %2860 = vmatprep.subr.mxu0 0.0
        %2861 = vmatpush2.msra.mxu0 0.0
        %2862 = vmatprep.subr.mxu0 0.0
        %2863 = vmatpush2.msra.mxu0 0.0
        %2864 = vmatprep.subr.mxu0 0.0
        %2865 = vmatpush2.msra.mxu0 0.0
        %2866 = vmatprep.subr.mxu0 0.0
        %2867 = vmatpush2.msra.mxu0 0.0
        %2868 = vmatprep.subr.mxu0 0.0
        %2869 = vmatpush2.msra.mxu0 0.0
        %2870 = vmatprep.subr.mxu0 0.0
        %2871 = vmatpush2.msra.mxu0 0.0
        %2872 = vmatprep.subr.mxu0 0.0
        %2873 = vmatpush2.msra.mxu0 0.0
        %2874 = vmatprep.subr.mxu0 0.0
        %2875 = vmatpush2.msra.mxu0 0.0
        %2876 = vmatprep.subr.mxu0 0.0
        %2877 = vmatpush2.msra.mxu0 0.0
        %2878 = vmatprep.subr.mxu0 0.0
        %2879 = vmatpush2.msra.mxu0 0.0
        %2880 = vmatprep.subr.mxu0 0.0
        %2881 = vmatpush2.msra.mxu0 0.0
        %2882 = vmatprep.subr.mxu0 0.0
        %2883 = vmatpush2.msra.mxu0 0.0
        %2884 = vmatprep.mubr.f32.mxu0 0.0
        %2885 = vmatmul.mubr.f32.gmra.mxu0 %v2705
        %v2886 = vpop.f32.mrf.mxu0
        %v2887 = vadd.f32 0.0, %v2886
        %v2888 = vpop.f32.mrf.mxu0
        %v2889 = vadd.f32 0.0, %v2888
        %2890 = vmatprep.mubr.f32.mxu0 0.0
        %2891 = vmatmul.mubr.f32.gmra.mxu0 %v2706
        %v2892 = vpop.f32.mrf.mxu0
        %v2893 = vadd.f32 0.0, %v2892
        %v2894 = vpop.f32.mrf.mxu0
        %v2895 = vadd.f32 0.0, %v2894
        %2896 = vmatprep.mubr.f32.mxu0 0.0
        %2897 = vmatmul.mubr.f32.gmra.mxu0 %v2707
        %v2898 = vpop.f32.mrf.mxu0
        %v2899 = vadd.f32 0.0, %v2898
        %v2900 = vpop.f32.mrf.mxu0
        %v2901 = vadd.f32 0.0, %v2900
        %2902 = vmatprep.mubr.f32.mxu0 0.0
        %2903 = vmatmul.mubr.f32.gmra.mxu0 %v2708
        %v2904 = vpop.f32.mrf.mxu0
        %v2905 = vadd.f32 0.0, %v2904
        %v2906 = vpop.f32.mrf.mxu0
        %v2907 = vadd.f32 0.0, %v2906
        %2908 = vdwg.mxu0
        %v2909 = vadd.f32 %v2715, %v2798
        %v2910 = vadd.f32 %v2716, %v2800
        %v2911 = vadd.f32 %v2717, %v2887
        %v2912 = vadd.f32 %v2718, %v2889
        %v2913 = vadd.f32 %v2719, %v2804
        %v2914 = vadd.f32 %v2720, %v2806
        %v2915 = vadd.f32 %v2721, %v2893
        %v2916 = vadd.f32 %v2722, %v2895
        %v2917 = vadd.f32 %v2723, %v2810
        %v2918 = vadd.f32 %v2724, %v2812
        %v2919 = vadd.f32 %v2725, %v2899
        %v2920 = vadd.f32 %v2726, %v2901
        %v2921 = vadd.f32 %v2727, %v2816
        %v2922 = vadd.f32 %v2728, %v2818
        %v2923 = vadd.f32 %v2729, %v2905
        %v2924 = vadd.f32 %v2730, %v2907
        %2925 = vmatprep.subr.mxu0 0.0
        %2926 = vmatpush1.msra.mxu0 0.0
        %2927 = vmatprep.subr.mxu0 0.0
        %2928 = vmatpush1.msra.mxu0 0.0
        %2929 = vmatprep.subr.mxu0 0.0
        %2930 = vmatpush1.msra.mxu0 0.0
        %2931 = vmatprep.subr.mxu0 0.0
        %2932 = vmatpush1.msra.mxu0 0.0
        %2933 = vmatprep.subr.mxu0 0.0
        %2934 = vmatpush1.msra.mxu0 0.0
        %2935 = vmatprep.subr.mxu0 0.0
        %2936 = vmatpush1.msra.mxu0 0.0
        %2937 = vmatprep.subr.mxu0 0.0
        %2938 = vmatpush1.msra.mxu0 0.0
        %2939 = vmatprep.subr.mxu0 0.0
        %2940 = vmatpush1.msra.mxu0 0.0
        %2941 = vmatprep.subr.mxu0 0.0
        %2942 = vmatpush1.msra.mxu0 0.0
        %2943 = vmatprep.subr.mxu0 0.0
        %2944 = vmatpush1.msra.mxu0 0.0
        %2945 = vmatprep.subr.mxu0 0.0
        %2946 = vmatpush1.msra.mxu0 0.0
        %2947 = vmatprep.subr.mxu0 0.0
        %2948 = vmatpush1.msra.mxu0 0.0
        %2949 = vmatprep.subr.mxu0 %v2924
        %2950 = vmatpush1.msra.mxu0 %v2923
        %2951 = vmatprep.subr.mxu0 %v2920
        %2952 = vmatpush1.msra.mxu0 %v2919
        %2953 = vmatprep.subr.mxu0 %v2916
        %2954 = vmatpush1.msra.mxu0 %v2915
        %2955 = vmatprep.subr.mxu0 %v2912
        %2956 = vmatpush1.msra.mxu0 %v2911
        %2957 = vmatprep.subr.mxu0 0.0
        %2958 = vmatpush2.msra.mxu0 0.0
        %2959 = vmatprep.subr.mxu0 0.0
        %2960 = vmatpush2.msra.mxu0 0.0
        %2961 = vmatprep.subr.mxu0 0.0
        %2962 = vmatpush2.msra.mxu0 0.0
        %2963 = vmatprep.subr.mxu0 0.0
        %2964 = vmatpush2.msra.mxu0 0.0
        %2965 = vmatprep.subr.mxu0 0.0
        %2966 = vmatpush2.msra.mxu0 0.0
        %2967 = vmatprep.subr.mxu0 0.0
        %2968 = vmatpush2.msra.mxu0 0.0
        %2969 = vmatprep.subr.mxu0 0.0
        %2970 = vmatpush2.msra.mxu0 0.0
        %2971 = vmatprep.subr.mxu0 0.0
        %2972 = vmatpush2.msra.mxu0 0.0
        %2973 = vmatprep.subr.mxu0 0.0
        %2974 = vmatpush2.msra.mxu0 0.0
        %2975 = vmatprep.subr.mxu0 0.0
        %2976 = vmatpush2.msra.mxu0 0.0
        %2977 = vmatprep.subr.mxu0 0.0
        %2978 = vmatpush2.msra.mxu0 0.0
        %2979 = vmatprep.subr.mxu0 0.0
        %2980 = vmatpush2.msra.mxu0 0.0
        %2981 = vmatprep.subr.mxu0 0.0
        %2982 = vmatpush2.msra.mxu0 0.0
        %2983 = vmatprep.subr.mxu0 0.0
        %2984 = vmatpush2.msra.mxu0 0.0
        %2985 = vmatprep.subr.mxu0 0.0
        %2986 = vmatpush2.msra.mxu0 0.0
        %2987 = vmatprep.subr.mxu0 0.0
        %2988 = vmatpush2.msra.mxu0 0.0
        %2989 = vmatprep.mubr.f32.mxu0 0.0
        %2990 = vmatmul.mubr.f32.gmra.mxu0 %v1379
        %v2991 = vpop.f32.mrf.mxu0
        %v2992 = vadd.f32 0.0, %v2991
        %v2993 = vpop.f32.mrf.mxu0
        %v2994 = vadd.f32 0.0, %v2993
        %2995 = vmatprep.mubr.f32.mxu0 0.0
        %2996 = vmatmul.mubr.f32.gmra.mxu0 %v1382
        %v2997 = vpop.f32.mrf.mxu0
        %v2998 = vadd.f32 0.0, %v2997
        %v2999 = vpop.f32.mrf.mxu0
        %v3000 = vadd.f32 0.0, %v2999
        %3001 = vmatprep.mubr.f32.mxu0 0.0
        %3002 = vmatmul.mubr.f32.gmra.mxu0 %v1385
        %v3003 = vpop.f32.mrf.mxu0
        %v3004 = vadd.f32 0.0, %v3003
        %v3005 = vpop.f32.mrf.mxu0
        %v3006 = vadd.f32 0.0, %v3005
        %3007 = vmatprep.mubr.f32.mxu0 0.0
        %3008 = vmatmul.mubr.f32.gmra.mxu0 %v1388
        %v3009 = vpop.f32.mrf.mxu0
        %v3010 = vadd.f32 0.0, %v3009
        %v3011 = vpop.f32.mrf.mxu0
        %v3012 = vadd.f32 0.0, %v3011
        %3013 = vdwg.mxu0
        %3014 = vmatprep.subr.mxu0 0.0
        %3015 = vmatpush1.msra.mxu0 0.0
        %3016 = vmatprep.subr.mxu0 0.0
        %3017 = vmatpush1.msra.mxu0 0.0
        %3018 = vmatprep.subr.mxu0 0.0
        %3019 = vmatpush1.msra.mxu0 0.0
        %3020 = vmatprep.subr.mxu0 0.0
        %3021 = vmatpush1.msra.mxu0 0.0
        %3022 = vmatprep.subr.mxu0 0.0
        %3023 = vmatpush1.msra.mxu0 0.0
        %3024 = vmatprep.subr.mxu0 0.0
        %3025 = vmatpush1.msra.mxu0 0.0
        %3026 = vmatprep.subr.mxu0 0.0
        %3027 = vmatpush1.msra.mxu0 0.0
        %3028 = vmatprep.subr.mxu0 0.0
        %3029 = vmatpush1.msra.mxu0 0.0
        %3030 = vmatprep.subr.mxu0 0.0
        %3031 = vmatpush1.msra.mxu0 0.0
        %3032 = vmatprep.subr.mxu0 0.0
        %3033 = vmatpush1.msra.mxu0 0.0
        %3034 = vmatprep.subr.mxu0 0.0
        %3035 = vmatpush1.msra.mxu0 0.0
        %3036 = vmatprep.subr.mxu0 0.0
        %3037 = vmatpush1.msra.mxu0 0.0
        %3038 = vmatprep.subr.mxu0 %v2922
        %3039 = vmatpush1.msra.mxu0 %v2921
        %3040 = vmatprep.subr.mxu0 %v2918
        %3041 = vmatpush1.msra.mxu0 %v2917
        %3042 = vmatprep.subr.mxu0 %v2914
        %3043 = vmatpush1.msra.mxu0 %v2913
        %3044 = vmatprep.subr.mxu0 %v2910
        %3045 = vmatpush1.msra.mxu0 %v2909
        %3046 = vmatprep.subr.mxu0 0.0
        %3047 = vmatpush2.msra.mxu0 0.0
        %3048 = vmatprep.subr.mxu0 0.0
        %3049 = vmatpush2.msra.mxu0 0.0
        %3050 = vmatprep.subr.mxu0 0.0
        %3051 = vmatpush2.msra.mxu0 0.0
        %3052 = vmatprep.subr.mxu0 0.0
        %3053 = vmatpush2.msra.mxu0 0.0
        %3054 = vmatprep.subr.mxu0 0.0
        %3055 = vmatpush2.msra.mxu0 0.0
        %3056 = vmatprep.subr.mxu0 0.0
        %3057 = vmatpush2.msra.mxu0 0.0
        %3058 = vmatprep.subr.mxu0 0.0
        %3059 = vmatpush2.msra.mxu0 0.0
        %3060 = vmatprep.subr.mxu0 0.0
        %3061 = vmatpush2.msra.mxu0 0.0
        %3062 = vmatprep.subr.mxu0 0.0
        %3063 = vmatpush2.msra.mxu0 0.0
        %3064 = vmatprep.subr.mxu0 0.0
        %3065 = vmatpush2.msra.mxu0 0.0
        %3066 = vmatprep.subr.mxu0 0.0
        %3067 = vmatpush2.msra.mxu0 0.0
        %3068 = vmatprep.subr.mxu0 0.0
        %3069 = vmatpush2.msra.mxu0 0.0
        %3070 = vmatprep.subr.mxu0 0.0
        %3071 = vmatpush2.msra.mxu0 0.0
        %3072 = vmatprep.subr.mxu0 0.0
        %3073 = vmatpush2.msra.mxu0 0.0
        %3074 = vmatprep.subr.mxu0 0.0
        %3075 = vmatpush2.msra.mxu0 0.0
        %3076 = vmatprep.subr.mxu0 0.0
        %3077 = vmatpush2.msra.mxu0 0.0
        %3078 = vmatprep.mubr.f32.mxu0 0.0
        %3079 = vmatmul.mubr.f32.gmra.mxu0 %v1480
        %v3080 = vpop.f32.mrf.mxu0
        %v3081 = vadd.f32 %v2992, %v3080
        %v3082 = vpop.f32.mrf.mxu0
        %v3083 = vadd.f32 %v2994, %v3082
        %3084 = vmatprep.mubr.f32.mxu0 0.0
        %3085 = vmatmul.mubr.f32.gmra.mxu0 %v1483
        %v3086 = vpop.f32.mrf.mxu0
        %v3087 = vadd.f32 %v2998, %v3086
        %v3088 = vpop.f32.mrf.mxu0
        %v3089 = vadd.f32 %v3000, %v3088
        %3090 = vmatprep.mubr.f32.mxu0 0.0
        %3091 = vmatmul.mubr.f32.gmra.mxu0 %v1486
        %v3092 = vpop.f32.mrf.mxu0
        %v3093 = vadd.f32 %v3004, %v3092
        %v3094 = vpop.f32.mrf.mxu0
        %v3095 = vadd.f32 %v3006, %v3094
        %3096 = vmatprep.mubr.f32.mxu0 0.0
        %3097 = vmatmul.mubr.f32.gmra.mxu0 %v1489
        %v3098 = vpop.f32.mrf.mxu0
        %v3099 = vadd.f32 %v3010, %v3098
        %v3100 = vpop.f32.mrf.mxu0
        %v3101 = vadd.f32 %v3012, %v3100
        %3102 = vdwg.mxu0
        %v3103 = vadd.f32 %v3081, %v1584
        %v3104 = vadd.f32 %v3083, %v1588
        %v3105 = vadd.f32 %v3087, %v1584
        %v3106 = vadd.f32 %v3089, %v1588
        %v3107 = vadd.f32 %v3093, %v1584
        %v3108 = vadd.f32 %v3095, %v1588
        %v3109 = vadd.f32 %v3099, %v1584
        %v3110 = vadd.f32 %v3101, %v1588
        %v3111 = vxor.u32 %v3103, 2147483648
        %v3112 = vxor.u32 %v3105, 2147483648
        %v3113 = vxor.u32 %v3107, 2147483648
        %v3114 = vxor.u32 %v3109, 2147483648
        %v3115 = vmul.f32 %v3111, 1.442695
        %v3116 = vpow.pop %v3115
        %v3117 = vmul.f32 %v3112, 1.442695
        %v3118 = vpow.pop %v3117
        %v3119 = vmul.f32 %v3113, 1.442695
        %v3120 = vpow.pop %v3119
        %v3121 = vmul.f32 %v3114, 1.442695
        %v3122 = vpow.pop %v3121
        %v3123 = vadd.f32 %v3116, 1.0
        %v3124 = vadd.f32 %v3118, 1.0
        %v3125 = vadd.f32 %v3120, 1.0
        %v3126 = vadd.f32 %v3122, 1.0
        %v3127 = vrcp.pop %v3123
        %v3128 = vmul.f32 1.0, %v3127
        %v3129 = vrcp.pop %v3124
        %v3130 = vmul.f32 1.0, %v3129
        %v3131 = vrcp.pop %v3125
        %v3132 = vmul.f32 1.0, %v3131
        %v3133 = vrcp.pop %v3126
        %v3134 = vmul.f32 1.0, %v3133
        %v3135 = vxor.u32 %v3104, 2147483648
        %v3136 = vxor.u32 %v3106, 2147483648
        %v3137 = vxor.u32 %v3108, 2147483648
        %v3138 = vxor.u32 %v3110, 2147483648
        %v3139 = vmul.f32 %v3135, 1.442695
        %v3140 = vpow.pop %v3139
        %v3141 = vmul.f32 %v3136, 1.442695
        %v3142 = vpow.pop %v3141
        %v3143 = vmul.f32 %v3137, 1.442695
        %v3144 = vpow.pop %v3143
        %v3145 = vmul.f32 %v3138, 1.442695
        %v3146 = vpow.pop %v3145
        %v3147 = vadd.f32 %v3140, 1.0
        %v3148 = vadd.f32 %v3142, 1.0
        %v3149 = vadd.f32 %v3144, 1.0
        %v3150 = vadd.f32 %v3146, 1.0
        %v3151 = vrcp.pop %v3147
        %v3152 = vmul.f32 1.0, %v3151
        %v3153 = vrcp.pop %v3148
        %v3154 = vmul.f32 1.0, %v3153
        %v3155 = vrcp.pop %v3149
        %v3156 = vmul.f32 1.0, %v3155
        %v3157 = vrcp.pop %v3150
        %v3158 = vmul.f32 1.0, %v3157
        %s3159 = scalar_lea.vmem [#allocation4], 128
        %v3160 = vld [vmem:[%s3159] sm:$0xff]
        %v3161 = vld [vmem:[%s3159 + $0x8] sm:$0xff]
        %v3162 = vld [vmem:[%s3159 + $0x10] sm:$0xff]
        %v3163 = vld [vmem:[%s3159 + $0x18] sm:$0xff]
        %v3164 = vld [vmem:[%s3159 + $0x20] sm:$0xff]
        %v3165 = vld [vmem:[%s3159 + $0x28] sm:$0xff]
        %v3166 = vld [vmem:[%s3159 + $0x30] sm:$0xff]
        %v3167 = vld [vmem:[%s3159 + $0x38] sm:$0xff]
        %v3168 = vmul.f32 %v3152, %v2705
        %v3169 = vmul.f32 %v3154, %v2706
        %v3170 = vmul.f32 %v3156, %v2707
        %v3171 = vmul.f32 %v3158, %v2708
        %3172 = vmatprep.subr.mxu0 %v1160
        %3173 = vmatpush1.msra.mxu0 %v1159
        %3174 = vmatprep.subr.mxu0 %v1158
        %3175 = vmatpush1.msra.mxu0 %v1157
        %3176 = vmatprep.subr.mxu0 %v1156
        %3177 = vmatpush1.msra.mxu0 %v1155
        %3178 = vmatprep.subr.mxu0 %v1154
        %3179 = vmatpush1.msra.mxu0 %v1153
        %3180 = vmatprep.subr.mxu0 %v1152
        %3181 = vmatpush1.msra.mxu0 %v1151
        %3182 = vmatprep.subr.mxu0 %v1150
        %3183 = vmatpush1.msra.mxu0 %v1149
        %3184 = vmatprep.subr.mxu0 %v1148
        %3185 = vmatpush1.msra.mxu0 %v1147
        %3186 = vmatprep.subr.mxu0 %v1146
        %3187 = vmatpush1.msra.mxu0 %v1145
        %3188 = vmatprep.subr.mxu0 %v1144
        %3189 = vmatpush1.msra.mxu0 %v1143
        %3190 = vmatprep.subr.mxu0 %v1142
        %3191 = vmatpush1.msra.mxu0 %v1141
        %3192 = vmatprep.subr.mxu0 %v1140
        %3193 = vmatpush1.msra.mxu0 %v1139
        %3194 = vmatprep.subr.mxu0 %v1138
        %3195 = vmatpush1.msra.mxu0 %v1137
        %3196 = vmatprep.subr.mxu0 %v1136
        %3197 = vmatpush1.msra.mxu0 %v1135
        %3198 = vmatprep.subr.mxu0 %v1134
        %3199 = vmatpush1.msra.mxu0 %v1133
        %3200 = vmatprep.subr.mxu0 %v1132
        %3201 = vmatpush1.msra.mxu0 %v1131
        %3202 = vmatprep.subr.mxu0 %v1130
        %3203 = vmatpush1.msra.mxu0 %v1129
        %3204 = vmatprep.subr.mxu0 0.0
        %3205 = vmatpush2.msra.mxu0 0.0
        %3206 = vmatprep.subr.mxu0 0.0
        %3207 = vmatpush2.msra.mxu0 0.0
        %3208 = vmatprep.subr.mxu0 0.0
        %3209 = vmatpush2.msra.mxu0 0.0
        %3210 = vmatprep.subr.mxu0 0.0
        %3211 = vmatpush2.msra.mxu0 0.0
        %3212 = vmatprep.subr.mxu0 0.0
        %3213 = vmatpush2.msra.mxu0 0.0
        %3214 = vmatprep.subr.mxu0 0.0
        %3215 = vmatpush2.msra.mxu0 0.0
        %3216 = vmatprep.subr.mxu0 0.0
        %3217 = vmatpush2.msra.mxu0 0.0
        %3218 = vmatprep.subr.mxu0 0.0
        %3219 = vmatpush2.msra.mxu0 0.0
        %3220 = vmatprep.subr.mxu0 0.0
        %3221 = vmatpush2.msra.mxu0 0.0
        %3222 = vmatprep.subr.mxu0 0.0
        %3223 = vmatpush2.msra.mxu0 0.0
        %3224 = vmatprep.subr.mxu0 0.0
        %3225 = vmatpush2.msra.mxu0 0.0
        %3226 = vmatprep.subr.mxu0 0.0
        %3227 = vmatpush2.msra.mxu0 0.0
        %3228 = vmatprep.subr.mxu0 0.0
        %3229 = vmatpush2.msra.mxu0 0.0
        %3230 = vmatprep.subr.mxu0 0.0
        %3231 = vmatpush2.msra.mxu0 0.0
        %3232 = vmatprep.subr.mxu0 0.0
        %3233 = vmatpush2.msra.mxu0 0.0
        %3234 = vmatprep.subr.mxu0 0.0
        %3235 = vmatpush2.msra.mxu0 0.0
        %3236 = vmatprep.mubr.f32.mxu0 0.0
        %3237 = vmatmul.mubr.f32.gmra.mxu0 %v3168
        %v3238 = vpop.f32.mrf.mxu0
        %v3239 = vadd.f32 0.0, %v3238
        %v3240 = vpop.f32.mrf.mxu0
        %v3241 = vadd.f32 0.0, %v3240
        %3242 = vmatprep.mubr.f32.mxu0 0.0
        %3243 = vmatmul.mubr.f32.gmra.mxu0 %v3169
        %v3244 = vpop.f32.mrf.mxu0
        %v3245 = vadd.f32 0.0, %v3244
        %v3246 = vpop.f32.mrf.mxu0
        %v3247 = vadd.f32 0.0, %v3246
        %3248 = vmatprep.mubr.f32.mxu0 0.0
        %3249 = vmatmul.mubr.f32.gmra.mxu0 %v3170
        %v3250 = vpop.f32.mrf.mxu0
        %v3251 = vadd.f32 0.0, %v3250
        %v3252 = vpop.f32.mrf.mxu0
        %v3253 = vadd.f32 0.0, %v3252
        %3254 = vmatprep.mubr.f32.mxu0 0.0
        %3255 = vmatmul.mubr.f32.gmra.mxu0 %v3171
        %v3256 = vpop.f32.mrf.mxu0
        %v3257 = vadd.f32 0.0, %v3256
        %v3258 = vpop.f32.mrf.mxu0
        %v3259 = vadd.f32 0.0, %v3258
        %3260 = vdwg.mxu0
        %v3261 = vadd.f32 %v3160, %v3239
        %v3262 = vadd.f32 %v3161, %v3241
        %v3263 = vadd.f32 %v3162, %v3245
        %v3264 = vadd.f32 %v3163, %v3247
        %v3265 = vadd.f32 %v3164, %v3251
        %v3266 = vadd.f32 %v3165, %v3253
        %v3267 = vadd.f32 %v3166, %v3257
        %v3268 = vadd.f32 %v3167, %v3259
        %3269 = vmatprep.subr.mxu0 0.0
        %3270 = vmatpush1.msra.mxu0 0.0
        %3271 = vmatprep.subr.mxu0 0.0
        %3272 = vmatpush1.msra.mxu0 0.0
        %3273 = vmatprep.subr.mxu0 0.0
        %3274 = vmatpush1.msra.mxu0 0.0
        %3275 = vmatprep.subr.mxu0 0.0
        %3276 = vmatpush1.msra.mxu0 0.0
        %3277 = vmatprep.subr.mxu0 0.0
        %3278 = vmatpush1.msra.mxu0 0.0
        %3279 = vmatprep.subr.mxu0 0.0
        %3280 = vmatpush1.msra.mxu0 0.0
        %3281 = vmatprep.subr.mxu0 0.0
        %3282 = vmatpush1.msra.mxu0 0.0
        %3283 = vmatprep.subr.mxu0 0.0
        %3284 = vmatpush1.msra.mxu0 0.0
        %3285 = vmatprep.subr.mxu0 0.0
        %3286 = vmatpush1.msra.mxu0 0.0
        %3287 = vmatprep.subr.mxu0 0.0
        %3288 = vmatpush1.msra.mxu0 0.0
        %3289 = vmatprep.subr.mxu0 0.0
        %3290 = vmatpush1.msra.mxu0 0.0
        %3291 = vmatprep.subr.mxu0 0.0
        %3292 = vmatpush1.msra.mxu0 0.0
        %3293 = vmatprep.subr.mxu0 0.0
        %3294 = vmatpush1.msra.mxu0 %v3268
        %3295 = vmatprep.subr.mxu0 0.0
        %3296 = vmatpush1.msra.mxu0 %v3266
        %3297 = vmatprep.subr.mxu0 0.0
        %3298 = vmatpush1.msra.mxu0 %v3264
        %3299 = vmatprep.subr.mxu0 0.0
        %3300 = vmatpush1.msra.mxu0 %v3262
        %3301 = vmatprep.subr.mxu0 0.0
        %3302 = vmatpush2.msra.mxu0 0.0
        %3303 = vmatprep.subr.mxu0 0.0
        %3304 = vmatpush2.msra.mxu0 0.0
        %3305 = vmatprep.subr.mxu0 0.0
        %3306 = vmatpush2.msra.mxu0 0.0
        %3307 = vmatprep.subr.mxu0 0.0
        %3308 = vmatpush2.msra.mxu0 0.0
        %3309 = vmatprep.subr.mxu0 0.0
        %3310 = vmatpush2.msra.mxu0 0.0
        %3311 = vmatprep.subr.mxu0 0.0
        %3312 = vmatpush2.msra.mxu0 0.0
        %3313 = vmatprep.subr.mxu0 0.0
        %3314 = vmatpush2.msra.mxu0 0.0
        %3315 = vmatprep.subr.mxu0 0.0
        %3316 = vmatpush2.msra.mxu0 0.0
        %3317 = vmatprep.subr.mxu0 0.0
        %3318 = vmatpush2.msra.mxu0 0.0
        %3319 = vmatprep.subr.mxu0 0.0
        %3320 = vmatpush2.msra.mxu0 0.0
        %3321 = vmatprep.subr.mxu0 0.0
        %3322 = vmatpush2.msra.mxu0 0.0
        %3323 = vmatprep.subr.mxu0 0.0
        %3324 = vmatpush2.msra.mxu0 0.0
        %3325 = vmatprep.subr.mxu0 0.0
        %3326 = vmatpush2.msra.mxu0 0.0
        %3327 = vmatprep.subr.mxu0 0.0
        %3328 = vmatpush2.msra.mxu0 0.0
        %3329 = vmatprep.subr.mxu0 0.0
        %3330 = vmatpush2.msra.mxu0 0.0
        %3331 = vmatprep.subr.mxu0 0.0
        %3332 = vmatpush2.msra.mxu0 0.0
        %3333 = vmatprep.mubr.f32.mxu0 0.0
        %3334 = vmatmul.mubr.f32.gmra.mxu0 %v1379
        %v3335 = vpop.f32.mrf.mxu0
        %v3336 = vadd.f32 0.0, %v3335
        %v3337 = vpop.f32.mrf.mxu0
        %3338 = vmatprep.mubr.f32.mxu0 0.0
        %3339 = vmatmul.mubr.f32.gmra.mxu0 %v1382
        %v3340 = vpop.f32.mrf.mxu0
        %v3341 = vadd.f32 0.0, %v3340
        %v3342 = vpop.f32.mrf.mxu0
        %3343 = vmatprep.mubr.f32.mxu0 0.0
        %3344 = vmatmul.mubr.f32.gmra.mxu0 %v1385
        %v3345 = vpop.f32.mrf.mxu0
        %v3346 = vadd.f32 0.0, %v3345
        %v3347 = vpop.f32.mrf.mxu0
        %3348 = vmatprep.mubr.f32.mxu0 0.0
        %3349 = vmatmul.mubr.f32.gmra.mxu0 %v1388
        %v3350 = vpop.f32.mrf.mxu0
        %v3351 = vadd.f32 0.0, %v3350
        %v3352 = vpop.f32.mrf.mxu0
        %3353 = vdwg.mxu0
        %3354 = vmatprep.subr.mxu0 0.0
        %3355 = vmatpush1.msra.mxu0 0.0
        %3356 = vmatprep.subr.mxu0 0.0
        %3357 = vmatpush1.msra.mxu0 0.0
        %3358 = vmatprep.subr.mxu0 0.0
        %3359 = vmatpush1.msra.mxu0 0.0
        %3360 = vmatprep.subr.mxu0 0.0
        %3361 = vmatpush1.msra.mxu0 0.0
        %3362 = vmatprep.subr.mxu0 0.0
        %3363 = vmatpush1.msra.mxu0 0.0
        %3364 = vmatprep.subr.mxu0 0.0
        %3365 = vmatpush1.msra.mxu0 0.0
        %3366 = vmatprep.subr.mxu0 0.0
        %3367 = vmatpush1.msra.mxu0 0.0
        %3368 = vmatprep.subr.mxu0 0.0
        %3369 = vmatpush1.msra.mxu0 0.0
        %3370 = vmatprep.subr.mxu0 0.0
        %3371 = vmatpush1.msra.mxu0 0.0
        %3372 = vmatprep.subr.mxu0 0.0
        %3373 = vmatpush1.msra.mxu0 0.0
        %3374 = vmatprep.subr.mxu0 0.0
        %3375 = vmatpush1.msra.mxu0 0.0
        %3376 = vmatprep.subr.mxu0 0.0
        %3377 = vmatpush1.msra.mxu0 0.0
        %3378 = vmatprep.subr.mxu0 0.0
        %3379 = vmatpush1.msra.mxu0 %v3267
        %3380 = vmatprep.subr.mxu0 0.0
        %3381 = vmatpush1.msra.mxu0 %v3265
        %3382 = vmatprep.subr.mxu0 0.0
        %3383 = vmatpush1.msra.mxu0 %v3263
        %3384 = vmatprep.subr.mxu0 0.0
        %3385 = vmatpush1.msra.mxu0 %v3261
        %3386 = vmatprep.subr.mxu0 0.0
        %3387 = vmatpush2.msra.mxu0 0.0
        %3388 = vmatprep.subr.mxu0 0.0
        %3389 = vmatpush2.msra.mxu0 0.0
        %3390 = vmatprep.subr.mxu0 0.0
        %3391 = vmatpush2.msra.mxu0 0.0
        %3392 = vmatprep.subr.mxu0 0.0
        %3393 = vmatpush2.msra.mxu0 0.0
        %3394 = vmatprep.subr.mxu0 0.0
        %3395 = vmatpush2.msra.mxu0 0.0
        %3396 = vmatprep.subr.mxu0 0.0
        %3397 = vmatpush2.msra.mxu0 0.0
        %3398 = vmatprep.subr.mxu0 0.0
        %3399 = vmatpush2.msra.mxu0 0.0
        %3400 = vmatprep.subr.mxu0 0.0
        %3401 = vmatpush2.msra.mxu0 0.0
        %3402 = vmatprep.subr.mxu0 0.0
        %3403 = vmatpush2.msra.mxu0 0.0
        %3404 = vmatprep.subr.mxu0 0.0
        %3405 = vmatpush2.msra.mxu0 0.0
        %3406 = vmatprep.subr.mxu0 0.0
        %3407 = vmatpush2.msra.mxu0 0.0
        %3408 = vmatprep.subr.mxu0 0.0
        %3409 = vmatpush2.msra.mxu0 0.0
        %3410 = vmatprep.subr.mxu0 0.0
        %3411 = vmatpush2.msra.mxu0 0.0
        %3412 = vmatprep.subr.mxu0 0.0
        %3413 = vmatpush2.msra.mxu0 0.0
        %3414 = vmatprep.subr.mxu0 0.0
        %3415 = vmatpush2.msra.mxu0 0.0
        %3416 = vmatprep.subr.mxu0 0.0
        %3417 = vmatpush2.msra.mxu0 0.0
        %3418 = vmatprep.mubr.f32.mxu0 0.0
        %3419 = vmatmul.mubr.f32.gmra.mxu0 %v1480
        %v3420 = vpop.f32.mrf.mxu0
        %v3421 = vadd.f32 %v3336, %v3420
        %v3422 = vpop.f32.mrf.mxu0
        %3423 = vmatprep.mubr.f32.mxu0 0.0
        %3424 = vmatmul.mubr.f32.gmra.mxu0 %v1483
        %v3425 = vpop.f32.mrf.mxu0
        %v3426 = vadd.f32 %v3341, %v3425
        %v3427 = vpop.f32.mrf.mxu0
        %3428 = vmatprep.mubr.f32.mxu0 0.0
        %3429 = vmatmul.mubr.f32.gmra.mxu0 %v1486
        %v3430 = vpop.f32.mrf.mxu0
        %v3431 = vadd.f32 %v3346, %v3430
        %v3432 = vpop.f32.mrf.mxu0
        %3433 = vmatprep.mubr.f32.mxu0 0.0
        %3434 = vmatmul.mubr.f32.gmra.mxu0 %v1489
        %v3435 = vpop.f32.mrf.mxu0
        %v3436 = vadd.f32 %v3351, %v3435
        %v3437 = vpop.f32.mrf.mxu0
        %3438 = vdwg.mxu0
        %v3439 = vadd.f32 %v3421, %v1930
        %v3440 = vadd.f32 %v3426, %v1930
        %v3441 = vadd.f32 %v3431, %v1930
        %v3442 = vadd.f32 %v3436, %v1930
        %v3443 = vtanh.pop %v3439
        %v3444 = vtanh.pop %v3440
        %v3445 = vtanh.pop %v3441
        %v3446 = vtanh.pop %v3442
        %v3447 = vsub.f32 1.0, %v3128
        %v3448 = vsub.f32 1.0, %v3130
        %v3449 = vsub.f32 1.0, %v3132
        %v3450 = vsub.f32 1.0, %v3134
        %v3451 = vmul.f32 %v3447, %v2705
        %v3452 = vmul.f32 %v3448, %v2706
        %v3453 = vmul.f32 %v3449, %v2707
        %v3454 = vmul.f32 %v3450, %v2708
        %v3455 = vmul.f32 %v3128, %v3443
        %v3456 = vmul.f32 %v3130, %v3444
        %v3457 = vmul.f32 %v3132, %v3445
        %v3458 = vmul.f32 %v3134, %v3446
        %v3459 = vadd.f32 %v3451, %v3455
        %v3460 = vadd.f32 %v3452, %v3456
        %v3461 = vadd.f32 %v3453, %v3457
        %v3462 = vadd.f32 %v3454, %v3458
        %s3463 = scalar_lea.vmem %s370, 64 [#allocation11]
        %3464 = vst [vmem:[%s3463] sm:$0xff] %v3459
        %3465 = vst [vmem:[%s3463 + $0x8] sm:$0xff] %v3460
        %3466 = vst [vmem:[%s3463 + $0x10] sm:$0xff] %v3461
        %3467 = vst [vmem:[%s3463 + $0x18] sm:$0xff] %v3462
        %s3468 = scalar_lea.vmem [#allocation3], 384
        %v3469 = vld [vmem:[%s3468] sm:$0xff]
        %v3470 = vld [vmem:[%s3468 + $0x8] sm:$0xff]
        %v3471 = vld [vmem:[%s3468 + $0x10] sm:$0xff]
        %v3472 = vld [vmem:[%s3468 + $0x18] sm:$0xff]
        %v3473 = vld [vmem:[%s3468 + $0x20] sm:$0xff]
        %v3474 = vld [vmem:[%s3468 + $0x28] sm:$0xff]
        %v3475 = vld [vmem:[%s3468 + $0x30] sm:$0xff]
        %v3476 = vld [vmem:[%s3468 + $0x38] sm:$0xff]
        %v3477 = vld [vmem:[%s3468 + $0x40] sm:$0xff]
        %v3478 = vld [vmem:[%s3468 + $0x48] sm:$0xff]
        %v3479 = vld [vmem:[%s3468 + $0x50] sm:$0xff]
        %v3480 = vld [vmem:[%s3468 + $0x58] sm:$0xff]
        %v3481 = vld [vmem:[%s3468 + $0x60] sm:$0xff]
        %v3482 = vld [vmem:[%s3468 + $0x68] sm:$0xff]
        %v3483 = vld [vmem:[%s3468 + $0x70] sm:$0xff]
        %v3484 = vld [vmem:[%s3468 + $0x78] sm:$0xff]
        %3485 = vmatprep.subr.mxu0 %v1126
        %3486 = vmatpush1.msra.mxu0 %v1125
        %3487 = vmatprep.subr.mxu0 %v1122
        %3488 = vmatpush1.msra.mxu0 %v1121
        %3489 = vmatprep.subr.mxu0 %v1118
        %3490 = vmatpush1.msra.mxu0 %v1117
        %3491 = vmatprep.subr.mxu0 %v1114
        %3492 = vmatpush1.msra.mxu0 %v1113
        %3493 = vmatprep.subr.mxu0 %v1110
        %3494 = vmatpush1.msra.mxu0 %v1109
        %3495 = vmatprep.subr.mxu0 %v1106
        %3496 = vmatpush1.msra.mxu0 %v1105
        %3497 = vmatprep.subr.mxu0 %v1102
        %3498 = vmatpush1.msra.mxu0 %v1101
        %3499 = vmatprep.subr.mxu0 %v1098
        %3500 = vmatpush1.msra.mxu0 %v1097
        %3501 = vmatprep.subr.mxu0 %v1094
        %3502 = vmatpush1.msra.mxu0 %v1093
        %3503 = vmatprep.subr.mxu0 %v1090
        %3504 = vmatpush1.msra.mxu0 %v1089
        %3505 = vmatprep.subr.mxu0 %v1086
        %3506 = vmatpush1.msra.mxu0 %v1085
        %3507 = vmatprep.subr.mxu0 %v1082
        %3508 = vmatpush1.msra.mxu0 %v1081
        %3509 = vmatprep.subr.mxu0 %v1078
        %3510 = vmatpush1.msra.mxu0 %v1077
        %3511 = vmatprep.subr.mxu0 %v1074
        %3512 = vmatpush1.msra.mxu0 %v1073
        %3513 = vmatprep.subr.mxu0 %v1070
        %3514 = vmatpush1.msra.mxu0 %v1069
        %3515 = vmatprep.subr.mxu0 %v1066
        %3516 = vmatpush1.msra.mxu0 %v1065
        %3517 = vmatprep.subr.mxu0 0.0
        %3518 = vmatpush2.msra.mxu0 0.0
        %3519 = vmatprep.subr.mxu0 0.0
        %3520 = vmatpush2.msra.mxu0 0.0
        %3521 = vmatprep.subr.mxu0 0.0
        %3522 = vmatpush2.msra.mxu0 0.0
        %3523 = vmatprep.subr.mxu0 0.0
        %3524 = vmatpush2.msra.mxu0 0.0
        %3525 = vmatprep.subr.mxu0 0.0
        %3526 = vmatpush2.msra.mxu0 0.0
        %3527 = vmatprep.subr.mxu0 0.0
        %3528 = vmatpush2.msra.mxu0 0.0
        %3529 = vmatprep.subr.mxu0 0.0
        %3530 = vmatpush2.msra.mxu0 0.0
        %3531 = vmatprep.subr.mxu0 0.0
        %3532 = vmatpush2.msra.mxu0 0.0
        %3533 = vmatprep.subr.mxu0 0.0
        %3534 = vmatpush2.msra.mxu0 0.0
        %3535 = vmatprep.subr.mxu0 0.0
        %3536 = vmatpush2.msra.mxu0 0.0
        %3537 = vmatprep.subr.mxu0 0.0
        %3538 = vmatpush2.msra.mxu0 0.0
        %3539 = vmatprep.subr.mxu0 0.0
        %3540 = vmatpush2.msra.mxu0 0.0
        %3541 = vmatprep.subr.mxu0 0.0
        %3542 = vmatpush2.msra.mxu0 0.0
        %3543 = vmatprep.subr.mxu0 0.0
        %3544 = vmatpush2.msra.mxu0 0.0
        %3545 = vmatprep.subr.mxu0 0.0
        %3546 = vmatpush2.msra.mxu0 0.0
        %3547 = vmatprep.subr.mxu0 0.0
        %3548 = vmatpush2.msra.mxu0 0.0
        %3549 = vmatprep.mubr.f32.mxu0 0.0
        %3550 = vmatmul.mubr.f32.gmra.mxu0 %v3459
        %v3551 = vpop.f32.mrf.mxu0
        %v3552 = vadd.f32 0.0, %v3551
        %v3553 = vpop.f32.mrf.mxu0
        %v3554 = vadd.f32 0.0, %v3553
        %3555 = vmatprep.mubr.f32.mxu0 0.0
        %3556 = vmatmul.mubr.f32.gmra.mxu0 %v3460
        %v3557 = vpop.f32.mrf.mxu0
        %v3558 = vadd.f32 0.0, %v3557
        %v3559 = vpop.f32.mrf.mxu0
        %v3560 = vadd.f32 0.0, %v3559
        %3561 = vmatprep.mubr.f32.mxu0 0.0
        %3562 = vmatmul.mubr.f32.gmra.mxu0 %v3461
        %v3563 = vpop.f32.mrf.mxu0
        %v3564 = vadd.f32 0.0, %v3563
        %v3565 = vpop.f32.mrf.mxu0
        %v3566 = vadd.f32 0.0, %v3565
        %3567 = vmatprep.mubr.f32.mxu0 0.0
        %3568 = vmatmul.mubr.f32.gmra.mxu0 %v3462
        %v3569 = vpop.f32.mrf.mxu0
        %v3570 = vadd.f32 0.0, %v3569
        %v3571 = vpop.f32.mrf.mxu0
        %v3572 = vadd.f32 0.0, %v3571
        %3573 = vdwg.mxu0
        %3574 = vmatprep.subr.mxu0 %v1128
        %3575 = vmatpush1.msra.mxu0 %v1127
        %3576 = vmatprep.subr.mxu0 %v1124
        %3577 = vmatpush1.msra.mxu0 %v1123
        %3578 = vmatprep.subr.mxu0 %v1120
        %3579 = vmatpush1.msra.mxu0 %v1119
        %3580 = vmatprep.subr.mxu0 %v1116
        %3581 = vmatpush1.msra.mxu0 %v1115
        %3582 = vmatprep.subr.mxu0 %v1112
        %3583 = vmatpush1.msra.mxu0 %v1111
        %3584 = vmatprep.subr.mxu0 %v1108
        %3585 = vmatpush1.msra.mxu0 %v1107
        %3586 = vmatprep.subr.mxu0 %v1104
        %3587 = vmatpush1.msra.mxu0 %v1103
        %3588 = vmatprep.subr.mxu0 %v1100
        %3589 = vmatpush1.msra.mxu0 %v1099
        %3590 = vmatprep.subr.mxu0 %v1096
        %3591 = vmatpush1.msra.mxu0 %v1095
        %3592 = vmatprep.subr.mxu0 %v1092
        %3593 = vmatpush1.msra.mxu0 %v1091
        %3594 = vmatprep.subr.mxu0 %v1088
        %3595 = vmatpush1.msra.mxu0 %v1087
        %3596 = vmatprep.subr.mxu0 %v1084
        %3597 = vmatpush1.msra.mxu0 %v1083
        %3598 = vmatprep.subr.mxu0 %v1080
        %3599 = vmatpush1.msra.mxu0 %v1079
        %3600 = vmatprep.subr.mxu0 %v1076
        %3601 = vmatpush1.msra.mxu0 %v1075
        %3602 = vmatprep.subr.mxu0 %v1072
        %3603 = vmatpush1.msra.mxu0 %v1071
        %3604 = vmatprep.subr.mxu0 %v1068
        %3605 = vmatpush1.msra.mxu0 %v1067
        %3606 = vmatprep.subr.mxu0 0.0
        %3607 = vmatpush2.msra.mxu0 0.0
        %3608 = vmatprep.subr.mxu0 0.0
        %3609 = vmatpush2.msra.mxu0 0.0
        %3610 = vmatprep.subr.mxu0 0.0
        %3611 = vmatpush2.msra.mxu0 0.0
        %3612 = vmatprep.subr.mxu0 0.0
        %3613 = vmatpush2.msra.mxu0 0.0
        %3614 = vmatprep.subr.mxu0 0.0
        %3615 = vmatpush2.msra.mxu0 0.0
        %3616 = vmatprep.subr.mxu0 0.0
        %3617 = vmatpush2.msra.mxu0 0.0
        %3618 = vmatprep.subr.mxu0 0.0
        %3619 = vmatpush2.msra.mxu0 0.0
        %3620 = vmatprep.subr.mxu0 0.0
        %3621 = vmatpush2.msra.mxu0 0.0
        %3622 = vmatprep.subr.mxu0 0.0
        %3623 = vmatpush2.msra.mxu0 0.0
        %3624 = vmatprep.subr.mxu0 0.0
        %3625 = vmatpush2.msra.mxu0 0.0
        %3626 = vmatprep.subr.mxu0 0.0
        %3627 = vmatpush2.msra.mxu0 0.0
        %3628 = vmatprep.subr.mxu0 0.0
        %3629 = vmatpush2.msra.mxu0 0.0
        %3630 = vmatprep.subr.mxu0 0.0
        %3631 = vmatpush2.msra.mxu0 0.0
        %3632 = vmatprep.subr.mxu0 0.0
        %3633 = vmatpush2.msra.mxu0 0.0
        %3634 = vmatprep.subr.mxu0 0.0
        %3635 = vmatpush2.msra.mxu0 0.0
        %3636 = vmatprep.subr.mxu0 0.0
        %3637 = vmatpush2.msra.mxu0 0.0
        %3638 = vmatprep.mubr.f32.mxu0 0.0
        %3639 = vmatmul.mubr.f32.gmra.mxu0 %v3459
        %v3640 = vpop.f32.mrf.mxu0
        %v3641 = vadd.f32 0.0, %v3640
        %v3642 = vpop.f32.mrf.mxu0
        %v3643 = vadd.f32 0.0, %v3642
        %3644 = vmatprep.mubr.f32.mxu0 0.0
        %3645 = vmatmul.mubr.f32.gmra.mxu0 %v3460
        %v3646 = vpop.f32.mrf.mxu0
        %v3647 = vadd.f32 0.0, %v3646
        %v3648 = vpop.f32.mrf.mxu0
        %v3649 = vadd.f32 0.0, %v3648
        %3650 = vmatprep.mubr.f32.mxu0 0.0
        %3651 = vmatmul.mubr.f32.gmra.mxu0 %v3461
        %v3652 = vpop.f32.mrf.mxu0
        %v3653 = vadd.f32 0.0, %v3652
        %v3654 = vpop.f32.mrf.mxu0
        %v3655 = vadd.f32 0.0, %v3654
        %3656 = vmatprep.mubr.f32.mxu0 0.0
        %3657 = vmatmul.mubr.f32.gmra.mxu0 %v3462
        %v3658 = vpop.f32.mrf.mxu0
        %v3659 = vadd.f32 0.0, %v3658
        %v3660 = vpop.f32.mrf.mxu0
        %v3661 = vadd.f32 0.0, %v3660
        %3662 = vdwg.mxu0
        %v3663 = vadd.f32 %v3469, %v3552
        %v3664 = vadd.f32 %v3470, %v3554
        %v3665 = vadd.f32 %v3471, %v3641
        %v3666 = vadd.f32 %v3472, %v3643
        %v3667 = vadd.f32 %v3473, %v3558
        %v3668 = vadd.f32 %v3474, %v3560
        %v3669 = vadd.f32 %v3475, %v3647
        %v3670 = vadd.f32 %v3476, %v3649
        %v3671 = vadd.f32 %v3477, %v3564
        %v3672 = vadd.f32 %v3478, %v3566
        %v3673 = vadd.f32 %v3479, %v3653
        %v3674 = vadd.f32 %v3480, %v3655
        %v3675 = vadd.f32 %v3481, %v3570
        %v3676 = vadd.f32 %v3482, %v3572
        %v3677 = vadd.f32 %v3483, %v3659
        %v3678 = vadd.f32 %v3484, %v3661
        %3679 = vmatprep.subr.mxu0 0.0
        %3680 = vmatpush1.msra.mxu0 0.0
        %3681 = vmatprep.subr.mxu0 0.0
        %3682 = vmatpush1.msra.mxu0 0.0
        %3683 = vmatprep.subr.mxu0 0.0
        %3684 = vmatpush1.msra.mxu0 0.0
        %3685 = vmatprep.subr.mxu0 0.0
        %3686 = vmatpush1.msra.mxu0 0.0
        %3687 = vmatprep.subr.mxu0 0.0
        %3688 = vmatpush1.msra.mxu0 0.0
        %3689 = vmatprep.subr.mxu0 0.0
        %3690 = vmatpush1.msra.mxu0 0.0
        %3691 = vmatprep.subr.mxu0 0.0
        %3692 = vmatpush1.msra.mxu0 0.0
        %3693 = vmatprep.subr.mxu0 0.0
        %3694 = vmatpush1.msra.mxu0 0.0
        %3695 = vmatprep.subr.mxu0 0.0
        %3696 = vmatpush1.msra.mxu0 0.0
        %3697 = vmatprep.subr.mxu0 0.0
        %3698 = vmatpush1.msra.mxu0 0.0
        %3699 = vmatprep.subr.mxu0 0.0
        %3700 = vmatpush1.msra.mxu0 0.0
        %3701 = vmatprep.subr.mxu0 0.0
        %3702 = vmatpush1.msra.mxu0 0.0
        %3703 = vmatprep.subr.mxu0 %v3678
        %3704 = vmatpush1.msra.mxu0 %v3677
        %3705 = vmatprep.subr.mxu0 %v3674
        %3706 = vmatpush1.msra.mxu0 %v3673
        %3707 = vmatprep.subr.mxu0 %v3670
        %3708 = vmatpush1.msra.mxu0 %v3669
        %3709 = vmatprep.subr.mxu0 %v3666
        %3710 = vmatpush1.msra.mxu0 %v3665
        %3711 = vmatprep.subr.mxu0 0.0
        %3712 = vmatpush2.msra.mxu0 0.0
        %3713 = vmatprep.subr.mxu0 0.0
        %3714 = vmatpush2.msra.mxu0 0.0
        %3715 = vmatprep.subr.mxu0 0.0
        %3716 = vmatpush2.msra.mxu0 0.0
        %3717 = vmatprep.subr.mxu0 0.0
        %3718 = vmatpush2.msra.mxu0 0.0
        %3719 = vmatprep.subr.mxu0 0.0
        %3720 = vmatpush2.msra.mxu0 0.0
        %3721 = vmatprep.subr.mxu0 0.0
        %3722 = vmatpush2.msra.mxu0 0.0
        %3723 = vmatprep.subr.mxu0 0.0
        %3724 = vmatpush2.msra.mxu0 0.0
        %3725 = vmatprep.subr.mxu0 0.0
        %3726 = vmatpush2.msra.mxu0 0.0
        %3727 = vmatprep.subr.mxu0 0.0
        %3728 = vmatpush2.msra.mxu0 0.0
        %3729 = vmatprep.subr.mxu0 0.0
        %3730 = vmatpush2.msra.mxu0 0.0
        %3731 = vmatprep.subr.mxu0 0.0
        %3732 = vmatpush2.msra.mxu0 0.0
        %3733 = vmatprep.subr.mxu0 0.0
        %3734 = vmatpush2.msra.mxu0 0.0
        %3735 = vmatprep.subr.mxu0 0.0
        %3736 = vmatpush2.msra.mxu0 0.0
        %3737 = vmatprep.subr.mxu0 0.0
        %3738 = vmatpush2.msra.mxu0 0.0
        %3739 = vmatprep.subr.mxu0 0.0
        %3740 = vmatpush2.msra.mxu0 0.0
        %3741 = vmatprep.subr.mxu0 0.0
        %3742 = vmatpush2.msra.mxu0 0.0
        %3743 = vmatprep.mubr.f32.mxu0 0.0
        %3744 = vmatmul.mubr.f32.gmra.mxu0 %v1379
        %v3745 = vpop.f32.mrf.mxu0
        %v3746 = vadd.f32 0.0, %v3745
        %v3747 = vpop.f32.mrf.mxu0
        %v3748 = vadd.f32 0.0, %v3747
        %3749 = vmatprep.mubr.f32.mxu0 0.0
        %3750 = vmatmul.mubr.f32.gmra.mxu0 %v1382
        %v3751 = vpop.f32.mrf.mxu0
        %v3752 = vadd.f32 0.0, %v3751
        %v3753 = vpop.f32.mrf.mxu0
        %v3754 = vadd.f32 0.0, %v3753
        %3755 = vmatprep.mubr.f32.mxu0 0.0
        %3756 = vmatmul.mubr.f32.gmra.mxu0 %v1385
        %v3757 = vpop.f32.mrf.mxu0
        %v3758 = vadd.f32 0.0, %v3757
        %v3759 = vpop.f32.mrf.mxu0
        %v3760 = vadd.f32 0.0, %v3759
        %3761 = vmatprep.mubr.f32.mxu0 0.0
        %3762 = vmatmul.mubr.f32.gmra.mxu0 %v1388
        %v3763 = vpop.f32.mrf.mxu0
        %v3764 = vadd.f32 0.0, %v3763
        %v3765 = vpop.f32.mrf.mxu0
        %v3766 = vadd.f32 0.0, %v3765
        %3767 = vdwg.mxu0
        %3768 = vmatprep.subr.mxu0 0.0
        %3769 = vmatpush1.msra.mxu0 0.0
        %3770 = vmatprep.subr.mxu0 0.0
        %3771 = vmatpush1.msra.mxu0 0.0
        %3772 = vmatprep.subr.mxu0 0.0
        %3773 = vmatpush1.msra.mxu0 0.0
        %3774 = vmatprep.subr.mxu0 0.0
        %3775 = vmatpush1.msra.mxu0 0.0
        %3776 = vmatprep.subr.mxu0 0.0
        %3777 = vmatpush1.msra.mxu0 0.0
        %3778 = vmatprep.subr.mxu0 0.0
        %3779 = vmatpush1.msra.mxu0 0.0
        %3780 = vmatprep.subr.mxu0 0.0
        %3781 = vmatpush1.msra.mxu0 0.0
        %3782 = vmatprep.subr.mxu0 0.0
        %3783 = vmatpush1.msra.mxu0 0.0
        %3784 = vmatprep.subr.mxu0 0.0
        %3785 = vmatpush1.msra.mxu0 0.0
        %3786 = vmatprep.subr.mxu0 0.0
        %3787 = vmatpush1.msra.mxu0 0.0
        %3788 = vmatprep.subr.mxu0 0.0
        %3789 = vmatpush1.msra.mxu0 0.0
        %3790 = vmatprep.subr.mxu0 0.0
        %3791 = vmatpush1.msra.mxu0 0.0
        %3792 = vmatprep.subr.mxu0 %v3676
        %3793 = vmatpush1.msra.mxu0 %v3675
        %3794 = vmatprep.subr.mxu0 %v3672
        %3795 = vmatpush1.msra.mxu0 %v3671
        %3796 = vmatprep.subr.mxu0 %v3668
        %3797 = vmatpush1.msra.mxu0 %v3667
        %3798 = vmatprep.subr.mxu0 %v3664
        %3799 = vmatpush1.msra.mxu0 %v3663
        %3800 = vmatprep.subr.mxu0 0.0
        %3801 = vmatpush2.msra.mxu0 0.0
        %3802 = vmatprep.subr.mxu0 0.0
        %3803 = vmatpush2.msra.mxu0 0.0
        %3804 = vmatprep.subr.mxu0 0.0
        %3805 = vmatpush2.msra.mxu0 0.0
        %3806 = vmatprep.subr.mxu0 0.0
        %3807 = vmatpush2.msra.mxu0 0.0
        %3808 = vmatprep.subr.mxu0 0.0
        %3809 = vmatpush2.msra.mxu0 0.0
        %3810 = vmatprep.subr.mxu0 0.0
        %3811 = vmatpush2.msra.mxu0 0.0
        %3812 = vmatprep.subr.mxu0 0.0
        %3813 = vmatpush2.msra.mxu0 0.0
        %3814 = vmatprep.subr.mxu0 0.0
        %3815 = vmatpush2.msra.mxu0 0.0
        %3816 = vmatprep.subr.mxu0 0.0
        %3817 = vmatpush2.msra.mxu0 0.0
        %3818 = vmatprep.subr.mxu0 0.0
        %3819 = vmatpush2.msra.mxu0 0.0
        %3820 = vmatprep.subr.mxu0 0.0
        %3821 = vmatpush2.msra.mxu0 0.0
        %3822 = vmatprep.subr.mxu0 0.0
        %3823 = vmatpush2.msra.mxu0 0.0
        %3824 = vmatprep.subr.mxu0 0.0
        %3825 = vmatpush2.msra.mxu0 0.0
        %3826 = vmatprep.subr.mxu0 0.0
        %3827 = vmatpush2.msra.mxu0 0.0
        %3828 = vmatprep.subr.mxu0 0.0
        %3829 = vmatpush2.msra.mxu0 0.0
        %3830 = vmatprep.subr.mxu0 0.0
        %3831 = vmatpush2.msra.mxu0 0.0
        %3832 = vmatprep.mubr.f32.mxu0 0.0
        %3833 = vmatmul.mubr.f32.gmra.mxu0 %v1480
        %v3834 = vpop.f32.mrf.mxu0
        %v3835 = vadd.f32 %v3746, %v3834
        %v3836 = vpop.f32.mrf.mxu0
        %v3837 = vadd.f32 %v3748, %v3836
        %3838 = vmatprep.mubr.f32.mxu0 0.0
        %3839 = vmatmul.mubr.f32.gmra.mxu0 %v1483
        %v3840 = vpop.f32.mrf.mxu0
        %v3841 = vadd.f32 %v3752, %v3840
        %v3842 = vpop.f32.mrf.mxu0
        %v3843 = vadd.f32 %v3754, %v3842
        %3844 = vmatprep.mubr.f32.mxu0 0.0
        %3845 = vmatmul.mubr.f32.gmra.mxu0 %v1486
        %v3846 = vpop.f32.mrf.mxu0
        %v3847 = vadd.f32 %v3758, %v3846
        %v3848 = vpop.f32.mrf.mxu0
        %v3849 = vadd.f32 %v3760, %v3848
        %3850 = vmatprep.mubr.f32.mxu0 0.0
        %3851 = vmatmul.mubr.f32.gmra.mxu0 %v1489
        %v3852 = vpop.f32.mrf.mxu0
        %v3853 = vadd.f32 %v3764, %v3852
        %v3854 = vpop.f32.mrf.mxu0
        %v3855 = vadd.f32 %v3766, %v3854
        %3856 = vdwg.mxu0
        %v3857 = vadd.f32 %v3835, %v1584
        %v3858 = vadd.f32 %v3837, %v1588
        %v3859 = vadd.f32 %v3841, %v1584
        %v3860 = vadd.f32 %v3843, %v1588
        %v3861 = vadd.f32 %v3847, %v1584
        %v3862 = vadd.f32 %v3849, %v1588
        %v3863 = vadd.f32 %v3853, %v1584
        %v3864 = vadd.f32 %v3855, %v1588
        %v3865 = vxor.u32 %v3857, 2147483648
        %v3866 = vxor.u32 %v3859, 2147483648
        %v3867 = vxor.u32 %v3861, 2147483648
        %v3868 = vxor.u32 %v3863, 2147483648
        %v3869 = vmul.f32 %v3865, 1.442695
        %v3870 = vpow.pop %v3869
        %v3871 = vmul.f32 %v3866, 1.442695
        %v3872 = vpow.pop %v3871
        %v3873 = vmul.f32 %v3867, 1.442695
        %v3874 = vpow.pop %v3873
        %v3875 = vmul.f32 %v3868, 1.442695
        %v3876 = vpow.pop %v3875
        %v3877 = vadd.f32 %v3870, 1.0
        %v3878 = vadd.f32 %v3872, 1.0
        %v3879 = vadd.f32 %v3874, 1.0
        %v3880 = vadd.f32 %v3876, 1.0
        %v3881 = vrcp.pop %v3877
        %v3882 = vmul.f32 1.0, %v3881
        %v3883 = vrcp.pop %v3878
        %v3884 = vmul.f32 1.0, %v3883
        %v3885 = vrcp.pop %v3879
        %v3886 = vmul.f32 1.0, %v3885
        %v3887 = vrcp.pop %v3880
        %v3888 = vmul.f32 1.0, %v3887
        %v3889 = vxor.u32 %v3858, 2147483648
        %v3890 = vxor.u32 %v3860, 2147483648
        %v3891 = vxor.u32 %v3862, 2147483648
        %v3892 = vxor.u32 %v3864, 2147483648
        %v3893 = vmul.f32 %v3889, 1.442695
        %v3894 = vpow.pop %v3893
        %v3895 = vmul.f32 %v3890, 1.442695
        %v3896 = vpow.pop %v3895
        %v3897 = vmul.f32 %v3891, 1.442695
        %v3898 = vpow.pop %v3897
        %v3899 = vmul.f32 %v3892, 1.442695
        %v3900 = vpow.pop %v3899
        %v3901 = vadd.f32 %v3894, 1.0
        %v3902 = vadd.f32 %v3896, 1.0
        %v3903 = vadd.f32 %v3898, 1.0
        %v3904 = vadd.f32 %v3900, 1.0
        %v3905 = vrcp.pop %v3901
        %v3906 = vmul.f32 1.0, %v3905
        %v3907 = vrcp.pop %v3902
        %v3908 = vmul.f32 1.0, %v3907
        %v3909 = vrcp.pop %v3903
        %v3910 = vmul.f32 1.0, %v3909
        %v3911 = vrcp.pop %v3904
        %v3912 = vmul.f32 1.0, %v3911
        %s3913 = scalar_lea.vmem [#allocation4], 192
        %v3914 = vld [vmem:[%s3913] sm:$0xff]
        %v3915 = vld [vmem:[%s3913 + $0x8] sm:$0xff]
        %v3916 = vld [vmem:[%s3913 + $0x10] sm:$0xff]
        %v3917 = vld [vmem:[%s3913 + $0x18] sm:$0xff]
        %v3918 = vld [vmem:[%s3913 + $0x20] sm:$0xff]
        %v3919 = vld [vmem:[%s3913 + $0x28] sm:$0xff]
        %v3920 = vld [vmem:[%s3913 + $0x30] sm:$0xff]
        %v3921 = vld [vmem:[%s3913 + $0x38] sm:$0xff]
        %v3922 = vmul.f32 %v3906, %v3459
        %v3923 = vmul.f32 %v3908, %v3460
        %v3924 = vmul.f32 %v3910, %v3461
        %v3925 = vmul.f32 %v3912, %v3462
        %3926 = vmatprep.subr.mxu0 %v1160
        %3927 = vmatpush1.msra.mxu0 %v1159
        %3928 = vmatprep.subr.mxu0 %v1158
        %3929 = vmatpush1.msra.mxu0 %v1157
        %3930 = vmatprep.subr.mxu0 %v1156
        %3931 = vmatpush1.msra.mxu0 %v1155
        %3932 = vmatprep.subr.mxu0 %v1154
        %3933 = vmatpush1.msra.mxu0 %v1153
        %3934 = vmatprep.subr.mxu0 %v1152
        %3935 = vmatpush1.msra.mxu0 %v1151
        %3936 = vmatprep.subr.mxu0 %v1150
        %3937 = vmatpush1.msra.mxu0 %v1149
        %3938 = vmatprep.subr.mxu0 %v1148
        %3939 = vmatpush1.msra.mxu0 %v1147
        %3940 = vmatprep.subr.mxu0 %v1146
        %3941 = vmatpush1.msra.mxu0 %v1145
        %3942 = vmatprep.subr.mxu0 %v1144
        %3943 = vmatpush1.msra.mxu0 %v1143
        %3944 = vmatprep.subr.mxu0 %v1142
        %3945 = vmatpush1.msra.mxu0 %v1141
        %3946 = vmatprep.subr.mxu0 %v1140
        %3947 = vmatpush1.msra.mxu0 %v1139
        %3948 = vmatprep.subr.mxu0 %v1138
        %3949 = vmatpush1.msra.mxu0 %v1137
        %3950 = vmatprep.subr.mxu0 %v1136
        %3951 = vmatpush1.msra.mxu0 %v1135
        %3952 = vmatprep.subr.mxu0 %v1134
        %3953 = vmatpush1.msra.mxu0 %v1133
        %3954 = vmatprep.subr.mxu0 %v1132
        %3955 = vmatpush1.msra.mxu0 %v1131
        %3956 = vmatprep.subr.mxu0 %v1130
        %3957 = vmatpush1.msra.mxu0 %v1129
        %3958 = vmatprep.subr.mxu0 0.0
        %3959 = vmatpush2.msra.mxu0 0.0
        %3960 = vmatprep.subr.mxu0 0.0
        %3961 = vmatpush2.msra.mxu0 0.0
        %3962 = vmatprep.subr.mxu0 0.0
        %3963 = vmatpush2.msra.mxu0 0.0
        %3964 = vmatprep.subr.mxu0 0.0
        %3965 = vmatpush2.msra.mxu0 0.0
        %3966 = vmatprep.subr.mxu0 0.0
        %3967 = vmatpush2.msra.mxu0 0.0
        %3968 = vmatprep.subr.mxu0 0.0
        %3969 = vmatpush2.msra.mxu0 0.0
        %3970 = vmatprep.subr.mxu0 0.0
        %3971 = vmatpush2.msra.mxu0 0.0
        %3972 = vmatprep.subr.mxu0 0.0
        %3973 = vmatpush2.msra.mxu0 0.0
        %3974 = vmatprep.subr.mxu0 0.0
        %3975 = vmatpush2.msra.mxu0 0.0
        %3976 = vmatprep.subr.mxu0 0.0
        %3977 = vmatpush2.msra.mxu0 0.0
        %3978 = vmatprep.subr.mxu0 0.0
        %3979 = vmatpush2.msra.mxu0 0.0
        %3980 = vmatprep.subr.mxu0 0.0
        %3981 = vmatpush2.msra.mxu0 0.0
        %3982 = vmatprep.subr.mxu0 0.0
        %3983 = vmatpush2.msra.mxu0 0.0
        %3984 = vmatprep.subr.mxu0 0.0
        %3985 = vmatpush2.msra.mxu0 0.0
        %3986 = vmatprep.subr.mxu0 0.0
        %3987 = vmatpush2.msra.mxu0 0.0
        %3988 = vmatprep.subr.mxu0 0.0
        %3989 = vmatpush2.msra.mxu0 0.0
        %3990 = vmatprep.mubr.f32.mxu0 0.0
        %3991 = vmatmul.mubr.f32.gmra.mxu0 %v3922
        %v3992 = vpop.f32.mrf.mxu0
        %v3993 = vadd.f32 0.0, %v3992
        %v3994 = vpop.f32.mrf.mxu0
        %v3995 = vadd.f32 0.0, %v3994
        %3996 = vmatprep.mubr.f32.mxu0 0.0
        %3997 = vmatmul.mubr.f32.gmra.mxu0 %v3923
        %v3998 = vpop.f32.mrf.mxu0
        %v3999 = vadd.f32 0.0, %v3998
        %v4000 = vpop.f32.mrf.mxu0
        %v4001 = vadd.f32 0.0, %v4000
        %4002 = vmatprep.mubr.f32.mxu0 0.0
        %4003 = vmatmul.mubr.f32.gmra.mxu0 %v3924
        %v4004 = vpop.f32.mrf.mxu0
        %v4005 = vadd.f32 0.0, %v4004
        %v4006 = vpop.f32.mrf.mxu0
        %v4007 = vadd.f32 0.0, %v4006
        %4008 = vmatprep.mubr.f32.mxu0 0.0
        %4009 = vmatmul.mubr.f32.gmra.mxu0 %v3925
        %v4010 = vpop.f32.mrf.mxu0
        %v4011 = vadd.f32 0.0, %v4010
        %v4012 = vpop.f32.mrf.mxu0
        %v4013 = vadd.f32 0.0, %v4012
        %4014 = vdwg.mxu0
        %v4015 = vadd.f32 %v3914, %v3993
        %v4016 = vadd.f32 %v3915, %v3995
        %v4017 = vadd.f32 %v3916, %v3999
        %v4018 = vadd.f32 %v3917, %v4001
        %v4019 = vadd.f32 %v3918, %v4005
        %v4020 = vadd.f32 %v3919, %v4007
        %v4021 = vadd.f32 %v3920, %v4011
        %v4022 = vadd.f32 %v3921, %v4013
        %4023 = vmatprep.subr.mxu0 0.0
        %4024 = vmatpush1.msra.mxu0 0.0
        %4025 = vmatprep.subr.mxu0 0.0
        %4026 = vmatpush1.msra.mxu0 0.0
        %4027 = vmatprep.subr.mxu0 0.0
        %4028 = vmatpush1.msra.mxu0 0.0
        %4029 = vmatprep.subr.mxu0 0.0
        %4030 = vmatpush1.msra.mxu0 0.0
        %4031 = vmatprep.subr.mxu0 0.0
        %4032 = vmatpush1.msra.mxu0 0.0
        %4033 = vmatprep.subr.mxu0 0.0
        %4034 = vmatpush1.msra.mxu0 0.0
        %4035 = vmatprep.subr.mxu0 0.0
        %4036 = vmatpush1.msra.mxu0 0.0
        %4037 = vmatprep.subr.mxu0 0.0
        %4038 = vmatpush1.msra.mxu0 0.0
        %4039 = vmatprep.subr.mxu0 0.0
        %4040 = vmatpush1.msra.mxu0 0.0
        %4041 = vmatprep.subr.mxu0 0.0
        %4042 = vmatpush1.msra.mxu0 0.0
        %4043 = vmatprep.subr.mxu0 0.0
        %4044 = vmatpush1.msra.mxu0 0.0
        %4045 = vmatprep.subr.mxu0 0.0
        %4046 = vmatpush1.msra.mxu0 0.0
        %4047 = vmatprep.subr.mxu0 0.0
        %4048 = vmatpush1.msra.mxu0 %v4022
        %4049 = vmatprep.subr.mxu0 0.0
        %4050 = vmatpush1.msra.mxu0 %v4020
        %4051 = vmatprep.subr.mxu0 0.0
        %4052 = vmatpush1.msra.mxu0 %v4018
        %4053 = vmatprep.subr.mxu0 0.0
        %4054 = vmatpush1.msra.mxu0 %v4016
        %4055 = vmatprep.subr.mxu0 0.0
        %4056 = vmatpush2.msra.mxu0 0.0
        %4057 = vmatprep.subr.mxu0 0.0
        %4058 = vmatpush2.msra.mxu0 0.0
        %4059 = vmatprep.subr.mxu0 0.0
        %4060 = vmatpush2.msra.mxu0 0.0
        %4061 = vmatprep.subr.mxu0 0.0
        %4062 = vmatpush2.msra.mxu0 0.0
        %4063 = vmatprep.subr.mxu0 0.0
        %4064 = vmatpush2.msra.mxu0 0.0
        %4065 = vmatprep.subr.mxu0 0.0
        %4066 = vmatpush2.msra.mxu0 0.0
        %4067 = vmatprep.subr.mxu0 0.0
        %4068 = vmatpush2.msra.mxu0 0.0
        %4069 = vmatprep.subr.mxu0 0.0
        %4070 = vmatpush2.msra.mxu0 0.0
        %4071 = vmatprep.subr.mxu0 0.0
        %4072 = vmatpush2.msra.mxu0 0.0
        %4073 = vmatprep.subr.mxu0 0.0
        %4074 = vmatpush2.msra.mxu0 0.0
        %4075 = vmatprep.subr.mxu0 0.0
        %4076 = vmatpush2.msra.mxu0 0.0
        %4077 = vmatprep.subr.mxu0 0.0
        %4078 = vmatpush2.msra.mxu0 0.0
        %4079 = vmatprep.subr.mxu0 0.0
        %4080 = vmatpush2.msra.mxu0 0.0
        %4081 = vmatprep.subr.mxu0 0.0
        %4082 = vmatpush2.msra.mxu0 0.0
        %4083 = vmatprep.subr.mxu0 0.0
        %4084 = vmatpush2.msra.mxu0 0.0
        %4085 = vmatprep.subr.mxu0 0.0
        %4086 = vmatpush2.msra.mxu0 0.0
        %4087 = vmatprep.mubr.f32.mxu0 0.0
        %4088 = vmatmul.mubr.f32.gmra.mxu0 %v1379
        %v4089 = vpop.f32.mrf.mxu0
        %v4090 = vadd.f32 0.0, %v4089
        %v4091 = vpop.f32.mrf.mxu0
        %4092 = vmatprep.mubr.f32.mxu0 0.0
        %4093 = vmatmul.mubr.f32.gmra.mxu0 %v1382
        %v4094 = vpop.f32.mrf.mxu0
        %v4095 = vadd.f32 0.0, %v4094
        %v4096 = vpop.f32.mrf.mxu0
        %4097 = vmatprep.mubr.f32.mxu0 0.0
        %4098 = vmatmul.mubr.f32.gmra.mxu0 %v1385
        %v4099 = vpop.f32.mrf.mxu0
        %v4100 = vadd.f32 0.0, %v4099
        %v4101 = vpop.f32.mrf.mxu0
        %4102 = vmatprep.mubr.f32.mxu0 0.0
        %4103 = vmatmul.mubr.f32.gmra.mxu0 %v1388
        %v4104 = vpop.f32.mrf.mxu0
        %v4105 = vadd.f32 0.0, %v4104
        %v4106 = vpop.f32.mrf.mxu0
        %4107 = vdwg.mxu0
        %4108 = vmatprep.subr.mxu0 0.0
        %4109 = vmatpush1.msra.mxu0 0.0
        %4110 = vmatprep.subr.mxu0 0.0
        %4111 = vmatpush1.msra.mxu0 0.0
        %4112 = vmatprep.subr.mxu0 0.0
        %4113 = vmatpush1.msra.mxu0 0.0
        %4114 = vmatprep.subr.mxu0 0.0
        %4115 = vmatpush1.msra.mxu0 0.0
        %4116 = vmatprep.subr.mxu0 0.0
        %4117 = vmatpush1.msra.mxu0 0.0
        %4118 = vmatprep.subr.mxu0 0.0
        %4119 = vmatpush1.msra.mxu0 0.0
        %4120 = vmatprep.subr.mxu0 0.0
        %4121 = vmatpush1.msra.mxu0 0.0
        %4122 = vmatprep.subr.mxu0 0.0
        %4123 = vmatpush1.msra.mxu0 0.0
        %4124 = vmatprep.subr.mxu0 0.0
        %4125 = vmatpush1.msra.mxu0 0.0
        %4126 = vmatprep.subr.mxu0 0.0
        %4127 = vmatpush1.msra.mxu0 0.0
        %4128 = vmatprep.subr.mxu0 0.0
        %4129 = vmatpush1.msra.mxu0 0.0
        %4130 = vmatprep.subr.mxu0 0.0
        %4131 = vmatpush1.msra.mxu0 0.0
        %4132 = vmatprep.subr.mxu0 0.0
        %4133 = vmatpush1.msra.mxu0 %v4021
        %4134 = vmatprep.subr.mxu0 0.0
        %4135 = vmatpush1.msra.mxu0 %v4019
        %4136 = vmatprep.subr.mxu0 0.0
        %4137 = vmatpush1.msra.mxu0 %v4017
        %4138 = vmatprep.subr.mxu0 0.0
        %4139 = vmatpush1.msra.mxu0 %v4015
        %4140 = vmatprep.subr.mxu0 0.0
        %4141 = vmatpush2.msra.mxu0 0.0
        %4142 = vmatprep.subr.mxu0 0.0
        %4143 = vmatpush2.msra.mxu0 0.0
        %4144 = vmatprep.subr.mxu0 0.0
        %4145 = vmatpush2.msra.mxu0 0.0
        %4146 = vmatprep.subr.mxu0 0.0
        %4147 = vmatpush2.msra.mxu0 0.0
        %4148 = vmatprep.subr.mxu0 0.0
        %4149 = vmatpush2.msra.mxu0 0.0
        %4150 = vmatprep.subr.mxu0 0.0
        %4151 = vmatpush2.msra.mxu0 0.0
        %4152 = vmatprep.subr.mxu0 0.0
        %4153 = vmatpush2.msra.mxu0 0.0
        %4154 = vmatprep.subr.mxu0 0.0
        %4155 = vmatpush2.msra.mxu0 0.0
        %4156 = vmatprep.subr.mxu0 0.0
        %4157 = vmatpush2.msra.mxu0 0.0
        %4158 = vmatprep.subr.mxu0 0.0
        %4159 = vmatpush2.msra.mxu0 0.0
        %4160 = vmatprep.subr.mxu0 0.0
        %4161 = vmatpush2.msra.mxu0 0.0
        %4162 = vmatprep.subr.mxu0 0.0
        %4163 = vmatpush2.msra.mxu0 0.0
        %4164 = vmatprep.subr.mxu0 0.0
        %4165 = vmatpush2.msra.mxu0 0.0
        %4166 = vmatprep.subr.mxu0 0.0
        %4167 = vmatpush2.msra.mxu0 0.0
        %4168 = vmatprep.subr.mxu0 0.0
        %4169 = vmatpush2.msra.mxu0 0.0
        %4170 = vmatprep.subr.mxu0 0.0
        %4171 = vmatpush2.msra.mxu0 0.0
        %4172 = vmatprep.mubr.f32.mxu0 0.0
        %4173 = vmatmul.mubr.f32.gmra.mxu0 %v1480
        %v4174 = vpop.f32.mrf.mxu0
        %v4175 = vadd.f32 %v4090, %v4174
        %v4176 = vpop.f32.mrf.mxu0
        %4177 = vmatprep.mubr.f32.mxu0 0.0
        %4178 = vmatmul.mubr.f32.gmra.mxu0 %v1483
        %v4179 = vpop.f32.mrf.mxu0
        %v4180 = vadd.f32 %v4095, %v4179
        %v4181 = vpop.f32.mrf.mxu0
        %4182 = vmatprep.mubr.f32.mxu0 0.0
        %4183 = vmatmul.mubr.f32.gmra.mxu0 %v1486
        %v4184 = vpop.f32.mrf.mxu0
        %v4185 = vadd.f32 %v4100, %v4184
        %v4186 = vpop.f32.mrf.mxu0
        %4187 = vmatprep.mubr.f32.mxu0 0.0
        %4188 = vmatmul.mubr.f32.gmra.mxu0 %v1489
        %v4189 = vpop.f32.mrf.mxu0
        %v4190 = vadd.f32 %v4105, %v4189
        %v4191 = vpop.f32.mrf.mxu0
        %4192 = vdwg.mxu0
        %v4193 = vadd.f32 %v4175, %v1930
        %v4194 = vadd.f32 %v4180, %v1930
        %v4195 = vadd.f32 %v4185, %v1930
        %v4196 = vadd.f32 %v4190, %v1930
        %v4197 = vtanh.pop %v4193
        %v4198 = vtanh.pop %v4194
        %v4199 = vtanh.pop %v4195
        %v4200 = vtanh.pop %v4196
        %v4201 = vsub.f32 1.0, %v3882
        %v4202 = vsub.f32 1.0, %v3884
        %v4203 = vsub.f32 1.0, %v3886
        %v4204 = vsub.f32 1.0, %v3888
        %v4205 = vmul.f32 %v4201, %v3459
        %v4206 = vmul.f32 %v4202, %v3460
        %v4207 = vmul.f32 %v4203, %v3461
        %v4208 = vmul.f32 %v4204, %v3462
        %v4209 = vmul.f32 %v3882, %v4197
        %v4210 = vmul.f32 %v3884, %v4198
        %v4211 = vmul.f32 %v3886, %v4199
        %v4212 = vmul.f32 %v3888, %v4200
        %v4213 = vadd.f32 %v4205, %v4209
        %v4214 = vadd.f32 %v4206, %v4210
        %v4215 = vadd.f32 %v4207, %v4211
        %v4216 = vadd.f32 %v4208, %v4212
        %s4217 = scalar_lea.vmem %s370, 96 [#allocation11]
        %4218 = vst [vmem:[%s4217] sm:$0xff] %v4213
        %4219 = vst [vmem:[%s4217 + $0x8] sm:$0xff] %v4214
        %4220 = vst [vmem:[%s4217 + $0x10] sm:$0xff] %v4215
        %4221 = vst [vmem:[%s4217 + $0x18] sm:$0xff] %v4216
        %4222 = vst [vmem:[#allocation2] sm:$0xff] %v4213
        %4223 = vst [vmem:[#allocation2 + $0x8] sm:$0xff] %v4214
        %4224 = vst [vmem:[#allocation2 + $0x10] sm:$0xff] %v4215
        %4225 = vst [vmem:[#allocation2 + $0x18] sm:$0xff] %v4216
        %s4226 = sand.u32 %s227, 1
        %s4227 = scalar_lea.sflag [#allocation7], %s4226
        %s4228 = sand.u32 %s227, 1
        %s4229 = smul.addr %s4228, 128
        %s4230 = scalar_lea.vmem [#allocation11], %s4229
        // Predicated region
        $region73: #{tpu_custom_call.1} parent=55 // pred_check
          %p4231 = pneg %p237
        $region74: #{tpu_custom_call.1} parent=55 // pred_check_branch
          %4233 = sbr.rel (%p4231) target = $region76
        $region75: #{tpu_custom_call.1} parent=55 // pred_region
          %s4234 = smul.u32 4, %s25
          %s4236 = ssub.s32 2048, 2048
          %4237 = vsyncadd %s4227, %s4236
          %s4238 = smul.addr %s4234, 4
          %s4239 = smul.addr %s4238, 128
          %s4240 = scalar_lea.hbm %s9, %s4239
          %s4241 = sshll.u32 %s4230, 4
          %s4242 = int_to_ptr.vmem [resolvable:$true] %s4241
          %4247 = dma.vmem_to_hbm [thread:$0]  %s4242, 2048, %s4240, %s4227, 128, 128, 8
        $region76: #{tpu_custom_call.1} parent=55 // pred_fallthru
          _
      $region56: #{tpu_custom_call.1} parent=5 // pred_fallthru
        _
      %p4248 = scmp.le.s32.totalorder 2, %s20
      // Predicated region
      $region77: #{tpu_custom_call.1} parent=5 // pred_check
        %p4249 = pneg %p4248
      $region78: #{tpu_custom_call.1} parent=5 // pred_check_branch
        %4251 = sbr.rel (%p4249) target = $region80
      $region79: #{tpu_custom_call.1} parent=5 // pred_region
        %s4252 = ssub.s32 %s20, 2
        // Predicated region
        $region81: #{tpu_custom_call.1} parent=79 // pred_check
          %p4253 = pneg %p243
        $region82: #{tpu_custom_call.1} parent=79 // pred_check_branch
          %4255 = sbr.rel (%p4253) target = $region84
        $region83: #{tpu_custom_call.1} parent=79 // pred_region
          %s4256 = sand.u32 %s228, 1
          %s4257 = scalar_lea.sflag [#allocation7], %s4256
          %s4258 = sand.u32 %s228, 1
          %s4259 = smul.addr %s4258, 128
          %s4260 = scalar_lea.vmem [#allocation11], %s4259
          %4261 = dma.done %s4257, 2048
        $region84: #{tpu_custom_call.1} parent=79 // pred_fallthru
          _
      $region80: #{tpu_custom_call.1} parent=5 // pred_fallthru
        _
    $region6: #{tpu_custom_call.1} parent=1 // loop_footer
      %s24 = sadd.s32 1, %s20
    $region7: #{tpu_custom_call.1} parent=1 // loop_footer_branch
      %19 = sbr.rel target = $region3
    $region8: #{tpu_custom_call.1} parent=1 // loop_exit
      _
    %4262 = vsyncpa [#allocation6], 1
    %s4263 = scalar_lea.sflag [#allocation6], 1
    %4264 = vsyncpa %s4263, 1
    %4265 = vsyncpa [#allocation9], 1
    %4266 = vsyncpa [#allocation7], 1
    %s4267 = scalar_lea.sflag [#allocation7], 1
    %4268 = vsyncpa %s4267, 1

</llo_original>
